<compile_context>
chip_gen: v7x
topology: tpu7x:2x2x1
jax: 0.10.0
libtpu: 0.0.40
codegen_flags: <defaults>
</compile_context>

<pallas_src>
import functools
from math import sqrt

import jax
import jax.numpy as jnp
from jax import lax
from jax.experimental import pallas as pl
from jax.experimental.pallas import tpu as pltpu


# ------------------------------- Pallas kernel -------------------------------
def _style_block_kernel(*refs, w_img, tr, neg_slope, has_rgb):
    """One (batch, row-tile) step of a style-modulated 3x3 conv block.

    Inputs (in order):
      x_halo : (C_in_p, (tr+4)*W) bf16  style-PRE-modulated activation, row-major
               flattened, with 2 halo rows above and 2 below (zeros off-image).
      sigma  : (C_out_p, 1) f32         per-sample demodulation scale.
      noise  : (1, tr*W) f32            per-pixel noise for this tile.
      w_taps : (9, C_out_p, C_in_p) bf16 shared equalized conv weight (tap-major).
      bsn    : (C_out_p, 2) f32         [:,0]=bias, [:,1]=scale_noise (zero rows
               for padded channels so the padding stays exactly 0).
      edge   : (2, tr*W) bf16           0/1 masks for the left/right conv padding.
      (has_rgb) w_rgb : (8, C_out_p) bf16 per-sample modulated ToRGB weight.
      (has_rgb) b_rgb : (8, 1) f32        ToRGB bias (zero padded rows).
    Outputs:
      y   : (C_out_p, tr*W)             LeakyReLU(conv*sigma + sn*noise + bias)
      (has_rgb) rgb : (8, tr*W)         fused ToRGB of y.
    """
    if has_rgb:
        (x_ref, sig_ref, noise_ref, w_ref, bsn_ref, edge_ref,
         wrgb_ref, brgb_ref, out_ref, rgb_ref) = refs
    else:
        (x_ref, sig_ref, noise_ref, w_ref, bsn_ref, edge_ref, out_ref) = refs

    l_out = tr * w_img
    left = edge_ref[0:1, :]            # 1.0 where column c-1 is inside the image
    right = edge_ref[1:2, :]           # 1.0 where column c+1 is inside the image

    # 3x3 conv = 9 tap matmuls, f32 accumulation.  The halo holds padded image
    # rows [r*tr-2, r*tr+tr+2), so tap (kh, kw) is the static lane slice of the
    # halo starting at (kh+1)*W + kw - 1 (always >= 0, always in bounds).
    acc = None
    for kh in range(3):
        for kw in range(3):
            off = (kh + 1) * w_img + (kw - 1)
            t = x_ref[:, off:off + l_out]                 # (C_in_p, l_out) bf16
            if kw == 0:
                t = t * left
            elif kw == 2:
                t = t * right
            d = jnp.dot(w_ref[3 * kh + kw], t,
                        preferred_element_type=jnp.float32)
            acc = d if acc is None else acc + d           # (C_out_p, l_out) f32

    # Demodulation (precomputed in f32 in the wrapper), noise, bias, LeakyReLU.
    y = acc * sig_ref[...]
    y = y + bsn_ref[:, 0:1] + bsn_ref[:, 1:2] * noise_ref[...]
    y = jnp.where(y >= 0, y, neg_slope * y)
    out_ref[...] = y.astype(out_ref.dtype)

    if has_rgb:
        # Fused ToRGB (1x1 modulated conv, no demod) on the tile already in vregs.
        z = jnp.dot(wrgb_ref[...], y.astype(jnp.bfloat16),
                    preferred_element_type=jnp.float32)
        z = z + brgb_ref[...]
        rgb_ref[...] = jnp.where(z >= 0, z, neg_slope * z).astype(rgb_ref.dtype)


# ------------------------------- wrapper glue ---------------------------------
def _round_up(n, m):
    return ((n + m - 1) // m) * m


def _vmem_capacity():
    try:
        return int(pltpu.get_tpu_info().vmem_capacity_bytes)
    except Exception:
        return 64 << 20                       # conservative (v7x per-TensorCore)


def _choose_row_tile(h, w_img, c_in_p, c_out_p, budget_bytes):
    """Pick a row tile TR: lane-dense output (TR*W % 128 == 0), >= 2 pipeline
    steps along HW when possible, double-buffered tiles within budget."""
    def tile_bytes(tr):
        return 2 * (c_in_p * (tr + 4) * w_img * 2     # halo (bf16)
                    + c_out_p * tr * w_img * 2        # y out (bf16)
                    + tr * w_img * 4                  # noise
                    + 8 * tr * w_img * 4)             # rgb out
    divisors = [d for d in range(1, h + 1) if h % d == 0]
    aligned = [d for d in divisors if (d * w_img) % 128 == 0] or [h]
    fitting = [d for d in aligned if tile_bytes(d) <= budget_bytes] or [min(aligned)]
    multi = [d for d in fitting if h // d >= 2]
    return max(multi) if multi else max(fitting)


def _to_style(w_lat, style_w, style_b):
    # EqualizedLinear: s = w @ (style_w / sqrt(W_DIM)).T + bias.
    w_dim = w_lat.shape[1]
    return jnp.dot(w_lat, style_w.T * (1.0 / sqrt(w_dim)),
                   precision=lax.Precision.HIGHEST) + style_b[None, :]


def _build_halo(x, s, c_pad, tr):
    """Activation-side style modulation + row-halo layout.

    Returns (B, n_rt, c_pad, (tr+4)*W) bf16 where row-tile r holds padded image
    rows [r*tr-2, r*tr+tr+2) flattened row-major (zero rows outside the image).
    """
    b, c, h, w = x.shape
    n_rt = h // tr
    s_p = jnp.pad(s.astype(jnp.float32), ((0, 0), (0, c - s.shape[1])))
    xm = x.astype(jnp.float32) * s_p[:, :, None, None]
    xm = jnp.pad(xm, ((0, 0), (0, c_pad - c), (2, 2), (0, 0)))
    rows = jnp.arange(n_rt)[:, None] * tr + jnp.arange(tr + 4)[None, :]
    halo = jnp.transpose(xm[:, :, rows, :], (0, 2, 1, 3, 4))
    return halo.reshape(b, n_rt, c_pad, (tr + 4) * w).astype(jnp.bfloat16)


def _prep_conv_weight(conv_w, c_out_p, c_in_p):
    # Equalized-lr scaled, channel-padded, tap-major: (9, C_out_p, C_in_p) bf16.
    c_out, c_in, kh, kw = conv_w.shape
    c_conv = 1.0 / sqrt(c_in * kh * kw)
    wp = jnp.pad(conv_w.astype(jnp.float32) * c_conv,
                 ((0, c_out_p - c_out), (0, c_in_p - c_in), (0, 0), (0, 0)))
    return jnp.transpose(wp, (2, 3, 0, 1)).reshape(
        kh * kw, c_out_p, c_in_p).astype(jnp.bfloat16)


def _demod_sigma_inv(conv_w, s, c_out_p, eps=1e-8):
    # Per-sample demod scale from the *f32* modulated weight: (B, C_out_p, 1).
    c_out, c_in, kh, kw = conv_w.shape
    w_sq = jnp.sum(conv_w.astype(jnp.float32) ** 2, axis=(2, 3)) / (c_in * kh * kw)
    sig = lax.rsqrt(jnp.dot(s.astype(jnp.float32) ** 2, w_sq.T,
                            precision=lax.Precision.HIGHEST) + eps)    # (B, C_out)
    return jnp.pad(sig, ((0, 0), (0, c_out_p - c_out)))[:, :, None]


def _bias_noise_col(bias, scale_noise, c_out_p):
    c_out = bias.shape[0]
    b_col = jnp.pad(bias.astype(jnp.float32), (0, c_out_p - c_out))
    sn_col = jnp.pad(jnp.full((c_out,), scale_noise[0], jnp.float32),
                     (0, c_out_p - c_out))
    return jnp.stack([b_col, sn_col], axis=1)                  # (C_out_p, 2)


def _prep_rgb(rgb_conv_w, s_rgb, rgb_bias, c_out_p, rgb_p=8):
    # Per-sample modulated 1x1 ToRGB weight (no demod): (B, 8, C_out_p) bf16.
    n_rgb, c_feat = rgb_conv_w.shape[:2]
    wmat = rgb_conv_w[:, :, 0, 0].astype(jnp.float32) * (1.0 / sqrt(c_feat))
    wmod = wmat[None, :, :] * s_rgb.astype(jnp.float32)[:, None, :]
    wmod = jnp.pad(wmod, ((0, 0), (0, rgb_p - n_rgb), (0, c_out_p - c_feat)))
    b_col = jnp.pad(rgb_bias.astype(jnp.float32), (0, rgb_p - n_rgb))[:, None]
    return wmod.astype(jnp.bfloat16), b_col


def _style_block_call(x_halo, sigma, noise, w_taps, bsn, h, w_img, tr,
                      rgb_w=None, rgb_b=None, out_dtype=jnp.bfloat16):
    B, n_rt, c_in_p, l_in = x_halo.shape
    c_out_p = w_taps.shape[1]
    l_out = tr * w_img
    hw = h * w_img
    has_rgb = rgb_w is not None

    # Column edge masks (left/right conv zero padding), grid-invariant constants.
    col = jnp.arange(l_out, dtype=jnp.int32) % w_img
    edge = jnp.stack([col > 0, col < (w_img - 1)], axis=0).astype(jnp.bfloat16)

    in_specs = [
        pl.BlockSpec((None, None, c_in_p, l_in), lambda b, r: (b, r, 0, 0)),
        pl.BlockSpec((None, c_out_p, 1), lambda b, r: (b, 0, 0)),
        pl.BlockSpec((None, 1, l_out), lambda b, r: (b, 0, r)),
        # TODO(synk): at production widths give the grid-invariant blocks below
        # pipeline_mode=pl.Buffered(1) to reclaim a weight-sized VMEM buffer.
        pl.BlockSpec((9, c_out_p, c_in_p), lambda b, r: (0, 0, 0)),
        pl.BlockSpec((c_out_p, 2), lambda b, r: (0, 0)),
        pl.BlockSpec((2, l_out), lambda b, r: (0, 0)),
    ]
    inputs = [x_halo, sigma, noise, w_taps, bsn, edge]
    out_shape = [jax.ShapeDtypeStruct((B, c_out_p, hw), out_dtype)]
    out_specs = [pl.BlockSpec((None, c_out_p, l_out), lambda b, r: (b, 0, r))]
    if has_rgb:
        rgb_p = rgb_w.shape[1]
        in_specs += [pl.BlockSpec((None, rgb_p, c_out_p), lambda b, r: (b, 0, 0)),
                     pl.BlockSpec((rgb_p, 1), lambda b, r: (0, 0))]
        inputs += [rgb_w, rgb_b]
        out_shape.append(jax.ShapeDtypeStruct((B, rgb_p, hw), jnp.float32))
        out_specs.append(pl.BlockSpec((None, rgb_p, l_out), lambda b, r: (b, 0, r)))

    # VMEM budget: double-buffered tiles + weights + headroom, capped per-gen
    # (v7x: 64 MiB/TC, v5e/v6e: 128 MiB) so Mosaic keeps room for its scratch.
    per_step = (c_in_p * l_in * 2 + l_out * 4 + c_out_p * l_out * 2
                + 9 * c_out_p * c_in_p * 2 + c_out_p * 16 + 4 * l_out)
    if has_rgb:
        per_step += 8 * l_out * 4 + 8 * c_out_p * 2 + 64
    vmem_limit = int(min(max(2 * per_step + (4 << 20), 16 << 20),
                         int(_vmem_capacity() * 0.7)))

    kernel = functools.partial(_style_block_kernel, w_img=w_img, tr=tr,
                               neg_slope=0.2, has_rgb=has_rgb)
    return pl.pallas_call(
        kernel,
        out_shape=tuple(out_shape),
        grid=(B, n_rt),
        in_specs=in_specs,
        out_specs=tuple(out_specs),
        compiler_params=pltpu.CompilerParams(
            dimension_semantics=("parallel", "parallel"),
            vmem_limit_bytes=vmem_limit),
    )(*inputs)


# ------------------------------- GeneratorBlock -------------------------------
@jax.jit
def generator_block_forward(x, w, noise, params):
    noise1, noise2 = noise
    B, C_in, H, W_img = x.shape
    HW = H * W_img
    sb1, sb2, rgb = params["style_block1"], params["style_block2"], params["to_rgb"]
    C_out = sb1["conv_w"].shape[0]
    # bf16 packs two rows per sublane -> pad channel axes to multiples of 16.
    C_in_p, C_out_p, RGB_P = _round_up(C_in, 16), _round_up(C_out, 16), 8

    tr = _choose_row_tile(H, W_img, max(C_in_p, C_out_p), C_out_p,
                          int(_vmem_capacity() * 0.4))

    # ---- style block 1 -------------------------------------------------------
    s1 = _to_style(w, sb1["style_w"], sb1["style_b"])
    (y1,) = _style_block_call(
        _build_halo(x, s1, C_in_p, tr),
        _demod_sigma_inv(sb1["conv_w"], s1, C_out_p),
        noise1.reshape(B, 1, HW),
        _prep_conv_weight(sb1["conv_w"], C_out_p, C_in_p),
        _bias_noise_col(sb1["bias"], sb1["scale_noise"], C_out_p),
        H, W_img, tr)                                  # (B, C_out_p, HW) bf16

    # ---- style block 2 + fused ToRGB ------------------------------------------
    s2 = _to_style(w, sb2["style_w"], sb2["style_b"])
    s3 = _to_style(w, rgb["style_w"], rgb["style_b"])
    rgb_w, rgb_b = _prep_rgb(rgb["conv_w"], s3, rgb["bias"], C_out_p, RGB_P)
    y2, rgb_out = _style_block_call(
        _build_halo(y1.reshape(B, C_out_p, H, W_img), s2, C_out_p, tr),
        _demod_sigma_inv(sb2["conv_w"], s2, C_out_p),
        noise2.reshape(B, 1, HW),
        _prep_conv_weight(sb2["conv_w"], C_out_p, C_out_p),
        _bias_noise_col(sb2["bias"], sb2["scale_noise"], C_out_p),
        H, W_img, tr,
        rgb_w=rgb_w, rgb_b=rgb_b)

    x_out = y2[:, :C_out].reshape(B, C_out, H, W_img).astype(jnp.float32)
    rgb_final = rgb_out[:, :3].reshape(B, 3, H, W_img)
    return x_out, rgb_final


# ------------------------------ pure-JAX reference ----------------------------
def _ref_style_block(x, w, noise, p):
    B, C_in, H, W = x.shape
    w_dim = w.shape[1]
    s = w @ (p["style_w"] * (1.0 / sqrt(w_dim))).T + p["style_b"]
    c_conv = 1.0 / sqrt(C_in * 9)
    weights = (p["conv_w"] * c_conv)[None] * s[:, None, :, None, None]
    sigma_inv = lax.rsqrt(jnp.sum(weights ** 2, axis=(2, 3, 4), keepdims=True) + 1e-8)
    weights = weights * sigma_inv
    outs = [lax.conv_general_dilated(
        x[b:b + 1], weights[b], (1, 1), ((1, 1), (1, 1)),
        dimension_numbers=("NCHW", "OIHW", "NCHW"),
        precision=lax.Precision.HIGHEST) for b in range(B)]
    out = jnp.concatenate(outs, axis=0)
    out = out + p["scale_noise"][None, :, None, None] * noise
    out = out + p["bias"][None, :, None, None]
    return jnp.where(out >= 0, out, 0.2 * out)


def _ref_to_rgb(x, w, p):
    B, C_f, H, W = x.shape
    w_dim = w.shape[1]
    s = w @ (p["style_w"] * (1.0 / sqrt(w_dim))).T + p["style_b"]      # (B, C_f)
    wmat = p["conv_w"][:, :, 0, 0] * (1.0 / sqrt(C_f))                 # (3, C_f)
    wb = wmat[None] * s[:, None, :]                                    # (B, 3, C_f)
    out = jnp.einsum("boc,bchw->bohw", wb, x, precision=lax.Precision.HIGHEST)
    out = out + p["bias"][None, :, None, None]
    return jnp.where(out >= 0, out, 0.2 * out)


def reference_forward(x, w, noise, params):
    x = _ref_style_block(x, w, noise[0], params["style_block1"])
    x = _ref_style_block(x, w, noise[1], params["style_block2"])
    rgb = _ref_to_rgb(x, w, params["to_rgb"])
    return x, rgb


# ------------------------------------ main ------------------------------------
if __name__ == "__main__":
    B, C_in, C_out, H, W_sp, W_DIM = 2, 4, 8, 16, 16, 32
    key = jax.random.PRNGKey(0)
    ks = jax.random.split(key, 12)

    x = jax.random.normal(ks[0], (B, C_in, H, W_sp), jnp.float32)
    w = jax.random.normal(ks[1], (B, W_DIM), jnp.float32)
    noise = (jax.random.normal(ks[2], (B, 1, H, W_sp), jnp.float32),
             jax.random.normal(ks[3], (B, 1, H, W_sp), jnp.float32))

    def style_block_params(k, c_in, c_out):
        k1, k2, k3 = jax.random.split(k, 3)
        return {
            "style_w": jax.random.normal(k1, (c_in, W_DIM), jnp.float32),
            "style_b": jnp.ones((c_in,), jnp.float32),      # EqualizedLinear bias=1.0
            "conv_w": jax.random.normal(k2, (c_out, c_in, 3, 3), jnp.float32),
            # zeros in __init__; use small nonzero values so these paths are exercised
            "bias": 0.1 * jax.random.normal(k3, (c_out,), jnp.float32),
            "scale_noise": jnp.array([0.1], jnp.float32),
        }

    params = {
        "style_block1": style_block_params(ks[4], C_in, C_out),
        "style_block2": style_block_params(ks[5], C_out, C_out),
        "to_rgb": {
            "style_w": jax.random.normal(ks[6], (C_out, W_DIM), jnp.float32),
            "style_b": jnp.ones((C_out,), jnp.float32),
            "conv_w": jax.random.normal(ks[7], (3, C_out, 1, 1), jnp.float32),
            "bias": 0.1 * jax.random.normal(ks[8], (3,), jnp.float32),
        },
    }

    x_out, rgb_out = jax.block_until_ready(generator_block_forward(x, w, noise, params))
    x_ref, rgb_ref = jax.block_until_ready(reference_forward(x, w, noise, params))

    assert x_out.shape == (B, C_out, H, W_sp), x_out.shape
    assert rgb_out.shape == (B, 3, H, W_sp), rgb_out.shape
    for name, a, b in (("x", x_out, x_ref), ("rgb", rgb_out, rgb_ref)):
        if not bool(jnp.allclose(a, b, atol=5e-2, rtol=5e-2)):
            raise AssertionError(
                f"{name} mismatch vs reference, max abs err="
                f"{float(jnp.max(jnp.abs(a - b)))}")
    print("KERNEL_OK")
</pallas_src>

<mosaic_0001>
module attributes {stable_mosaic.version = 11 : i64} {
  func.func @_style_block_kernel(%arg0: i32, %arg1: i32, %arg2: memref<1x1x16x192xbf16, #tpu.memory_space<vmem>>, %arg3: memref<1x16x1xf32, #tpu.memory_space<vmem>>, %arg4: memref<1x1x128xf32, #tpu.memory_space<vmem>>, %arg5: memref<9x16x16xbf16, #tpu.memory_space<vmem>>, %arg6: memref<16x2xf32, #tpu.memory_space<vmem>>, %arg7: memref<2x128xbf16, #tpu.memory_space<vmem>>, %arg8: memref<1x16x128xbf16, #tpu.memory_space<vmem>>) attributes {dimension_semantics = [#tpu.dimension_semantics<parallel>, #tpu.dimension_semantics<parallel>], iteration_bounds = array<i64: 2, 2>, scalar_prefetch = 0 : i64, scratch_operands = 0 : i64, tpu.core_type = #tpu.core_type<tc>, window_params = [{transform_indices = @transform_0, window_bounds = array<i64: 1, 1, 16, 192>}, {transform_indices = @transform_1, window_bounds = array<i64: 1, 16, 1>}, {transform_indices = @transform_2, window_bounds = array<i64: 1, 1, 128>}, {pipeline_mode = #tpu.pipeline_mode<synchronous>, transform_indices = @transform_3, window_bounds = array<i64: 9, 16, 16>}, {pipeline_mode = #tpu.pipeline_mode<synchronous>, transform_indices = @transform_4, window_bounds = array<i64: 16, 2>}, {pipeline_mode = #tpu.pipeline_mode<synchronous>, transform_indices = @transform_5, window_bounds = array<i64: 2, 128>}, {transform_indices = @transform_6, window_bounds = array<i64: 1, 16, 128>}]} {
    %c0 = arith.constant 0 : index
    %c0_0 = arith.constant 0 : index
    %0 = vector.load %arg7[%c0, %c0_0] : memref<2x128xbf16, #tpu.memory_space<vmem>>, vector<1x128xbf16>
    %c1 = arith.constant 1 : index
    %c0_1 = arith.constant 0 : index
    %1 = vector.load %arg7[%c1, %c0_1] : memref<2x128xbf16, #tpu.memory_space<vmem>>, vector<1x128xbf16>
    %c0_2 = arith.constant 0 : index
    %c0_3 = arith.constant 0 : index
    %c0_4 = arith.constant 0 : index
    %c15 = arith.constant 15 : index
    %2 = vector.load %arg2[%c0_2, %c0_3, %c0_4, %c15] : memref<1x1x16x192xbf16, #tpu.memory_space<vmem>>, vector<1x1x16x128xbf16>
    %3 = vector.shape_cast %2 : vector<1x1x16x128xbf16> to vector<16x128xbf16>
    %4 = vector.broadcast %0 : vector<1x128xbf16> to vector<16x128xbf16>
    %5 = arith.mulf %3, %4 : vector<16x128xbf16>
    %c0_5 = arith.constant 0 : index
    %c0_6 = arith.constant 0 : index
    %c0_7 = arith.constant 0 : index
    %6 = vector.load %arg5[%c0_5, %c0_6, %c0_7] : memref<9x16x16xbf16, #tpu.memory_space<vmem>>, vector<1x16x16xbf16>
    %7 = vector.shape_cast %6 : vector<1x16x16xbf16> to vector<16x16xbf16>
    %cst = arith.constant dense<0.000000e+00> : vector<16x128xf32>
    %8 = tpu.matmul %7, %5, %cst {dimension_numbers = #tpu.dot_dimension_numbers<[1], [0], [0], [1], [0, 0, 1, 1], [], []>} : vector<16x16xbf16>, vector<16x128xbf16>, vector<16x128xf32> -> vector<16x128xf32>
    %c0_8 = arith.constant 0 : index
    %c0_9 = arith.constant 0 : index
    %c0_10 = arith.constant 0 : index
    %c16 = arith.constant 16 : index
    %9 = vector.load %arg2[%c0_8, %c0_9, %c0_10, %c16] : memref<1x1x16x192xbf16, #tpu.memory_space<vmem>>, vector<1x1x16x128xbf16>
    %10 = vector.shape_cast %9 : vector<1x1x16x128xbf16> to vector<16x128xbf16>
    %c1_11 = arith.constant 1 : index
    %c0_12 = arith.constant 0 : index
    %c0_13 = arith.constant 0 : index
    %11 = vector.load %arg5[%c1_11, %c0_12, %c0_13] : memref<9x16x16xbf16, #tpu.memory_space<vmem>>, vector<1x16x16xbf16>
    %12 = vector.shape_cast %11 : vector<1x16x16xbf16> to vector<16x16xbf16>
    %cst_14 = arith.constant dense<0.000000e+00> : vector<16x128xf32>
    %13 = tpu.matmul %12, %10, %cst_14 {dimension_numbers = #tpu.dot_dimension_numbers<[1], [0], [0], [1], [0, 0, 1, 1], [], []>} : vector<16x16xbf16>, vector<16x128xbf16>, vector<16x128xf32> -> vector<16x128xf32>
    %14 = arith.addf %8, %13 : vector<16x128xf32>
    %c0_15 = arith.constant 0 : index
    %c0_16 = arith.constant 0 : index
    %c0_17 = arith.constant 0 : index
    %c17 = arith.constant 17 : index
    %15 = vector.load %arg2[%c0_15, %c0_16, %c0_17, %c17] : memref<1x1x16x192xbf16, #tpu.memory_space<vmem>>, vector<1x1x16x128xbf16>
    %16 = vector.shape_cast %15 : vector<1x1x16x128xbf16> to vector<16x128xbf16>
    %17 = vector.broadcast %1 : vector<1x128xbf16> to vector<16x128xbf16>
    %18 = arith.mulf %16, %17 : vector<16x128xbf16>
    %c2 = arith.constant 2 : index
    %c0_18 = arith.constant 0 : index
    %c0_19 = arith.constant 0 : index
    %19 = vector.load %arg5[%c2, %c0_18, %c0_19] : memref<9x16x16xbf16, #tpu.memory_space<vmem>>, vector<1x16x16xbf16>
    %20 = vector.shape_cast %19 : vector<1x16x16xbf16> to vector<16x16xbf16>
    %cst_20 = arith.constant dense<0.000000e+00> : vector<16x128xf32>
    %21 = tpu.matmul %20, %18, %cst_20 {dimension_numbers = #tpu.dot_dimension_numbers<[1], [0], [0], [1], [0, 0, 1, 1], [], []>} : vector<16x16xbf16>, vector<16x128xbf16>, vector<16x128xf32> -> vector<16x128xf32>
    %22 = arith.addf %14, %21 : vector<16x128xf32>
    %c0_21 = arith.constant 0 : index
    %c0_22 = arith.constant 0 : index
    %c0_23 = arith.constant 0 : index
    %c31 = arith.constant 31 : index
    %23 = vector.load %arg2[%c0_21, %c0_22, %c0_23, %c31] : memref<1x1x16x192xbf16, #tpu.memory_space<vmem>>, vector<1x1x16x128xbf16>
    %24 = vector.shape_cast %23 : vector<1x1x16x128xbf16> to vector<16x128xbf16>
    %25 = vector.broadcast %0 : vector<1x128xbf16> to vector<16x128xbf16>
    %26 = arith.mulf %24, %25 : vector<16x128xbf16>
    %c3 = arith.constant 3 : index
    %c0_24 = arith.constant 0 : index
    %c0_25 = arith.constant 0 : index
    %27 = vector.load %arg5[%c3, %c0_24, %c0_25] : memref<9x16x16xbf16, #tpu.memory_space<vmem>>, vector<1x16x16xbf16>
    %28 = vector.shape_cast %27 : vector<1x16x16xbf16> to vector<16x16xbf16>
    %cst_26 = arith.constant dense<0.000000e+00> : vector<16x128xf32>
    %29 = tpu.matmul %28, %26, %cst_26 {dimension_numbers = #tpu.dot_dimension_numbers<[1], [0], [0], [1], [0, 0, 1, 1], [], []>} : vector<16x16xbf16>, vector<16x128xbf16>, vector<16x128xf32> -> vector<16x128xf32>
    %30 = arith.addf %22, %29 : vector<16x128xf32>
    %c0_27 = arith.constant 0 : index
    %c0_28 = arith.constant 0 : index
    %c0_29 = arith.constant 0 : index
    %c32 = arith.constant 32 : index
    %31 = vector.load %arg2[%c0_27, %c0_28, %c0_29, %c32] : memref<1x1x16x192xbf16, #tpu.memory_space<vmem>>, vector<1x1x16x128xbf16>
    %32 = vector.shape_cast %31 : vector<1x1x16x128xbf16> to vector<16x128xbf16>
    %c4 = arith.constant 4 : index
    %c0_30 = arith.constant 0 : index
    %c0_31 = arith.constant 0 : index
    %33 = vector.load %arg5[%c4, %c0_30, %c0_31] : memref<9x16x16xbf16, #tpu.memory_space<vmem>>, vector<1x16x16xbf16>
    %34 = vector.shape_cast %33 : vector<1x16x16xbf16> to vector<16x16xbf16>
    %cst_32 = arith.constant dense<0.000000e+00> : vector<16x128xf32>
    %35 = tpu.matmul %34, %32, %cst_32 {dimension_numbers = #tpu.dot_dimension_numbers<[1], [0], [0], [1], [0, 0, 1, 1], [], []>} : vector<16x16xbf16>, vector<16x128xbf16>, vector<16x128xf32> -> vector<16x128xf32>
    %36 = arith.addf %30, %35 : vector<16x128xf32>
    %c0_33 = arith.constant 0 : index
    %c0_34 = arith.constant 0 : index
    %c0_35 = arith.constant 0 : index
    %c33 = arith.constant 33 : index
    %37 = vector.load %arg2[%c0_33, %c0_34, %c0_35, %c33] : memref<1x1x16x192xbf16, #tpu.memory_space<vmem>>, vector<1x1x16x128xbf16>
    %38 = vector.shape_cast %37 : vector<1x1x16x128xbf16> to vector<16x128xbf16>
    %39 = vector.broadcast %1 : vector<1x128xbf16> to vector<16x128xbf16>
    %40 = arith.mulf %38, %39 : vector<16x128xbf16>
    %c5 = arith.constant 5 : index
    %c0_36 = arith.constant 0 : index
    %c0_37 = arith.constant 0 : index
    %41 = vector.load %arg5[%c5, %c0_36, %c0_37] : memref<9x16x16xbf16, #tpu.memory_space<vmem>>, vector<1x16x16xbf16>
    %42 = vector.shape_cast %41 : vector<1x16x16xbf16> to vector<16x16xbf16>
    %cst_38 = arith.constant dense<0.000000e+00> : vector<16x128xf32>
    %43 = tpu.matmul %42, %40, %cst_38 {dimension_numbers = #tpu.dot_dimension_numbers<[1], [0], [0], [1], [0, 0, 1, 1], [], []>} : vector<16x16xbf16>, vector<16x128xbf16>, vector<16x128xf32> -> vector<16x128xf32>
    %44 = arith.addf %36, %43 : vector<16x128xf32>
    %c0_39 = arith.constant 0 : index
    %c0_40 = arith.constant 0 : index
    %c0_41 = arith.constant 0 : index
    %c47 = arith.constant 47 : index
    %45 = vector.load %arg2[%c0_39, %c0_40, %c0_41, %c47] : memref<1x1x16x192xbf16, #tpu.memory_space<vmem>>, vector<1x1x16x128xbf16>
    %46 = vector.shape_cast %45 : vector<1x1x16x128xbf16> to vector<16x128xbf16>
    %47 = vector.broadcast %0 : vector<1x128xbf16> to vector<16x128xbf16>
    %48 = arith.mulf %46, %47 : vector<16x128xbf16>
    %c6 = arith.constant 6 : index
    %c0_42 = arith.constant 0 : index
    %c0_43 = arith.constant 0 : index
    %49 = vector.load %arg5[%c6, %c0_42, %c0_43] : memref<9x16x16xbf16, #tpu.memory_space<vmem>>, vector<1x16x16xbf16>
    %50 = vector.shape_cast %49 : vector<1x16x16xbf16> to vector<16x16xbf16>
    %cst_44 = arith.constant dense<0.000000e+00> : vector<16x128xf32>
    %51 = tpu.matmul %50, %48, %cst_44 {dimension_numbers = #tpu.dot_dimension_numbers<[1], [0], [0], [1], [0, 0, 1, 1], [], []>} : vector<16x16xbf16>, vector<16x128xbf16>, vector<16x128xf32> -> vector<16x128xf32>
    %52 = arith.addf %44, %51 : vector<16x128xf32>
    %c0_45 = arith.constant 0 : index
    %c0_46 = arith.constant 0 : index
    %c0_47 = arith.constant 0 : index
    %c48 = arith.constant 48 : index
    %53 = vector.load %arg2[%c0_45, %c0_46, %c0_47, %c48] : memref<1x1x16x192xbf16, #tpu.memory_space<vmem>>, vector<1x1x16x128xbf16>
    %54 = vector.shape_cast %53 : vector<1x1x16x128xbf16> to vector<16x128xbf16>
    %c7 = arith.constant 7 : index
    %c0_48 = arith.constant 0 : index
    %c0_49 = arith.constant 0 : index
    %55 = vector.load %arg5[%c7, %c0_48, %c0_49] : memref<9x16x16xbf16, #tpu.memory_space<vmem>>, vector<1x16x16xbf16>
    %56 = vector.shape_cast %55 : vector<1x16x16xbf16> to vector<16x16xbf16>
    %cst_50 = arith.constant dense<0.000000e+00> : vector<16x128xf32>
    %57 = tpu.matmul %56, %54, %cst_50 {dimension_numbers = #tpu.dot_dimension_numbers<[1], [0], [0], [1], [0, 0, 1, 1], [], []>} : vector<16x16xbf16>, vector<16x128xbf16>, vector<16x128xf32> -> vector<16x128xf32>
    %58 = arith.addf %52, %57 : vector<16x128xf32>
    %c0_51 = arith.constant 0 : index
    %c0_52 = arith.constant 0 : index
    %c0_53 = arith.constant 0 : index
    %c49 = arith.constant 49 : index
    %59 = vector.load %arg2[%c0_51, %c0_52, %c0_53, %c49] : memref<1x1x16x192xbf16, #tpu.memory_space<vmem>>, vector<1x1x16x128xbf16>
    %60 = vector.shape_cast %59 : vector<1x1x16x128xbf16> to vector<16x128xbf16>
    %61 = vector.broadcast %1 : vector<1x128xbf16> to vector<16x128xbf16>
    %62 = arith.mulf %60, %61 : vector<16x128xbf16>
    %c8 = arith.constant 8 : index
    %c0_54 = arith.constant 0 : index
    %c0_55 = arith.constant 0 : index
    %63 = vector.load %arg5[%c8, %c0_54, %c0_55] : memref<9x16x16xbf16, #tpu.memory_space<vmem>>, vector<1x16x16xbf16>
    %64 = vector.shape_cast %63 : vector<1x16x16xbf16> to vector<16x16xbf16>
    %cst_56 = arith.constant dense<0.000000e+00> : vector<16x128xf32>
    %65 = tpu.matmul %64, %62, %cst_56 {dimension_numbers = #tpu.dot_dimension_numbers<[1], [0], [0], [1], [0, 0, 1, 1], [], []>} : vector<16x16xbf16>, vector<16x128xbf16>, vector<16x128xf32> -> vector<16x128xf32>
    %66 = arith.addf %58, %65 : vector<16x128xf32>
    %c0_57 = arith.constant 0 : index
    %c0_58 = arith.constant 0 : index
    %c0_59 = arith.constant 0 : index
    %67 = vector.load %arg3[%c0_57, %c0_58, %c0_59] : memref<1x16x1xf32, #tpu.memory_space<vmem>>, vector<1x16x1xf32>
    %68 = vector.shape_cast %67 : vector<1x16x1xf32> to vector<16x1xf32>
    %69 = vector.broadcast %68 : vector<16x1xf32> to vector<16x128xf32>
    %70 = arith.mulf %66, %69 : vector<16x128xf32>
    %c0_60 = arith.constant 0 : index
    %c0_61 = arith.constant 0 : index
    %71 = vector.load %arg6[%c0_60, %c0_61] : memref<16x2xf32, #tpu.memory_space<vmem>>, vector<16x1xf32>
    %72 = vector.broadcast %71 : vector<16x1xf32> to vector<16x128xf32>
    %73 = arith.addf %70, %72 : vector<16x128xf32>
    %c0_62 = arith.constant 0 : index
    %c1_63 = arith.constant 1 : index
    %74 = vector.load %arg6[%c0_62, %c1_63] : memref<16x2xf32, #tpu.memory_space<vmem>>, vector<16x1xf32>
    %c0_64 = arith.constant 0 : index
    %c0_65 = arith.constant 0 : index
    %c0_66 = arith.constant 0 : index
    %75 = vector.load %arg4[%c0_64, %c0_65, %c0_66] : memref<1x1x128xf32, #tpu.memory_space<vmem>>, vector<1x1x128xf32>
    %76 = vector.shape_cast %75 : vector<1x1x128xf32> to vector<1x128xf32>
    %77 = vector.broadcast %74 : vector<16x1xf32> to vector<16x128xf32>
    %78 = vector.broadcast %76 : vector<1x128xf32> to vector<16x128xf32>
    %79 = arith.mulf %77, %78 : vector<16x128xf32>
    %80 = arith.addf %73, %79 : vector<16x128xf32>
    %cst_67 = arith.constant 0.000000e+00 : f32
    %81 = vector.broadcast %cst_67 : f32 to vector<16x128xf32>
    %82 = arith.cmpf oge, %80, %81 : vector<16x128xf32>
    %cst_68 = arith.constant 2.000000e-01 : f32
    %83 = vector.broadcast %cst_68 : f32 to vector<16x128xf32>
    %84 = arith.mulf %83, %80 : vector<16x128xf32>
    %85 = arith.select %82, %80, %84 : vector<16x128xi1>, vector<16x128xf32>
    %86 = arith.truncf %85 : vector<16x128xf32> to vector<16x128xbf16>
    %c0_69 = arith.constant 0 : index
    %c0_70 = arith.constant 0 : index
    %c0_71 = arith.constant 0 : index
    %87 = vector.load %arg8[%c0_69, %c0_70, %c0_71] : memref<1x16x128xbf16, #tpu.memory_space<vmem>>, vector<1x16x128xbf16>
    %88 = vector.shape_cast %87 : vector<1x16x128xbf16> to vector<16x128xbf16>
    %89 = vector.shape_cast %86 : vector<16x128xbf16> to vector<1x16x128xbf16>
    tpu.vector_store %arg8[%c0_69, %c0_70, %c0_71], %89 {strides = array<i32>} : memref<1x16x128xbf16, #tpu.memory_space<vmem>>, vector<1x16x128xbf16>,
    return
  }
  func.func @transform_0(%arg0: i32, %arg1: i32) -> (i32, i32, i32, i32) {
    %c0_i32 = arith.constant 0 : i32
    %c0_i32_0 = arith.constant 0 : i32
    %c0_i32_1 = arith.constant 0 : i32
    return %arg0, %arg1, %c0_i32, %c0_i32_0 : i32, i32, i32, i32
  }
  func.func @transform_1(%arg0: i32, %arg1: i32) -> (i32, i32, i32) {
    %c0_i32 = arith.constant 0 : i32
    %c0_i32_0 = arith.constant 0 : i32
    %c0_i32_1 = arith.constant 0 : i32
    return %arg0, %c0_i32, %c0_i32_0 : i32, i32, i32
  }
  func.func @transform_2(%arg0: i32, %arg1: i32) -> (i32, i32, i32) {
    %c0_i32 = arith.constant 0 : i32
    %c0_i32_0 = arith.constant 0 : i32
    return %arg0, %c0_i32, %arg1 : i32, i32, i32
  }
  func.func @transform_3(%arg0: i32, %arg1: i32) -> (i32, i32, i32) {
    %c0_i32 = arith.constant 0 : i32
    %c0_i32_0 = arith.constant 0 : i32
    %c0_i32_1 = arith.constant 0 : i32
    %c0_i32_2 = arith.constant 0 : i32
    return %c0_i32, %c0_i32_0, %c0_i32_1 : i32, i32, i32
  }
  func.func @transform_4(%arg0: i32, %arg1: i32) -> (i32, i32) {
    %c0_i32 = arith.constant 0 : i32
    %c0_i32_0 = arith.constant 0 : i32
    %c0_i32_1 = arith.constant 0 : i32
    return %c0_i32, %c0_i32_0 : i32, i32
  }
  func.func @transform_5(%arg0: i32, %arg1: i32) -> (i32, i32) {
    %c0_i32 = arith.constant 0 : i32
    %c0_i32_0 = arith.constant 0 : i32
    %c0_i32_1 = arith.constant 0 : i32
    return %c0_i32, %c0_i32_0 : i32, i32
  }
  func.func @transform_6(%arg0: i32, %arg1: i32) -> (i32, i32, i32) {
    %c0_i32 = arith.constant 0 : i32
    %c0_i32_0 = arith.constant 0 : i32
    return %arg0, %c0_i32, %arg1 : i32, i32, i32
  }
}

module attributes {stable_mosaic.version = 11 : i64} {
  func.func @_style_block_kernel(%arg0: i32, %arg1: i32, %arg2: memref<1x1x16x192xbf16, #tpu.memory_space<vmem>>, %arg3: memref<1x16x1xf32, #tpu.memory_space<vmem>>, %arg4: memref<1x1x128xf32, #tpu.memory_space<vmem>>, %arg5: memref<9x16x16xbf16, #tpu.memory_space<vmem>>, %arg6: memref<16x2xf32, #tpu.memory_space<vmem>>, %arg7: memref<2x128xbf16, #tpu.memory_space<vmem>>, %arg8: memref<1x8x16xbf16, #tpu.memory_space<vmem>>, %arg9: memref<8x1xf32, #tpu.memory_space<vmem>>, %arg10: memref<1x16x128xbf16, #tpu.memory_space<vmem>>, %arg11: memref<1x8x128xf32, #tpu.memory_space<vmem>>) attributes {dimension_semantics = [#tpu.dimension_semantics<parallel>, #tpu.dimension_semantics<parallel>], iteration_bounds = array<i64: 2, 2>, scalar_prefetch = 0 : i64, scratch_operands = 0 : i64, tpu.core_type = #tpu.core_type<tc>, window_params = [{transform_indices = @transform_0, window_bounds = array<i64: 1, 1, 16, 192>}, {transform_indices = @transform_1, window_bounds = array<i64: 1, 16, 1>}, {transform_indices = @transform_2, window_bounds = array<i64: 1, 1, 128>}, {pipeline_mode = #tpu.pipeline_mode<synchronous>, transform_indices = @transform_3, window_bounds = array<i64: 9, 16, 16>}, {pipeline_mode = #tpu.pipeline_mode<synchronous>, transform_indices = @transform_4, window_bounds = array<i64: 16, 2>}, {pipeline_mode = #tpu.pipeline_mode<synchronous>, transform_indices = @transform_5, window_bounds = array<i64: 2, 128>}, {transform_indices = @transform_6, window_bounds = array<i64: 1, 8, 16>}, {pipeline_mode = #tpu.pipeline_mode<synchronous>, transform_indices = @transform_7, window_bounds = array<i64: 8, 1>}, {transform_indices = @transform_8, window_bounds = array<i64: 1, 16, 128>}, {transform_indices = @transform_9, window_bounds = array<i64: 1, 8, 128>}]} {
    %c0 = arith.constant 0 : index
    %c0_0 = arith.constant 0 : index
    %0 = vector.load %arg7[%c0, %c0_0] : memref<2x128xbf16, #tpu.memory_space<vmem>>, vector<1x128xbf16>
    %c1 = arith.constant 1 : index
    %c0_1 = arith.constant 0 : index
    %1 = vector.load %arg7[%c1, %c0_1] : memref<2x128xbf16, #tpu.memory_space<vmem>>, vector<1x128xbf16>
    %c0_2 = arith.constant 0 : index
    %c0_3 = arith.constant 0 : index
    %c0_4 = arith.constant 0 : index
    %c15 = arith.constant 15 : index
    %2 = vector.load %arg2[%c0_2, %c0_3, %c0_4, %c15] : memref<1x1x16x192xbf16, #tpu.memory_space<vmem>>, vector<1x1x16x128xbf16>
    %3 = vector.shape_cast %2 : vector<1x1x16x128xbf16> to vector<16x128xbf16>
    %4 = vector.broadcast %0 : vector<1x128xbf16> to vector<16x128xbf16>
    %5 = arith.mulf %3, %4 : vector<16x128xbf16>
    %c0_5 = arith.constant 0 : index
    %c0_6 = arith.constant 0 : index
    %c0_7 = arith.constant 0 : index
    %6 = vector.load %arg5[%c0_5, %c0_6, %c0_7] : memref<9x16x16xbf16, #tpu.memory_space<vmem>>, vector<1x16x16xbf16>
    %7 = vector.shape_cast %6 : vector<1x16x16xbf16> to vector<16x16xbf16>
    %cst = arith.constant dense<0.000000e+00> : vector<16x128xf32>
    %8 = tpu.matmul %7, %5, %cst {dimension_numbers = #tpu.dot_dimension_numbers<[1], [0], [0], [1], [0, 0, 1, 1], [], []>} : vector<16x16xbf16>, vector<16x128xbf16>, vector<16x128xf32> -> vector<16x128xf32>
    %c0_8 = arith.constant 0 : index
    %c0_9 = arith.constant 0 : index
    %c0_10 = arith.constant 0 : index
    %c16 = arith.constant 16 : index
    %9 = vector.load %arg2[%c0_8, %c0_9, %c0_10, %c16] : memref<1x1x16x192xbf16, #tpu.memory_space<vmem>>, vector<1x1x16x128xbf16>
    %10 = vector.shape_cast %9 : vector<1x1x16x128xbf16> to vector<16x128xbf16>
    %c1_11 = arith.constant 1 : index
    %c0_12 = arith.constant 0 : index
    %c0_13 = arith.constant 0 : index
    %11 = vector.load %arg5[%c1_11, %c0_12, %c0_13] : memref<9x16x16xbf16, #tpu.memory_space<vmem>>, vector<1x16x16xbf16>
    %12 = vector.shape_cast %11 : vector<1x16x16xbf16> to vector<16x16xbf16>
    %cst_14 = arith.constant dense<0.000000e+00> : vector<16x128xf32>
    %13 = tpu.matmul %12, %10, %cst_14 {dimension_numbers = #tpu.dot_dimension_numbers<[1], [0], [0], [1], [0, 0, 1, 1], [], []>} : vector<16x16xbf16>, vector<16x128xbf16>, vector<16x128xf32> -> vector<16x128xf32>
    %14 = arith.addf %8, %13 : vector<16x128xf32>
    %c0_15 = arith.constant 0 : index
    %c0_16 = arith.constant 0 : index
    %c0_17 = arith.constant 0 : index
    %c17 = arith.constant 17 : index
    %15 = vector.load %arg2[%c0_15, %c0_16, %c0_17, %c17] : memref<1x1x16x192xbf16, #tpu.memory_space<vmem>>, vector<1x1x16x128xbf16>
    %16 = vector.shape_cast %15 : vector<1x1x16x128xbf16> to vector<16x128xbf16>
    %17 = vector.broadcast %1 : vector<1x128xbf16> to vector<16x128xbf16>
    %18 = arith.mulf %16, %17 : vector<16x128xbf16>
    %c2 = arith.constant 2 : index
    %c0_18 = arith.constant 0 : index
    %c0_19 = arith.constant 0 : index
    %19 = vector.load %arg5[%c2, %c0_18, %c0_19] : memref<9x16x16xbf16, #tpu.memory_space<vmem>>, vector<1x16x16xbf16>
    %20 = vector.shape_cast %19 : vector<1x16x16xbf16> to vector<16x16xbf16>
    %cst_20 = arith.constant dense<0.000000e+00> : vector<16x128xf32>
    %21 = tpu.matmul %20, %18, %cst_20 {dimension_numbers = #tpu.dot_dimension_numbers<[1], [0], [0], [1], [0, 0, 1, 1], [], []>} : vector<16x16xbf16>, vector<16x128xbf16>, vector<16x128xf32> -> vector<16x128xf32>
    %22 = arith.addf %14, %21 : vector<16x128xf32>
    %c0_21 = arith.constant 0 : index
    %c0_22 = arith.constant 0 : index
    %c0_23 = arith.constant 0 : index
    %c31 = arith.constant 31 : index
    %23 = vector.load %arg2[%c0_21, %c0_22, %c0_23, %c31] : memref<1x1x16x192xbf16, #tpu.memory_space<vmem>>, vector<1x1x16x128xbf16>
    %24 = vector.shape_cast %23 : vector<1x1x16x128xbf16> to vector<16x128xbf16>
    %25 = vector.broadcast %0 : vector<1x128xbf16> to vector<16x128xbf16>
    %26 = arith.mulf %24, %25 : vector<16x128xbf16>
    %c3 = arith.constant 3 : index
    %c0_24 = arith.constant 0 : index
    %c0_25 = arith.constant 0 : index
    %27 = vector.load %arg5[%c3, %c0_24, %c0_25] : memref<9x16x16xbf16, #tpu.memory_space<vmem>>, vector<1x16x16xbf16>
    %28 = vector.shape_cast %27 : vector<1x16x16xbf16> to vector<16x16xbf16>
    %cst_26 = arith.constant dense<0.000000e+00> : vector<16x128xf32>
    %29 = tpu.matmul %28, %26, %cst_26 {dimension_numbers = #tpu.dot_dimension_numbers<[1], [0], [0], [1], [0, 0, 1, 1], [], []>} : vector<16x16xbf16>, vector<16x128xbf16>, vector<16x128xf32> -> vector<16x128xf32>
    %30 = arith.addf %22, %29 : vector<16x128xf32>
    %c0_27 = arith.constant 0 : index
    %c0_28 = arith.constant 0 : index
    %c0_29 = arith.constant 0 : index
    %c32 = arith.constant 32 : index
    %31 = vector.load %arg2[%c0_27, %c0_28, %c0_29, %c32] : memref<1x1x16x192xbf16, #tpu.memory_space<vmem>>, vector<1x1x16x128xbf16>
    %32 = vector.shape_cast %31 : vector<1x1x16x128xbf16> to vector<16x128xbf16>
    %c4 = arith.constant 4 : index
    %c0_30 = arith.constant 0 : index
    %c0_31 = arith.constant 0 : index
    %33 = vector.load %arg5[%c4, %c0_30, %c0_31] : memref<9x16x16xbf16, #tpu.memory_space<vmem>>, vector<1x16x16xbf16>
    %34 = vector.shape_cast %33 : vector<1x16x16xbf16> to vector<16x16xbf16>
    %cst_32 = arith.constant dense<0.000000e+00> : vector<16x128xf32>
    %35 = tpu.matmul %34, %32, %cst_32 {dimension_numbers = #tpu.dot_dimension_numbers<[1], [0], [0], [1], [0, 0, 1, 1], [], []>} : vector<16x16xbf16>, vector<16x128xbf16>, vector<16x128xf32> -> vector<16x128xf32>
    %36 = arith.addf %30, %35 : vector<16x128xf32>
    %c0_33 = arith.constant 0 : index
    %c0_34 = arith.constant 0 : index
    %c0_35 = arith.constant 0 : index
    %c33 = arith.constant 33 : index
    %37 = vector.load %arg2[%c0_33, %c0_34, %c0_35, %c33] : memref<1x1x16x192xbf16, #tpu.memory_space<vmem>>, vector<1x1x16x128xbf16>
    %38 = vector.shape_cast %37 : vector<1x1x16x128xbf16> to vector<16x128xbf16>
    %39 = vector.broadcast %1 : vector<1x128xbf16> to vector<16x128xbf16>
    %40 = arith.mulf %38, %39 : vector<16x128xbf16>
    %c5 = arith.constant 5 : index
    %c0_36 = arith.constant 0 : index
    %c0_37 = arith.constant 0 : index
    %41 = vector.load %arg5[%c5, %c0_36, %c0_37] : memref<9x16x16xbf16, #tpu.memory_space<vmem>>, vector<1x16x16xbf16>
    %42 = vector.shape_cast %41 : vector<1x16x16xbf16> to vector<16x16xbf16>
    %cst_38 = arith.constant dense<0.000000e+00> : vector<16x128xf32>
    %43 = tpu.matmul %42, %40, %cst_38 {dimension_numbers = #tpu.dot_dimension_numbers<[1], [0], [0], [1], [0, 0, 1, 1], [], []>} : vector<16x16xbf16>, vector<16x128xbf16>, vector<16x128xf32> -> vector<16x128xf32>
    %44 = arith.addf %36, %43 : vector<16x128xf32>
    %c0_39 = arith.constant 0 : index
    %c0_40 = arith.constant 0 : index
    %c0_41 = arith.constant 0 : index
    %c47 = arith.constant 47 : index
    %45 = vector.load %arg2[%c0_39, %c0_40, %c0_41, %c47] : memref<1x1x16x192xbf16, #tpu.memory_space<vmem>>, vector<1x1x16x128xbf16>
    %46 = vector.shape_cast %45 : vector<1x1x16x128xbf16> to vector<16x128xbf16>
    %47 = vector.broadcast %0 : vector<1x128xbf16> to vector<16x128xbf16>
    %48 = arith.mulf %46, %47 : vector<16x128xbf16>
    %c6 = arith.constant 6 : index
    %c0_42 = arith.constant 0 : index
    %c0_43 = arith.constant 0 : index
    %49 = vector.load %arg5[%c6, %c0_42, %c0_43] : memref<9x16x16xbf16, #tpu.memory_space<vmem>>, vector<1x16x16xbf16>
    %50 = vector.shape_cast %49 : vector<1x16x16xbf16> to vector<16x16xbf16>
    %cst_44 = arith.constant dense<0.000000e+00> : vector<16x128xf32>
    %51 = tpu.matmul %50, %48, %cst_44 {dimension_numbers = #tpu.dot_dimension_numbers<[1], [0], [0], [1], [0, 0, 1, 1], [], []>} : vector<16x16xbf16>, vector<16x128xbf16>, vector<16x128xf32> -> vector<16x128xf32>
    %52 = arith.addf %44, %51 : vector<16x128xf32>
    %c0_45 = arith.constant 0 : index
    %c0_46 = arith.constant 0 : index
    %c0_47 = arith.constant 0 : index
    %c48 = arith.constant 48 : index
    %53 = vector.load %arg2[%c0_45, %c0_46, %c0_47, %c48] : memref<1x1x16x192xbf16, #tpu.memory_space<vmem>>, vector<1x1x16x128xbf16>
    %54 = vector.shape_cast %53 : vector<1x1x16x128xbf16> to vector<16x128xbf16>
    %c7 = arith.constant 7 : index
    %c0_48 = arith.constant 0 : index
    %c0_49 = arith.constant 0 : index
    %55 = vector.load %arg5[%c7, %c0_48, %c0_49] : memref<9x16x16xbf16, #tpu.memory_space<vmem>>, vector<1x16x16xbf16>
    %56 = vector.shape_cast %55 : vector<1x16x16xbf16> to vector<16x16xbf16>
    %cst_50 = arith.constant dense<0.000000e+00> : vector<16x128xf32>
    %57 = tpu.matmul %56, %54, %cst_50 {dimension_numbers = #tpu.dot_dimension_numbers<[1], [0], [0], [1], [0, 0, 1, 1], [], []>} : vector<16x16xbf16>, vector<16x128xbf16>, vector<16x128xf32> -> vector<16x128xf32>
    %58 = arith.addf %52, %57 : vector<16x128xf32>
    %c0_51 = arith.constant 0 : index
    %c0_52 = arith.constant 0 : index
    %c0_53 = arith.constant 0 : index
    %c49 = arith.constant 49 : index
    %59 = vector.load %arg2[%c0_51, %c0_52, %c0_53, %c49] : memref<1x1x16x192xbf16, #tpu.memory_space<vmem>>, vector<1x1x16x128xbf16>
    %60 = vector.shape_cast %59 : vector<1x1x16x128xbf16> to vector<16x128xbf16>
    %61 = vector.broadcast %1 : vector<1x128xbf16> to vector<16x128xbf16>
    %62 = arith.mulf %60, %61 : vector<16x128xbf16>
    %c8 = arith.constant 8 : index
    %c0_54 = arith.constant 0 : index
    %c0_55 = arith.constant 0 : index
    %63 = vector.load %arg5[%c8, %c0_54, %c0_55] : memref<9x16x16xbf16, #tpu.memory_space<vmem>>, vector<1x16x16xbf16>
    %64 = vector.shape_cast %63 : vector<1x16x16xbf16> to vector<16x16xbf16>
    %cst_56 = arith.constant dense<0.000000e+00> : vector<16x128xf32>
    %65 = tpu.matmul %64, %62, %cst_56 {dimension_numbers = #tpu.dot_dimension_numbers<[1], [0], [0], [1], [0, 0, 1, 1], [], []>} : vector<16x16xbf16>, vector<16x128xbf16>, vector<16x128xf32> -> vector<16x128xf32>
    %66 = arith.addf %58, %65 : vector<16x128xf32>
    %c0_57 = arith.constant 0 : index
    %c0_58 = arith.constant 0 : index
    %c0_59 = arith.constant 0 : index
    %67 = vector.load %arg3[%c0_57, %c0_58, %c0_59] : memref<1x16x1xf32, #tpu.memory_space<vmem>>, vector<1x16x1xf32>
    %68 = vector.shape_cast %67 : vector<1x16x1xf32> to vector<16x1xf32>
    %69 = vector.broadcast %68 : vector<16x1xf32> to vector<16x128xf32>
    %70 = arith.mulf %66, %69 : vector<16x128xf32>
    %c0_60 = arith.constant 0 : index
    %c0_61 = arith.constant 0 : index
    %71 = vector.load %arg6[%c0_60, %c0_61] : memref<16x2xf32, #tpu.memory_space<vmem>>, vector<16x1xf32>
    %72 = vector.broadcast %71 : vector<16x1xf32> to vector<16x128xf32>
    %73 = arith.addf %70, %72 : vector<16x128xf32>
    %c0_62 = arith.constant 0 : index
    %c1_63 = arith.constant 1 : index
    %74 = vector.load %arg6[%c0_62, %c1_63] : memref<16x2xf32, #tpu.memory_space<vmem>>, vector<16x1xf32>
    %c0_64 = arith.constant 0 : index
    %c0_65 = arith.constant 0 : index
    %c0_66 = arith.constant 0 : index
    %75 = vector.load %arg4[%c0_64, %c0_65, %c0_66] : memref<1x1x128xf32, #tpu.memory_space<vmem>>, vector<1x1x128xf32>
    %76 = vector.shape_cast %75 : vector<1x1x128xf32> to vector<1x128xf32>
    %77 = vector.broadcast %74 : vector<16x1xf32> to vector<16x128xf32>
    %78 = vector.broadcast %76 : vector<1x128xf32> to vector<16x128xf32>
    %79 = arith.mulf %77, %78 : vector<16x128xf32>
    %80 = arith.addf %73, %79 : vector<16x128xf32>
    %cst_67 = arith.constant 0.000000e+00 : f32
    %81 = vector.broadcast %cst_67 : f32 to vector<16x128xf32>
    %82 = arith.cmpf oge, %80, %81 : vector<16x128xf32>
    %cst_68 = arith.constant 2.000000e-01 : f32
    %83 = vector.broadcast %cst_68 : f32 to vector<16x128xf32>
    %84 = arith.mulf %83, %80 : vector<16x128xf32>
    %85 = arith.select %82, %80, %84 : vector<16x128xi1>, vector<16x128xf32>
    %86 = arith.truncf %85 : vector<16x128xf32> to vector<16x128xbf16>
    %c0_69 = arith.constant 0 : index
    %c0_70 = arith.constant 0 : index
    %c0_71 = arith.constant 0 : index
    %87 = vector.load %arg10[%c0_69, %c0_70, %c0_71] : memref<1x16x128xbf16, #tpu.memory_space<vmem>>, vector<1x16x128xbf16>
    %88 = vector.shape_cast %87 : vector<1x16x128xbf16> to vector<16x128xbf16>
    %89 = vector.shape_cast %86 : vector<16x128xbf16> to vector<1x16x128xbf16>
    tpu.vector_store %arg10[%c0_69, %c0_70, %c0_71], %89 {strides = array<i32>} : memref<1x16x128xbf16, #tpu.memory_space<vmem>>, vector<1x16x128xbf16>,
    %c0_72 = arith.constant 0 : index
    %c0_73 = arith.constant 0 : index
    %c0_74 = arith.constant 0 : index
    %90 = vector.load %arg8[%c0_72, %c0_73, %c0_74] : memref<1x8x16xbf16, #tpu.memory_space<vmem>>, vector<1x8x16xbf16>
    %91 = vector.shape_cast %90 : vector<1x8x16xbf16> to vector<8x16xbf16>
    %92 = arith.truncf %85 : vector<16x128xf32> to vector<16x128xbf16>
    %cst_75 = arith.constant dense<0.000000e+00> : vector<8x128xf32>
    %93 = tpu.matmul %91, %92, %cst_75 {dimension_numbers = #tpu.dot_dimension_numbers<[1], [0], [0], [1], [0, 0, 1, 1], [], []>} : vector<8x16xbf16>, vector<16x128xbf16>, vector<8x128xf32> -> vector<8x128xf32>
    %c0_76 = arith.constant 0 : index
    %c0_77 = arith.constant 0 : index
    %94 = vector.load %arg9[%c0_76, %c0_77] : memref<8x1xf32, #tpu.memory_space<vmem>>, vector<8x1xf32>
    %95 = vector.broadcast %94 : vector<8x1xf32> to vector<8x128xf32>
    %96 = arith.addf %93, %95 : vector<8x128xf32>
    %cst_78 = arith.constant 0.000000e+00 : f32
    %97 = vector.broadcast %cst_78 : f32 to vector<8x128xf32>
    %98 = arith.cmpf oge, %96, %97 : vector<8x128xf32>
    %cst_79 = arith.constant 2.000000e-01 : f32
    %99 = vector.broadcast %cst_79 : f32 to vector<8x128xf32>
    %100 = arith.mulf %99, %96 : vector<8x128xf32>
    %101 = arith.select %98, %96, %100 : vector<8x128xi1>, vector<8x128xf32>
    %c0_80 = arith.constant 0 : index
    %c0_81 = arith.constant 0 : index
    %c0_82 = arith.constant 0 : index
    %102 = vector.load %arg11[%c0_80, %c0_81, %c0_82] : memref<1x8x128xf32, #tpu.memory_space<vmem>>, vector<1x8x128xf32>
    %103 = vector.shape_cast %102 : vector<1x8x128xf32> to vector<8x128xf32>
    %104 = vector.shape_cast %101 : vector<8x128xf32> to vector<1x8x128xf32>
    tpu.vector_store %arg11[%c0_80, %c0_81, %c0_82], %104 {strides = array<i32>} : memref<1x8x128xf32, #tpu.memory_space<vmem>>, vector<1x8x128xf32>,
    return
  }
  func.func @transform_0(%arg0: i32, %arg1: i32) -> (i32, i32, i32, i32) {
    %c0_i32 = arith.constant 0 : i32
    %c0_i32_0 = arith.constant 0 : i32
    %c0_i32_1 = arith.constant 0 : i32
    return %arg0, %arg1, %c0_i32, %c0_i32_0 : i32, i32, i32, i32
  }
  func.func @transform_1(%arg0: i32, %arg1: i32) -> (i32, i32, i32) {
    %c0_i32 = arith.constant 0 : i32
    %c0_i32_0 = arith.constant 0 : i32
    %c0_i32_1 = arith.constant 0 : i32
    return %arg0, %c0_i32, %c0_i32_0 : i32, i32, i32
  }
  func.func @transform_2(%arg0: i32, %arg1: i32) -> (i32, i32, i32) {
    %c0_i32 = arith.constant 0 : i32
    %c0_i32_0 = arith.constant 0 : i32
    return %arg0, %c0_i32, %arg1 : i32, i32, i32
  }
  func.func @transform_3(%arg0: i32, %arg1: i32) -> (i32, i32, i32) {
    %c0_i32 = arith.constant 0 : i32
    %c0_i32_0 = arith.constant 0 : i32
    %c0_i32_1 = arith.constant 0 : i32
    %c0_i32_2 = arith.constant 0 : i32
    return %c0_i32, %c0_i32_0, %c0_i32_1 : i32, i32, i32
  }
  func.func @transform_4(%arg0: i32, %arg1: i32) -> (i32, i32) {
    %c0_i32 = arith.constant 0 : i32
    %c0_i32_0 = arith.constant 0 : i32
    %c0_i32_1 = arith.constant 0 : i32
    return %c0_i32, %c0_i32_0 : i32, i32
  }
  func.func @transform_5(%arg0: i32, %arg1: i32) -> (i32, i32) {
    %c0_i32 = arith.constant 0 : i32
    %c0_i32_0 = arith.constant 0 : i32
    %c0_i32_1 = arith.constant 0 : i32
    return %c0_i32, %c0_i32_0 : i32, i32
  }
  func.func @transform_6(%arg0: i32, %arg1: i32) -> (i32, i32, i32) {
    %c0_i32 = arith.constant 0 : i32
    %c0_i32_0 = arith.constant 0 : i32
    %c0_i32_1 = arith.constant 0 : i32
    return %arg0, %c0_i32, %c0_i32_0 : i32, i32, i32
  }
  func.func @transform_7(%arg0: i32, %arg1: i32) -> (i32, i32) {
    %c0_i32 = arith.constant 0 : i32
    %c0_i32_0 = arith.constant 0 : i32
    %c0_i32_1 = arith.constant 0 : i32
    return %c0_i32, %c0_i32_0 : i32, i32
  }
  func.func @transform_8(%arg0: i32, %arg1: i32) -> (i32, i32, i32) {
    %c0_i32 = arith.constant 0 : i32
    %c0_i32_0 = arith.constant 0 : i32
    return %arg0, %c0_i32, %arg1 : i32, i32, i32
  }
  func.func @transform_9(%arg0: i32, %arg1: i32) -> (i32, i32, i32) {
    %c0_i32 = arith.constant 0 : i32
    %c0_i32_0 = arith.constant 0 : i32
    return %arg0, %c0_i32, %arg1 : i32, i32, i32
  }
}

</mosaic_0001>

<llo_original>
// kernel: generator_block_forward.2
$region0: #{generator_block_forward.2}
  #allocation0 [shape = 'u32[]', space=smem, size = 0x4, offset = 0x4, fixed_abs, tag = 'smem constant byte address 0x4 - core index']
  #allocation1 [shape = 'u32[144,128]{1,0:T(1,128)}', space=vmem, size = 0x12000, scoped, tag = 'internal scratch']
  %s0 = inlined_call_operand.vmem [shape: bf16[2,2,16,192], index: 0, kind: input, shape index: {}]
  %s1 = inlined_call_operand.vmem [shape: f32[2,16,1], index: 1, kind: input, shape index: {}]
  %s2 = inlined_call_operand.vmem [shape: f32[2,1,256], index: 2, kind: input, shape index: {}]
  %s3 = inlined_call_operand.vmem [shape: bf16[9,16,16], index: 3, kind: input, shape index: {}]
  %s4 = inlined_call_operand.vmem [shape: f32[16,2], index: 4, kind: input, shape index: {}]
  %s5 = inlined_call_operand.vmem [shape: bf16[2,128], index: 5, kind: input, shape index: {}]
  %s6 = inlined_call_operand.vmem [shape: bf16[2,16,256], index: 6, kind: output, shape index: {}]
  %s7 = sld [smem:[#allocation0]]
  $region94: #{generator_block_forward.2} parent=0
    _
  %s9 = ssub.s32 1, %s7
  %s10 = scalar_select 0, %s9, %s7
  $region1: #{generator_block_forward.2} parent=0
    #allocation2 [shape = 'u8[8192]{0}', space=vmem, size = 0x2000, scoped, tag = 'output window, operand 0']
    loop: start=0, step=1, limit=6
    $region2: #{generator_block_forward.2} parent=1 // loop_pre_header
      _
    $region3: #{generator_block_forward.2} parent=1 // loop_header
      %s12 = sphi 0, %s16
      %p13 = scmp.ge.s32.totalorder %s12, 6
      %s19 = sphi 0, %s31
      %s20 = sphi 0, %s27
      %s21 = sphi 0, %s19
      %s22 = sphi 0, %s20
      %s23 = sphi 0, %s21
      %s24 = sphi 0, %s22
      %s36 = sphi 0, %s38
      %s39 = sphi 0, %s36
      %s40 = sphi 0, %s39
      %s56 = sphi 0, %s40
      %s62 = sphi 0, %s64
      %s65 = sphi 0, %s62
      %s66 = sphi 0, %s65
      %s82 = sphi 0, %s66
      %s90 = sphi 0, %s92
      %s93 = sphi 0, %s90
      %s94 = sphi 0, %s93
      %s110 = sphi 0, %s94
      %s114 = sphi 0, %s114
      %s116 = sphi 0, %s114
      %s117 = sphi 0, %s116
      %s131 = sphi 0, %s117
      %s135 = sphi 0, %s135
      %s137 = sphi 0, %s135
      %s138 = sphi 0, %s137
      %s152 = sphi 0, %s138
      %s156 = sphi 0, %s156
      %s158 = sphi 0, %s156
      %s159 = sphi 0, %s158
      %s173 = sphi 0, %s159
      %s181 = sphi 0, %s183
      %s184 = sphi 0, %s181
      %s185 = sphi 0, %s184
      %s201 = sphi 0, %s185
    $region4: #{generator_block_forward.2} parent=1 // loop_header_branch
      %15 = sbr.rel (%p13) target = $region8
    $region5: #{generator_block_forward.2} parent=1 // loop_body
      %s17 = ssub.s32 %s12, 1
      %s18 = ssub.s32 %s12, 2
      %s25 = sadd.s32 1, %s20
      %p26 = scmp.ge.s32.totalorder %s25, 2
      %s27 = scalar_select %p26, 0, %s25
      %s28 = sadd.s32 1, %s19
      %s29 = scalar_select %p26, %s28, %s19
      %p30 = scmp.ge.s32.totalorder %s29, 2
      %s31 = scalar_select %p30, 0, %s29
      %s32 = ssub.s32 %s19, %s31
      %s33 = ssub.s32 %s20, %s27
      %s34 = sor.u32 %s32, %s33
      %p35 = scmp.eq.s32.totalorder %s34, 0
      %s37 = sadd.s32 %s36, 1
      %s38 = scalar_select %p35, %s36, %s37
      %p41 = pneg %p35
      %p42 = scmp.eq.s32.totalorder %s12, 3
      %p43 = por %p41, %p42
      %p44 = scmp.ne.s32.totalorder %s36, %s39
      %p45 = scmp.eq.s32.totalorder %s12, 0
      %p46 = por %p44, %p45
      %p47 = scmp.ne.s32.totalorder %s36, %s39
      %p48 = scmp.eq.s32.totalorder %s17, 3
      %p49 = por %p47, %p48
      %p50 = scmp.ne.s32.totalorder %s39, %s40
      %p51 = scmp.eq.s32.totalorder %s17, 0
      %p52 = por %p50, %p51
      %p53 = scmp.ne.s32.totalorder %s39, %s40
      %p54 = scmp.eq.s32.totalorder %s18, 3
      %p55 = por %p53, %p54
      %p57 = scmp.ne.s32.totalorder %s40, %s56
      %p58 = scmp.eq.s32.totalorder %s18, 0
      %p59 = por %p57, %p58
      %s60 = ssub.s32 %s19, %s31
      %p61 = scmp.eq.s32.totalorder %s60, 0
      %s63 = sadd.s32 %s62, 1
      %s64 = scalar_select %p61, %s62, %s63
      %p67 = pneg %p61
      %p68 = scmp.eq.s32.totalorder %s12, 3
      %p69 = por %p67, %p68
      %p70 = scmp.ne.s32.totalorder %s62, %s65
      %p71 = scmp.eq.s32.totalorder %s12, 0
      %p72 = por %p70, %p71
      %p73 = scmp.ne.s32.totalorder %s62, %s65
      %p74 = scmp.eq.s32.totalorder %s17, 3
      %p75 = por %p73, %p74
      %p76 = scmp.ne.s32.totalorder %s65, %s66
      %p77 = scmp.eq.s32.totalorder %s17, 0
      %p78 = por %p76, %p77
      %p79 = scmp.ne.s32.totalorder %s65, %s66
      %p80 = scmp.eq.s32.totalorder %s18, 3
      %p81 = por %p79, %p80
      %p83 = scmp.ne.s32.totalorder %s66, %s82
      %p84 = scmp.eq.s32.totalorder %s18, 0
      %p85 = por %p83, %p84
      %s86 = ssub.s32 %s19, %s31
      %s87 = ssub.s32 %s20, %s27
      %s88 = sor.u32 %s86, %s87
      %p89 = scmp.eq.s32.totalorder %s88, 0
      %s91 = sadd.s32 %s90, 1
      %s92 = scalar_select %p89, %s90, %s91
      %p95 = pneg %p89
      %p96 = scmp.eq.s32.totalorder %s12, 3
      %p97 = por %p95, %p96
      %p98 = scmp.ne.s32.totalorder %s90, %s93
      %p99 = scmp.eq.s32.totalorder %s12, 0
      %p100 = por %p98, %p99
      %p101 = scmp.ne.s32.totalorder %s90, %s93
      %p102 = scmp.eq.s32.totalorder %s17, 3
      %p103 = por %p101, %p102
      %p104 = scmp.ne.s32.totalorder %s93, %s94
      %p105 = scmp.eq.s32.totalorder %s17, 0
      %p106 = por %p104, %p105
      %p107 = scmp.ne.s32.totalorder %s93, %s94
      %p108 = scmp.eq.s32.totalorder %s18, 3
      %p109 = por %p107, %p108
      %p111 = scmp.ne.s32.totalorder %s94, %s110
      %p112 = scmp.eq.s32.totalorder %s18, 0
      %p113 = por %p111, %p112
      %s115 = sadd.s32 %s114, 1
      %p118 = scmp.eq.s32.totalorder %s12, 3
      %p119 = scmp.ne.s32.totalorder %s114, %s116
      %p120 = scmp.eq.s32.totalorder %s12, 0
      %p121 = por %p119, %p120
      %p122 = scmp.ne.s32.totalorder %s114, %s116
      %p123 = scmp.eq.s32.totalorder %s17, 3
      %p124 = por %p122, %p123
      %p125 = scmp.ne.s32.totalorder %s116, %s117
      %p126 = scmp.eq.s32.totalorder %s17, 0
      %p127 = por %p125, %p126
      %p128 = scmp.ne.s32.totalorder %s116, %s117
      %p129 = scmp.eq.s32.totalorder %s18, 3
      %p130 = por %p128, %p129
      %p132 = scmp.ne.s32.totalorder %s117, %s131
      %p133 = scmp.eq.s32.totalorder %s18, 0
      %p134 = por %p132, %p133
      %s136 = sadd.s32 %s135, 1
      %p139 = scmp.eq.s32.totalorder %s12, 3
      %p140 = scmp.ne.s32.totalorder %s135, %s137
      %p141 = scmp.eq.s32.totalorder %s12, 0
      %p142 = por %p140, %p141
      %p143 = scmp.ne.s32.totalorder %s135, %s137
      %p144 = scmp.eq.s32.totalorder %s17, 3
      %p145 = por %p143, %p144
      %p146 = scmp.ne.s32.totalorder %s137, %s138
      %p147 = scmp.eq.s32.totalorder %s17, 0
      %p148 = por %p146, %p147
      %p149 = scmp.ne.s32.totalorder %s137, %s138
      %p150 = scmp.eq.s32.totalorder %s18, 3
      %p151 = por %p149, %p150
      %p153 = scmp.ne.s32.totalorder %s138, %s152
      %p154 = scmp.eq.s32.totalorder %s18, 0
      %p155 = por %p153, %p154
      %s157 = sadd.s32 %s156, 1
      %p160 = scmp.eq.s32.totalorder %s12, 3
      %p161 = scmp.ne.s32.totalorder %s156, %s158
      %p162 = scmp.eq.s32.totalorder %s12, 0
      %p163 = por %p161, %p162
      %p164 = scmp.ne.s32.totalorder %s156, %s158
      %p165 = scmp.eq.s32.totalorder %s17, 3
      %p166 = por %p164, %p165
      %p167 = scmp.ne.s32.totalorder %s158, %s159
      %p168 = scmp.eq.s32.totalorder %s17, 0
      %p169 = por %p167, %p168
      %p170 = scmp.ne.s32.totalorder %s158, %s159
      %p171 = scmp.eq.s32.totalorder %s18, 3
      %p172 = por %p170, %p171
      %p174 = scmp.ne.s32.totalorder %s159, %s173
      %p175 = scmp.eq.s32.totalorder %s18, 0
      %p176 = por %p174, %p175
      %s177 = ssub.s32 %s19, %s31
      %s178 = ssub.s32 %s20, %s27
      %s179 = sor.u32 %s177, %s178
      %p180 = scmp.eq.s32.totalorder %s179, 0
      %s182 = sadd.s32 %s181, 1
      %s183 = scalar_select %p180, %s181, %s182
      %p186 = pneg %p180
      %p187 = scmp.eq.s32.totalorder %s12, 3
      %p188 = por %p186, %p187
      %p189 = scmp.ne.s32.totalorder %s181, %s184
      %p190 = scmp.eq.s32.totalorder %s12, 0
      %p191 = por %p189, %p190
      %p192 = scmp.ne.s32.totalorder %s181, %s184
      %p193 = scmp.eq.s32.totalorder %s17, 3
      %p194 = por %p192, %p193
      %p195 = scmp.ne.s32.totalorder %s184, %s185
      %p196 = scmp.eq.s32.totalorder %s17, 0
      %p197 = por %p195, %p196
      %p198 = scmp.ne.s32.totalorder %s184, %s185
      %p199 = scmp.eq.s32.totalorder %s18, 3
      %p200 = por %p198, %p199
      %p202 = scmp.ne.s32.totalorder %s185, %s201
      %p203 = scmp.eq.s32.totalorder %s18, 0
      %p204 = por %p202, %p203
      %p205 = scmp.le.s32.totalorder 1, %s12
      %p206 = scmp.lt.s32.totalorder %s12, 5
      %p207 = pnand %p205, %p206
      %p208 = pneg %p207
      // Predicated region
      $region9: #{generator_block_forward.2} parent=5 // pred_check
        _
      $region10: #{generator_block_forward.2} parent=5 // pred_check_branch
        %210 = sbr.rel (%p207) target = $region12
      $region11: #{generator_block_forward.2} parent=5 // pred_region
        %s211 = ssub.s32 %s12, 1
        // Predicated region
        $region13: #{generator_block_forward.2} parent=11 // pred_check
          %p212 = pneg %p127
        $region14: #{generator_block_forward.2} parent=11 // pred_check_branch
          %214 = sbr.rel (%p212) target = $region16
        $region15: #{generator_block_forward.2} parent=11 // pred_region
          _
        $region16: #{generator_block_forward.2} parent=11 // pred_fallthru
          _
        // Predicated region
        $region17: #{generator_block_forward.2} parent=11 // pred_check
          %p215 = pneg %p148
        $region18: #{generator_block_forward.2} parent=11 // pred_check_branch
          %217 = sbr.rel (%p215) target = $region20
        $region19: #{generator_block_forward.2} parent=11 // pred_region
          _
        $region20: #{generator_block_forward.2} parent=11 // pred_fallthru
          _
        // Predicated region
        $region21: #{generator_block_forward.2} parent=11 // pred_check
          %p218 = pneg %p169
        $region22: #{generator_block_forward.2} parent=11 // pred_check_branch
          %220 = sbr.rel (%p218) target = $region24
        $region23: #{generator_block_forward.2} parent=11 // pred_region
          _
        $region24: #{generator_block_forward.2} parent=11 // pred_fallthru
          _
      $region12: #{generator_block_forward.2} parent=5 // pred_fallthru
        _
      %p221 = scmp.lt.s32.totalorder %s12, 4
      // Predicated region
      $region25: #{generator_block_forward.2} parent=5 // pred_check
        %p222 = pneg %p221
      $region26: #{generator_block_forward.2} parent=5 // pred_check_branch
        %224 = sbr.rel (%p222) target = $region28
      $region27: #{generator_block_forward.2} parent=5 // pred_region
        // Predicated region
        $region29: #{generator_block_forward.2} parent=27 // pred_check
          %p225 = pneg %p46
        $region30: #{generator_block_forward.2} parent=27 // pred_check_branch
          %227 = sbr.rel (%p225) target = $region32
        $region31: #{generator_block_forward.2} parent=27 // pred_region
          %p228 = scmp.lt.s32.totalorder %s19, 1
          %s229 = scalar_select %p228, %s19, 1
          %p230 = scmp.lt.s32.totalorder %s20, 1
          %s231 = scalar_select %p230, %s20, 1
          %s232 = smul.addr %s231, 4
          %s233 = smul.addr %s229, 8
          %s234 = sadd.s32 %s232, %s233
          %s235 = smul.addr %s234, 4
          %s236 = scalar_lea.vmem %s0, %s235
        $region32: #{generator_block_forward.2} parent=27 // pred_fallthru
          _
        // Predicated region
        $region33: #{generator_block_forward.2} parent=27 // pred_check
          %p237 = pneg %p72
        $region34: #{generator_block_forward.2} parent=27 // pred_check_branch
          %239 = sbr.rel (%p237) target = $region36
        $region35: #{generator_block_forward.2} parent=27 // pred_region
          %p240 = scmp.lt.s32.totalorder %s19, 1
          %s241 = scalar_select %p240, %s19, 1
          %s242 = smul.addr %s241, 2
          %s243 = smul.addr %s242, 8
          %s244 = scalar_lea.vmem %s1, %s243
        $region36: #{generator_block_forward.2} parent=27 // pred_fallthru
          _
        // Predicated region
        $region37: #{generator_block_forward.2} parent=27 // pred_check
          %p245 = pneg %p100
        $region38: #{generator_block_forward.2} parent=27 // pred_check_branch
          %247 = sbr.rel (%p245) target = $region40
        $region39: #{generator_block_forward.2} parent=27 // pred_region
          %p248 = scmp.lt.s32.totalorder %s19, 1
          %s249 = scalar_select %p248, %s19, 1
          %p250 = scmp.lt.s32.totalorder %s20, 1
          %s251 = scalar_select %p250, %s20, 1
          %s252 = smul.addr %s249, 2
          %s253 = sadd.s32 %s251, %s252
          %s254 = scalar_lea.vmem %s2, %s253
        $region40: #{generator_block_forward.2} parent=27 // pred_fallthru
          _
      $region28: #{generator_block_forward.2} parent=5 // pred_fallthru
        _
      %p255 = scmp.le.s32.totalorder 1, %s12
      %p256 = scmp.lt.s32.totalorder %s12, 5
      %p257 = pnand %p255, %p256
      %p258 = pneg %p257
      // Predicated region
      $region41: #{generator_block_forward.2} parent=5 // pred_check
        _
      $region42: #{generator_block_forward.2} parent=5 // pred_check_branch
        %260 = sbr.rel (%p257) target = $region44
      $region43: #{generator_block_forward.2} parent=5 // pred_region
        %s261 = ssub.s32 %s12, 1
        %p262 = scmp.lt.s32.totalorder %s21, 1
        %s263 = scalar_select %p262, %s21, 1
        %p264 = scmp.lt.s32.totalorder %s22, 1
        %s265 = scalar_select %p264, %s22, 1
        %s266 = smul.addr %s265, 4
        %s267 = smul.addr %s263, 8
        %s268 = sadd.s32 %s266, %s267
        %s269 = smul.addr %s268, 4
        %s270 = scalar_lea.vmem %s0, %s269
        %p271 = pneg %p52
        %p272 = pneg %p49
        %p273 = scmp.lt.s32.totalorder %s21, 1
        %s274 = scalar_select %p273, %s21, 1
        %s275 = smul.addr %s274, 2
        %s276 = smul.addr %s275, 8
        %s277 = scalar_lea.vmem %s1, %s276
        %p278 = pneg %p78
        %p279 = pneg %p75
        %p280 = scmp.lt.s32.totalorder %s21, 1
        %s281 = scalar_select %p280, %s21, 1
        %p282 = scmp.lt.s32.totalorder %s22, 1
        %s283 = scalar_select %p282, %s22, 1
        %s284 = smul.addr %s281, 2
        %s285 = sadd.s32 %s283, %s284
        %s286 = scalar_lea.vmem %s2, %s285
        %p287 = pneg %p106
        %p288 = pneg %p103
        %p289 = pneg %p127
        %p290 = pneg %p124
        %p291 = pneg %p148
        %p292 = pneg %p145
        %p293 = pneg %p169
        %p294 = pneg %p166
        %p295 = pneg %p197
        %p296 = pneg %p194
        %s297 = sand.u32 %s184, 1
        %s298 = sand.u32 %s184, 1
        %s299 = smul.addr %s298, 8
        %s300 = scalar_lea.vmem [#allocation2], %s299
        %p301 = scmp.lt.s32.totalorder %s21, 1
        %s302 = scalar_select %p301, %s21, 1
        %p303 = scmp.lt.s32.totalorder %s22, 1
        %s304 = scalar_select %p303, %s22, 1
        %s305 = smul.addr %s304, 4
        %s306 = smul.addr %s302, 8
        %s307 = sadd.s32 %s305, %s306
        %s308 = smul.addr %s307, 4
        %s309 = scalar_lea.vmem %s0, %s308
        %p310 = scmp.lt.s32.totalorder %s21, 1
        %s311 = scalar_select %p310, %s21, 1
        %s312 = smul.addr %s311, 2
        %s313 = smul.addr %s312, 8
        %s314 = scalar_lea.vmem %s1, %s313
        %p315 = scmp.lt.s32.totalorder %s21, 1
        %s316 = scalar_select %p315, %s21, 1
        %p317 = scmp.lt.s32.totalorder %s22, 1
        %s318 = scalar_select %p317, %s22, 1
        %s319 = smul.addr %s316, 2
        %s320 = sadd.s32 %s318, %s319
        %s321 = scalar_lea.vmem %s2, %s320
        %v323 = vld [vmem:[%s5] sm:$0x1]
        %v324 = vld [vmem:[%s309] sm:$0xff]
        %v325 = vld [vmem:[%s309 + $0x8] sm:$0xff]
        %v327 = vpack.i.b16 %v323, %v323
        %v329 = vlaneseq
        %v330 = vshrl.u32 %v329, 7
        %v331 = vsub.s32 0, %v330
        %v332 = vrot.slane %v327, %v331
        %v334 = vunpack.c.l.b16 %v332
        %v335 = vpack.c.b16 %v334, %v334
        %336 = vrot.lane.b32.xlu0 %v335, 15
        %v337 = vpop.permute.xlu0 %336
        %v338 = vrot.slane %v337, 4
        %vm339 = vcmask 121856
        %v340 = vsel %vm339, %v338, %v337
        %v342 = vmul.bf16 %v324, %v340
        %v343 = vmul.bf16 %v325, %v340
        %v344 = vld [vmem:[%s3] sm:$0xf]
        %v345 = vld [vmem:[%s3 + $0x4] sm:$0xf]
        %s346 = scalar_lea.vmem %s3, 8
        %v347 = vld [vmem:[%s346] sm:$0xf]
        %v348 = vld [vmem:[%s346 + $0x4] sm:$0xf]
        %v351 = vunpack.c.l.b16 %v347
        %v352 = vunpack.c.l.b16 %v348
        %v353 = vpack.c.b16 %v352, %v351
        %v356 = vunpack.c.l.b16 %v324
        %v357 = vunpack.c.h.b16 %v324
        %v358 = vunpack.c.l.b16 %v325
        %v359 = vunpack.c.h.b16 %v325
        %v360 = vpack.c.b16 %v358, %v356
        %v361 = vpack.c.b16 %v359, %v357
        %362 = vrot.lane.b32.xlu0 %v360, 112
        %v363 = vpop.permute.xlu0 %362
        %364 = vrot.lane.b32.xlu0 %v361, 112
        %v365 = vpop.permute.xlu0 %364
        %vm366 = vcmask 916480
        %v367 = vsel %vm366, %v363, %v365
        %vm369 = vcmask 130048
        %v371 = vsel %vm369, %v353, 0
        %373 = vmatprep.subr.bf16.mxu0 0
        %374 = vmatpush1.bf16.msra.mxu0 %v367
        %375 = vmatprep.subr.bf16.mxu0 0
        %376 = vmatpush1.bf16.msra.mxu0 0
        %377 = vmatprep.subr.bf16.mxu0 0
        %378 = vmatpush1.bf16.msra.mxu0 0
        %379 = vmatprep.subr.bf16.mxu0 0
        %380 = vmatpush1.bf16.msra.mxu0 0
        %381 = vmatprep.subr.bf16.mxu0 0
        %382 = vmatpush1.bf16.msra.mxu0 0
        %383 = vmatprep.subr.bf16.mxu0 0
        %384 = vmatpush1.bf16.msra.mxu0 0
        %385 = vmatprep.subr.bf16.mxu0 0
        %386 = vmatpush1.bf16.msra.mxu0 0
        %387 = vmatprep.subr.bf16.mxu0 0
        %388 = vmatpush1.bf16.msra.mxu0 0
        %389 = vmatprep.subr.bf16.mxu0 0
        %390 = vmatpush1.bf16.msra.mxu0 0
        %391 = vmatprep.subr.bf16.mxu0 0
        %392 = vmatpush1.bf16.msra.mxu0 0
        %393 = vmatprep.subr.bf16.mxu0 0
        %394 = vmatpush1.bf16.msra.mxu0 0
        %395 = vmatprep.subr.bf16.mxu0 0
        %396 = vmatpush1.bf16.msra.mxu0 0
        %397 = vmatprep.subr.bf16.mxu0 0
        %398 = vmatpush1.bf16.msra.mxu0 0
        %399 = vmatprep.subr.bf16.mxu0 0
        %400 = vmatpush1.bf16.msra.mxu0 0
        %401 = vmatprep.subr.bf16.mxu0 0
        %402 = vmatpush1.bf16.msra.mxu0 0
        %403 = vmatprep.subr.bf16.mxu0 0
        %404 = vmatpush1.bf16.msra.mxu0 0
        %405 = vmatprep.mubr.bf16.mxu0 0
        %406 = vmatmul.mubr.bf16.gmra.mrb[0].mxu0 %v371
        %v407 = vpop.f32.mrb[0].mxu0
        %v408 = vadd.f32 0.0, %v407
        %v409 = vpop.f32.mrb[0].mxu0
        %v410 = vpop.f32.mrb[0].mxu0
        %v411 = vadd.f32 0.0, %v410
        %v412 = vpop.f32.mrb[0].mxu0
        %413 = vdwg.mxu0
        %v416 = vunpack.c.l.b16 %v344
        %v417 = vunpack.c.l.b16 %v345
        %v418 = vpack.c.b16 %v417, %v416
        %v421 = vunpack.c.l.b16 %v342
        %v422 = vunpack.c.h.b16 %v342
        %v423 = vunpack.c.l.b16 %v343
        %v424 = vunpack.c.h.b16 %v343
        %v425 = vpack.c.b16 %v423, %v421
        %v426 = vpack.c.b16 %v424, %v422
        %427 = vrot.lane.b32.xlu0 %v425, 113
        %v428 = vpop.permute.xlu0 %427
        %429 = vrot.lane.b32.xlu0 %v426, 113
        %v430 = vpop.permute.xlu0 %429
        %vm431 = vcmask 924672
        %v432 = vsel %vm431, %v428, %v430
        %v435 = vsel %vm369, %v418, 0
        %437 = vmatprep.subr.bf16.mxu0 0
        %438 = vmatpush1.bf16.msra.mxu0 %v432
        %439 = vmatprep.subr.bf16.mxu0 0
        %440 = vmatpush1.bf16.msra.mxu0 0
        %441 = vmatprep.subr.bf16.mxu0 0
        %442 = vmatpush1.bf16.msra.mxu0 0
        %443 = vmatprep.subr.bf16.mxu0 0
        %444 = vmatpush1.bf16.msra.mxu0 0
        %445 = vmatprep.subr.bf16.mxu0 0
        %446 = vmatpush1.bf16.msra.mxu0 0
        %447 = vmatprep.subr.bf16.mxu0 0
        %448 = vmatpush1.bf16.msra.mxu0 0
        %449 = vmatprep.subr.bf16.mxu0 0
        %450 = vmatpush1.bf16.msra.mxu0 0
        %451 = vmatprep.subr.bf16.mxu0 0
        %452 = vmatpush1.bf16.msra.mxu0 0
        %453 = vmatprep.subr.bf16.mxu0 0
        %454 = vmatpush1.bf16.msra.mxu0 0
        %455 = vmatprep.subr.bf16.mxu0 0
        %456 = vmatpush1.bf16.msra.mxu0 0
        %457 = vmatprep.subr.bf16.mxu0 0
        %458 = vmatpush1.bf16.msra.mxu0 0
        %459 = vmatprep.subr.bf16.mxu0 0
        %460 = vmatpush1.bf16.msra.mxu0 0
        %461 = vmatprep.subr.bf16.mxu0 0
        %462 = vmatpush1.bf16.msra.mxu0 0
        %463 = vmatprep.subr.bf16.mxu0 0
        %464 = vmatpush1.bf16.msra.mxu0 0
        %465 = vmatprep.subr.bf16.mxu0 0
        %466 = vmatpush1.bf16.msra.mxu0 0
        %467 = vmatprep.subr.bf16.mxu0 0
        %468 = vmatpush1.bf16.msra.mxu0 0
        %469 = vmatprep.mubr.bf16.mxu0 0
        %470 = vmatmul.mubr.bf16.gmra.mrb[0].mxu0 %v435
        %v471 = vpop.f32.mrb[0].mxu0
        %v472 = vadd.f32 %v408, %v471
        %v473 = vpop.f32.mrb[0].mxu0
        %v474 = vpop.f32.mrb[0].mxu0
        %v475 = vadd.f32 %v411, %v474
        %v476 = vpop.f32.mrb[0].mxu0
        %477 = vdwg.mxu0
        %v478 = vshrl.u32 %v323, 16
        %v479 = vpack.i.b16 %v478, %v478
        %v481 = vlaneseq
        %v482 = vshrl.u32 %v481, 7
        %v483 = vsub.s32 0, %v482
        %v484 = vrot.slane %v479, %v483
        %v486 = vunpack.c.l.b16 %v484
        %v487 = vpack.c.b16 %v486, %v486
        %488 = vrot.lane.b32.xlu0 %v487, 17
        %v489 = vpop.permute.xlu0 %488
        %v490 = vrot.slane %v489, 4
        %vm491 = vcmask 138240
        %v492 = vsel %vm491, %v490, %v489
        %v494 = vmul.bf16 %v324, %v492
        %v495 = vmul.bf16 %v325, %v492
        %s496 = scalar_lea.vmem %s3, 16
        %v497 = vld [vmem:[%s496] sm:$0xf]
        %v498 = vld [vmem:[%s496 + $0x4] sm:$0xf]
        %v501 = vunpack.c.l.b16 %v497
        %v502 = vunpack.c.l.b16 %v498
        %v503 = vpack.c.b16 %v502, %v501
        %v506 = vunpack.c.l.b16 %v494
        %v507 = vunpack.c.h.b16 %v494
        %v508 = vunpack.c.l.b16 %v495
        %v509 = vunpack.c.h.b16 %v495
        %v510 = vpack.c.b16 %v508, %v506
        %v511 = vpack.c.b16 %v509, %v507
        %512 = vrot.lane.b32.xlu0 %v510, 111
        %v513 = vpop.permute.xlu0 %512
        %514 = vrot.lane.b32.xlu0 %v511, 111
        %v515 = vpop.permute.xlu0 %514
        %vm516 = vcmask 908288
        %v517 = vsel %vm516, %v513, %v515
        %v520 = vsel %vm369, %v503, 0
        %522 = vmatprep.subr.bf16.mxu0 0
        %523 = vmatpush1.bf16.msra.mxu0 %v517
        %524 = vmatprep.subr.bf16.mxu0 0
        %525 = vmatpush1.bf16.msra.mxu0 0
        %526 = vmatprep.subr.bf16.mxu0 0
        %527 = vmatpush1.bf16.msra.mxu0 0
        %528 = vmatprep.subr.bf16.mxu0 0
        %529 = vmatpush1.bf16.msra.mxu0 0
        %530 = vmatprep.subr.bf16.mxu0 0
        %531 = vmatpush1.bf16.msra.mxu0 0
        %532 = vmatprep.subr.bf16.mxu0 0
        %533 = vmatpush1.bf16.msra.mxu0 0
        %534 = vmatprep.subr.bf16.mxu0 0
        %535 = vmatpush1.bf16.msra.mxu0 0
        %536 = vmatprep.subr.bf16.mxu0 0
        %537 = vmatpush1.bf16.msra.mxu0 0
        %538 = vmatprep.subr.bf16.mxu0 0
        %539 = vmatpush1.bf16.msra.mxu0 0
        %540 = vmatprep.subr.bf16.mxu0 0
        %541 = vmatpush1.bf16.msra.mxu0 0
        %542 = vmatprep.subr.bf16.mxu0 0
        %543 = vmatpush1.bf16.msra.mxu0 0
        %544 = vmatprep.subr.bf16.mxu0 0
        %545 = vmatpush1.bf16.msra.mxu0 0
        %546 = vmatprep.subr.bf16.mxu0 0
        %547 = vmatpush1.bf16.msra.mxu0 0
        %548 = vmatprep.subr.bf16.mxu0 0
        %549 = vmatpush1.bf16.msra.mxu0 0
        %550 = vmatprep.subr.bf16.mxu0 0
        %551 = vmatpush1.bf16.msra.mxu0 0
        %552 = vmatprep.subr.bf16.mxu0 0
        %553 = vmatpush1.bf16.msra.mxu0 0
        %554 = vmatprep.mubr.bf16.mxu0 0
        %555 = vmatmul.mubr.bf16.gmra.mrb[0].mxu0 %v520
        %v556 = vpop.f32.mrb[0].mxu0
        %v557 = vadd.f32 0.0, %v556
        %v558 = vpop.f32.mrb[0].mxu0
        %v559 = vpop.f32.mrb[0].mxu0
        %v560 = vadd.f32 0.0, %v559
        %v561 = vpop.f32.mrb[0].mxu0
        %562 = vdwg.mxu0
        %v563 = vadd.f32 %v472, %v557
        %v564 = vadd.f32 %v475, %v560
        %565 = vrot.lane.b32.xlu0 %v335, 31
        %v566 = vpop.permute.xlu0 %565
        %v567 = vrot.slane %v566, 4
        %vm568 = vcmask 252928
        %v569 = vsel %vm568, %v567, %v566
        %v571 = vmul.bf16 %v324, %v569
        %v572 = vmul.bf16 %v325, %v569
        %s573 = scalar_lea.vmem %s3, 24
        %v574 = vld [vmem:[%s573] sm:$0xf]
        %v575 = vld [vmem:[%s573 + $0x4] sm:$0xf]
        %v578 = vunpack.c.l.b16 %v574
        %v579 = vunpack.c.l.b16 %v575
        %v580 = vpack.c.b16 %v579, %v578
        %v583 = vunpack.c.l.b16 %v571
        %v584 = vunpack.c.h.b16 %v571
        %v585 = vunpack.c.l.b16 %v572
        %v586 = vunpack.c.h.b16 %v572
        %v587 = vpack.c.b16 %v585, %v583
        %v588 = vpack.c.b16 %v586, %v584
        %589 = vrot.lane.b32.xlu0 %v587, 97
        %v590 = vpop.permute.xlu0 %589
        %591 = vrot.lane.b32.xlu0 %v588, 97
        %v592 = vpop.permute.xlu0 %591
        %vm593 = vcmask 793600
        %v594 = vsel %vm593, %v590, %v592
        %v597 = vsel %vm369, %v580, 0
        %599 = vmatprep.subr.bf16.mxu0 0
        %600 = vmatpush1.bf16.msra.mxu0 %v594
        %601 = vmatprep.subr.bf16.mxu0 0
        %602 = vmatpush1.bf16.msra.mxu0 0
        %603 = vmatprep.subr.bf16.mxu0 0
        %604 = vmatpush1.bf16.msra.mxu0 0
        %605 = vmatprep.subr.bf16.mxu0 0
        %606 = vmatpush1.bf16.msra.mxu0 0
        %607 = vmatprep.subr.bf16.mxu0 0
        %608 = vmatpush1.bf16.msra.mxu0 0
        %609 = vmatprep.subr.bf16.mxu0 0
        %610 = vmatpush1.bf16.msra.mxu0 0
        %611 = vmatprep.subr.bf16.mxu0 0
        %612 = vmatpush1.bf16.msra.mxu0 0
        %613 = vmatprep.subr.bf16.mxu0 0
        %614 = vmatpush1.bf16.msra.mxu0 0
        %615 = vmatprep.subr.bf16.mxu0 0
        %616 = vmatpush1.bf16.msra.mxu0 0
        %617 = vmatprep.subr.bf16.mxu0 0
        %618 = vmatpush1.bf16.msra.mxu0 0
        %619 = vmatprep.subr.bf16.mxu0 0
        %620 = vmatpush1.bf16.msra.mxu0 0
        %621 = vmatprep.subr.bf16.mxu0 0
        %622 = vmatpush1.bf16.msra.mxu0 0
        %623 = vmatprep.subr.bf16.mxu0 0
        %624 = vmatpush1.bf16.msra.mxu0 0
        %625 = vmatprep.subr.bf16.mxu0 0
        %626 = vmatpush1.bf16.msra.mxu0 0
        %627 = vmatprep.subr.bf16.mxu0 0
        %628 = vmatpush1.bf16.msra.mxu0 0
        %629 = vmatprep.subr.bf16.mxu0 0
        %630 = vmatpush1.bf16.msra.mxu0 0
        %631 = vmatprep.mubr.bf16.mxu0 0
        %632 = vmatmul.mubr.bf16.gmra.mrb[0].mxu0 %v597
        %v633 = vpop.f32.mrb[0].mxu0
        %v634 = vadd.f32 0.0, %v633
        %v635 = vpop.f32.mrb[0].mxu0
        %v636 = vpop.f32.mrb[0].mxu0
        %v637 = vadd.f32 0.0, %v636
        %v638 = vpop.f32.mrb[0].mxu0
        %639 = vdwg.mxu0
        %v640 = vadd.f32 %v563, %v634
        %v641 = vadd.f32 %v564, %v637
        %s642 = scalar_lea.vmem %s3, 32
        %v643 = vld [vmem:[%s642] sm:$0xf]
        %v644 = vld [vmem:[%s642 + $0x4] sm:$0xf]
        %v647 = vunpack.c.l.b16 %v643
        %v648 = vunpack.c.l.b16 %v644
        %v649 = vpack.c.b16 %v648, %v647
        %650 = vrot.lane.b32.xlu0 %v360, 96
        %v651 = vpop.permute.xlu0 %650
        %652 = vrot.lane.b32.xlu0 %v361, 96
        %v653 = vpop.permute.xlu0 %652
        %vm654 = vcmask 785408
        %v655 = vsel %vm654, %v651, %v653
        %v658 = vsel %vm369, %v649, 0
        %660 = vmatprep.subr.bf16.mxu0 0
        %661 = vmatpush1.bf16.msra.mxu0 %v655
        %662 = vmatprep.subr.bf16.mxu0 0
        %663 = vmatpush1.bf16.msra.mxu0 0
        %664 = vmatprep.subr.bf16.mxu0 0
        %665 = vmatpush1.bf16.msra.mxu0 0
        %666 = vmatprep.subr.bf16.mxu0 0
        %667 = vmatpush1.bf16.msra.mxu0 0
        %668 = vmatprep.subr.bf16.mxu0 0
        %669 = vmatpush1.bf16.msra.mxu0 0
        %670 = vmatprep.subr.bf16.mxu0 0
        %671 = vmatpush1.bf16.msra.mxu0 0
        %672 = vmatprep.subr.bf16.mxu0 0
        %673 = vmatpush1.bf16.msra.mxu0 0
        %674 = vmatprep.subr.bf16.mxu0 0
        %675 = vmatpush1.bf16.msra.mxu0 0
        %676 = vmatprep.subr.bf16.mxu0 0
        %677 = vmatpush1.bf16.msra.mxu0 0
        %678 = vmatprep.subr.bf16.mxu0 0
        %679 = vmatpush1.bf16.msra.mxu0 0
        %680 = vmatprep.subr.bf16.mxu0 0
        %681 = vmatpush1.bf16.msra.mxu0 0
        %682 = vmatprep.subr.bf16.mxu0 0
        %683 = vmatpush1.bf16.msra.mxu0 0
        %684 = vmatprep.subr.bf16.mxu0 0
        %685 = vmatpush1.bf16.msra.mxu0 0
        %686 = vmatprep.subr.bf16.mxu0 0
        %687 = vmatpush1.bf16.msra.mxu0 0
        %688 = vmatprep.subr.bf16.mxu0 0
        %689 = vmatpush1.bf16.msra.mxu0 0
        %690 = vmatprep.subr.bf16.mxu0 0
        %691 = vmatpush1.bf16.msra.mxu0 0
        %692 = vmatprep.mubr.bf16.mxu0 0
        %693 = vmatmul.mubr.bf16.gmra.mrb[0].mxu0 %v658
        %v694 = vpop.f32.mrb[0].mxu0
        %v695 = vadd.f32 0.0, %v694
        %v696 = vpop.f32.mrb[0].mxu0
        %v697 = vpop.f32.mrb[0].mxu0
        %v698 = vadd.f32 0.0, %v697
        %v699 = vpop.f32.mrb[0].mxu0
        %700 = vdwg.mxu0
        %v701 = vadd.f32 %v640, %v695
        %v702 = vadd.f32 %v641, %v698
        %703 = vrot.lane.b32.xlu0 %v487, 33
        %v704 = vpop.permute.xlu0 %703
        %v705 = vrot.slane %v704, 4
        %vm706 = vcmask 269312
        %v707 = vsel %vm706, %v705, %v704
        %v709 = vmul.bf16 %v324, %v707
        %v710 = vmul.bf16 %v325, %v707
        %s711 = scalar_lea.vmem %s3, 40
        %v712 = vld [vmem:[%s711] sm:$0xf]
        %v713 = vld [vmem:[%s711 + $0x4] sm:$0xf]
        %v716 = vunpack.c.l.b16 %v712
        %v717 = vunpack.c.l.b16 %v713
        %v718 = vpack.c.b16 %v717, %v716
        %v721 = vunpack.c.l.b16 %v709
        %v722 = vunpack.c.h.b16 %v709
        %v723 = vunpack.c.l.b16 %v710
        %v724 = vunpack.c.h.b16 %v710
        %v725 = vpack.c.b16 %v723, %v721
        %v726 = vpack.c.b16 %v724, %v722
        %727 = vrot.lane.b32.xlu0 %v725, 95
        %v728 = vpop.permute.xlu0 %727
        %729 = vrot.lane.b32.xlu0 %v726, 95
        %v730 = vpop.permute.xlu0 %729
        %vm731 = vcmask 777216
        %v732 = vsel %vm731, %v728, %v730
        %v735 = vsel %vm369, %v718, 0
        %737 = vmatprep.subr.bf16.mxu0 0
        %738 = vmatpush1.bf16.msra.mxu0 %v732
        %739 = vmatprep.subr.bf16.mxu0 0
        %740 = vmatpush1.bf16.msra.mxu0 0
        %741 = vmatprep.subr.bf16.mxu0 0
        %742 = vmatpush1.bf16.msra.mxu0 0
        %743 = vmatprep.subr.bf16.mxu0 0
        %744 = vmatpush1.bf16.msra.mxu0 0
        %745 = vmatprep.subr.bf16.mxu0 0
        %746 = vmatpush1.bf16.msra.mxu0 0
        %747 = vmatprep.subr.bf16.mxu0 0
        %748 = vmatpush1.bf16.msra.mxu0 0
        %749 = vmatprep.subr.bf16.mxu0 0
        %750 = vmatpush1.bf16.msra.mxu0 0
        %751 = vmatprep.subr.bf16.mxu0 0
        %752 = vmatpush1.bf16.msra.mxu0 0
        %753 = vmatprep.subr.bf16.mxu0 0
        %754 = vmatpush1.bf16.msra.mxu0 0
        %755 = vmatprep.subr.bf16.mxu0 0
        %756 = vmatpush1.bf16.msra.mxu0 0
        %757 = vmatprep.subr.bf16.mxu0 0
        %758 = vmatpush1.bf16.msra.mxu0 0
        %759 = vmatprep.subr.bf16.mxu0 0
        %760 = vmatpush1.bf16.msra.mxu0 0
        %761 = vmatprep.subr.bf16.mxu0 0
        %762 = vmatpush1.bf16.msra.mxu0 0
        %763 = vmatprep.subr.bf16.mxu0 0
        %764 = vmatpush1.bf16.msra.mxu0 0
        %765 = vmatprep.subr.bf16.mxu0 0
        %766 = vmatpush1.bf16.msra.mxu0 0
        %767 = vmatprep.subr.bf16.mxu0 0
        %768 = vmatpush1.bf16.msra.mxu0 0
        %769 = vmatprep.mubr.bf16.mxu0 0
        %770 = vmatmul.mubr.bf16.gmra.mrb[0].mxu0 %v735
        %v771 = vpop.f32.mrb[0].mxu0
        %v772 = vadd.f32 0.0, %v771
        %v773 = vpop.f32.mrb[0].mxu0
        %v774 = vpop.f32.mrb[0].mxu0
        %v775 = vadd.f32 0.0, %v774
        %v776 = vpop.f32.mrb[0].mxu0
        %777 = vdwg.mxu0
        %v778 = vadd.f32 %v701, %v772
        %v779 = vadd.f32 %v702, %v775
        %780 = vrot.lane.b32.xlu0 %v335, 47
        %v781 = vpop.permute.xlu0 %780
        %v782 = vrot.slane %v781, 4
        %vm783 = vcmask 384000
        %v784 = vsel %vm783, %v782, %v781
        %v786 = vmul.bf16 %v324, %v784
        %v787 = vmul.bf16 %v325, %v784
        %s788 = scalar_lea.vmem %s3, 48
        %v789 = vld [vmem:[%s788] sm:$0xf]
        %v790 = vld [vmem:[%s788 + $0x4] sm:$0xf]
        %v793 = vunpack.c.l.b16 %v789
        %v794 = vunpack.c.l.b16 %v790
        %v795 = vpack.c.b16 %v794, %v793
        %v798 = vunpack.c.l.b16 %v786
        %v799 = vunpack.c.h.b16 %v786
        %v800 = vunpack.c.l.b16 %v787
        %v801 = vunpack.c.h.b16 %v787
        %v802 = vpack.c.b16 %v800, %v798
        %v803 = vpack.c.b16 %v801, %v799
        %804 = vrot.lane.b32.xlu0 %v802, 81
        %v805 = vpop.permute.xlu0 %804
        %806 = vrot.lane.b32.xlu0 %v803, 81
        %v807 = vpop.permute.xlu0 %806
        %vm808 = vcmask 662528
        %v809 = vsel %vm808, %v805, %v807
        %v812 = vsel %vm369, %v795, 0
        %814 = vmatprep.subr.bf16.mxu0 0
        %815 = vmatpush1.bf16.msra.mxu0 %v809
        %816 = vmatprep.subr.bf16.mxu0 0
        %817 = vmatpush1.bf16.msra.mxu0 0
        %818 = vmatprep.subr.bf16.mxu0 0
        %819 = vmatpush1.bf16.msra.mxu0 0
        %820 = vmatprep.subr.bf16.mxu0 0
        %821 = vmatpush1.bf16.msra.mxu0 0
        %822 = vmatprep.subr.bf16.mxu0 0
        %823 = vmatpush1.bf16.msra.mxu0 0
        %824 = vmatprep.subr.bf16.mxu0 0
        %825 = vmatpush1.bf16.msra.mxu0 0
        %826 = vmatprep.subr.bf16.mxu0 0
        %827 = vmatpush1.bf16.msra.mxu0 0
        %828 = vmatprep.subr.bf16.mxu0 0
        %829 = vmatpush1.bf16.msra.mxu0 0
        %830 = vmatprep.subr.bf16.mxu0 0
        %831 = vmatpush1.bf16.msra.mxu0 0
        %832 = vmatprep.subr.bf16.mxu0 0
        %833 = vmatpush1.bf16.msra.mxu0 0
        %834 = vmatprep.subr.bf16.mxu0 0
        %835 = vmatpush1.bf16.msra.mxu0 0
        %836 = vmatprep.subr.bf16.mxu0 0
        %837 = vmatpush1.bf16.msra.mxu0 0
        %838 = vmatprep.subr.bf16.mxu0 0
        %839 = vmatpush1.bf16.msra.mxu0 0
        %840 = vmatprep.subr.bf16.mxu0 0
        %841 = vmatpush1.bf16.msra.mxu0 0
        %842 = vmatprep.subr.bf16.mxu0 0
        %843 = vmatpush1.bf16.msra.mxu0 0
        %844 = vmatprep.subr.bf16.mxu0 0
        %845 = vmatpush1.bf16.msra.mxu0 0
        %846 = vmatprep.mubr.bf16.mxu0 0
        %847 = vmatmul.mubr.bf16.gmra.mrb[0].mxu0 %v812
        %v848 = vpop.f32.mrb[0].mxu0
        %v849 = vadd.f32 0.0, %v848
        %v850 = vpop.f32.mrb[0].mxu0
        %v851 = vpop.f32.mrb[0].mxu0
        %v852 = vadd.f32 0.0, %v851
        %v853 = vpop.f32.mrb[0].mxu0
        %854 = vdwg.mxu0
        %v855 = vadd.f32 %v778, %v849
        %v856 = vadd.f32 %v779, %v852
        %s857 = scalar_lea.vmem %s3, 56
        %v858 = vld [vmem:[%s857] sm:$0xf]
        %v859 = vld [vmem:[%s857 + $0x4] sm:$0xf]
        %v862 = vunpack.c.l.b16 %v858
        %v863 = vunpack.c.l.b16 %v859
        %v864 = vpack.c.b16 %v863, %v862
        %865 = vrot.lane.b32.xlu0 %v360, 80
        %v866 = vpop.permute.xlu0 %865
        %867 = vrot.lane.b32.xlu0 %v361, 80
        %v868 = vpop.permute.xlu0 %867
        %vm869 = vcmask 654336
        %v870 = vsel %vm869, %v866, %v868
        %v873 = vsel %vm369, %v864, 0
        %875 = vmatprep.subr.bf16.mxu0 0
        %876 = vmatpush1.bf16.msra.mxu0 %v870
        %877 = vmatprep.subr.bf16.mxu0 0
        %878 = vmatpush1.bf16.msra.mxu0 0
        %879 = vmatprep.subr.bf16.mxu0 0
        %880 = vmatpush1.bf16.msra.mxu0 0
        %881 = vmatprep.subr.bf16.mxu0 0
        %882 = vmatpush1.bf16.msra.mxu0 0
        %883 = vmatprep.subr.bf16.mxu0 0
        %884 = vmatpush1.bf16.msra.mxu0 0
        %885 = vmatprep.subr.bf16.mxu0 0
        %886 = vmatpush1.bf16.msra.mxu0 0
        %887 = vmatprep.subr.bf16.mxu0 0
        %888 = vmatpush1.bf16.msra.mxu0 0
        %889 = vmatprep.subr.bf16.mxu0 0
        %890 = vmatpush1.bf16.msra.mxu0 0
        %891 = vmatprep.subr.bf16.mxu0 0
        %892 = vmatpush1.bf16.msra.mxu0 0
        %893 = vmatprep.subr.bf16.mxu0 0
        %894 = vmatpush1.bf16.msra.mxu0 0
        %895 = vmatprep.subr.bf16.mxu0 0
        %896 = vmatpush1.bf16.msra.mxu0 0
        %897 = vmatprep.subr.bf16.mxu0 0
        %898 = vmatpush1.bf16.msra.mxu0 0
        %899 = vmatprep.subr.bf16.mxu0 0
        %900 = vmatpush1.bf16.msra.mxu0 0
        %901 = vmatprep.subr.bf16.mxu0 0
        %902 = vmatpush1.bf16.msra.mxu0 0
        %903 = vmatprep.subr.bf16.mxu0 0
        %904 = vmatpush1.bf16.msra.mxu0 0
        %905 = vmatprep.subr.bf16.mxu0 0
        %906 = vmatpush1.bf16.msra.mxu0 0
        %907 = vmatprep.mubr.bf16.mxu0 0
        %908 = vmatmul.mubr.bf16.gmra.mrb[0].mxu0 %v873
        %v909 = vpop.f32.mrb[0].mxu0
        %v910 = vadd.f32 0.0, %v909
        %v911 = vpop.f32.mrb[0].mxu0
        %v912 = vpop.f32.mrb[0].mxu0
        %v913 = vadd.f32 0.0, %v912
        %v914 = vpop.f32.mrb[0].mxu0
        %915 = vdwg.mxu0
        %v916 = vadd.f32 %v855, %v910
        %v917 = vadd.f32 %v856, %v913
        %918 = vrot.lane.b32.xlu0 %v487, 49
        %v919 = vpop.permute.xlu0 %918
        %v920 = vrot.slane %v919, 4
        %vm921 = vcmask 400384
        %v922 = vsel %vm921, %v920, %v919
        %v924 = vmul.bf16 %v324, %v922
        %v925 = vmul.bf16 %v325, %v922
        %s926 = scalar_lea.vmem %s3, 64
        %v927 = vld [vmem:[%s926] sm:$0xf]
        %v928 = vld [vmem:[%s926 + $0x4] sm:$0xf]
        %v931 = vunpack.c.l.b16 %v927
        %v932 = vunpack.c.l.b16 %v928
        %v933 = vpack.c.b16 %v932, %v931
        %v936 = vunpack.c.l.b16 %v924
        %v937 = vunpack.c.h.b16 %v924
        %v938 = vunpack.c.l.b16 %v925
        %v939 = vunpack.c.h.b16 %v925
        %v940 = vpack.c.b16 %v938, %v936
        %v941 = vpack.c.b16 %v939, %v937
        %942 = vrot.lane.b32.xlu0 %v940, 79
        %v943 = vpop.permute.xlu0 %942
        %944 = vrot.lane.b32.xlu0 %v941, 79
        %v945 = vpop.permute.xlu0 %944
        %vm946 = vcmask 646144
        %v947 = vsel %vm946, %v943, %v945
        %v950 = vsel %vm369, %v933, 0
        %952 = vmatprep.subr.bf16.mxu0 0
        %953 = vmatpush1.bf16.msra.mxu0 %v947
        %954 = vmatprep.subr.bf16.mxu0 0
        %955 = vmatpush1.bf16.msra.mxu0 0
        %956 = vmatprep.subr.bf16.mxu0 0
        %957 = vmatpush1.bf16.msra.mxu0 0
        %958 = vmatprep.subr.bf16.mxu0 0
        %959 = vmatpush1.bf16.msra.mxu0 0
        %960 = vmatprep.subr.bf16.mxu0 0
        %961 = vmatpush1.bf16.msra.mxu0 0
        %962 = vmatprep.subr.bf16.mxu0 0
        %963 = vmatpush1.bf16.msra.mxu0 0
        %964 = vmatprep.subr.bf16.mxu0 0
        %965 = vmatpush1.bf16.msra.mxu0 0
        %966 = vmatprep.subr.bf16.mxu0 0
        %967 = vmatpush1.bf16.msra.mxu0 0
        %968 = vmatprep.subr.bf16.mxu0 0
        %969 = vmatpush1.bf16.msra.mxu0 0
        %970 = vmatprep.subr.bf16.mxu0 0
        %971 = vmatpush1.bf16.msra.mxu0 0
        %972 = vmatprep.subr.bf16.mxu0 0
        %973 = vmatpush1.bf16.msra.mxu0 0
        %974 = vmatprep.subr.bf16.mxu0 0
        %975 = vmatpush1.bf16.msra.mxu0 0
        %976 = vmatprep.subr.bf16.mxu0 0
        %977 = vmatpush1.bf16.msra.mxu0 0
        %978 = vmatprep.subr.bf16.mxu0 0
        %979 = vmatpush1.bf16.msra.mxu0 0
        %980 = vmatprep.subr.bf16.mxu0 0
        %981 = vmatpush1.bf16.msra.mxu0 0
        %982 = vmatprep.subr.bf16.mxu0 0
        %983 = vmatpush1.bf16.msra.mxu0 0
        %984 = vmatprep.mubr.bf16.mxu0 0
        %985 = vmatmul.mubr.bf16.gmra.mrb[0].mxu0 %v950
        %v986 = vpop.f32.mrb[0].mxu0
        %v987 = vadd.f32 0.0, %v986
        %v988 = vpop.f32.mrb[0].mxu0
        %v989 = vpop.f32.mrb[0].mxu0
        %v990 = vadd.f32 0.0, %v989
        %v991 = vpop.f32.mrb[0].mxu0
        %992 = vdwg.mxu0
        %v993 = vadd.f32 %v916, %v987
        %v994 = vadd.f32 %v917, %v990
        %v995 = vld [vmem:[%s314] sm:$0xff]
        %v996 = vld [vmem:[%s314 + $0x8] sm:$0xff]
        %998 = vset.pattern.permute.xlu0 0
        %999 = vperm.xlu0 %998, %v995
        %v1000 = vpop.permute.xlu0 %999
        %1003 = vset.pattern.permute.xlu0 0
        %1004 = vperm.xlu0 %1003, %v996
        %v1005 = vpop.permute.xlu0 %1004
        %v1007 = vmul.f32 %v993, %v1000
        %v1008 = vmul.f32 %v994, %v1005
        %v1009 = vld [vmem:[%s4] sm:$0xff]
        %v1010 = vld [vmem:[%s4 + $0x8] sm:$0xff]
        %1012 = vset.pattern.permute.xlu0 0
        %1013 = vperm.xlu0 %1012, %v1009
        %v1014 = vpop.permute.xlu0 %1013
        %1017 = vset.pattern.permute.xlu0 0
        %1018 = vperm.xlu0 %1017, %v1010
        %v1019 = vpop.permute.xlu0 %1018
        %v1021 = vadd.f32 %v1007, %v1014
        %v1022 = vadd.f32 %v1008, %v1019
        %v1023 = vld [vmem:[%s321] sm:$0x1]
        %1024 = vset.pattern.permute.xlu0 1
        %1025 = vperm.xlu0 %1024, %v1009
        %v1026 = vpop.permute.xlu0 %1025
        %1028 = vset.pattern.permute.xlu0 1
        %1029 = vperm.xlu0 %1028, %v1010
        %v1030 = vpop.permute.xlu0 %1029
        %v1033 = vlaneseq
        %v1034 = vshrl.u32 %v1033, 7
        %v1035 = vsub.s32 0, %v1034
        %v1036 = vrot.slane %v1023, %v1035
        %v1038 = vmul.f32 %v1026, %v1036
        %v1039 = vmul.f32 %v1030, %v1036
        %v1040 = vadd.f32 %v1021, %v1038
        %v1041 = vadd.f32 %v1022, %v1039
        %vm1042 = vcmp.ge.f32.partialorder %v1040, 0.0
        %vm1043 = vcmp.ge.f32.partialorder %v1041, 0.0
        %v1044 = vmul.f32 %v1040, 0.2
        %v1045 = vmul.f32 %v1041, 0.2
        %v1046 = vsel %vm1042, %v1040, %v1044
        %v1047 = vsel %vm1043, %v1041, %v1045
        %v1048 = vpack.c.bf16 %v1047, %v1046
        %v1050 = vunpack.c.l.b16 %v1048
        %v1051 = vunpack.c.h.b16 %v1048
        %v1052 = vpack.c.b16 %v1050, %v1050
        %v1053 = vpack.c.b16 %v1051, %v1051
        %1056 = vst [vmem:[%s300] sm:$0xf] %v1052
        %1057 = vst [vmem:[%s300 + $0x4] sm:$0xf] %v1053
        %s1058 = sand.u32 %s184, 1
        %s1059 = sand.u32 %s184, 1
        %s1060 = smul.addr %s1059, 8
        %s1061 = scalar_lea.vmem [#allocation2], %s1060
        // Predicated region
        $region45: #{generator_block_forward.2} parent=43 // pred_check
          %p1062 = pneg %p194
        $region46: #{generator_block_forward.2} parent=43 // pred_check_branch
          %1064 = sbr.rel (%p1062) target = $region48
        $region47: #{generator_block_forward.2} parent=43 // pred_region
          %s1065 = smul.addr %s21, 4
          %s1066 = sadd.s32 %s22, %s1065
          %s1067 = smul.addr %s1066, 4
          %s1068 = scalar_lea.vmem %s6, %s1067
          // Predicated region
          $region49: #{generator_block_forward.2} parent=47 // pred_check
            _
          $region50: #{generator_block_forward.2} parent=47 // pred_check_branch
            %1070 = sbr.rel (0) target = $region52
          $region51: #{generator_block_forward.2} parent=47 // pred_region
            // Predicated region
            $region53: #{generator_block_forward.2} parent=51 // pred_check
              _
            $region54: #{generator_block_forward.2} parent=51 // pred_check_branch
              %1072 = sbr.rel target = $region56
            $region55: #{generator_block_forward.2} parent=51 // pred_region
              // Predicated region
              $region68: #{generator_block_forward.2} parent=55 // pred_check
                _
              $region69: #{generator_block_forward.2} parent=55 // pred_check_branch
                %1089 = sbr.rel (0) target = $region71
              $region70: #{generator_block_forward.2} parent=55 // pred_region
                loop: start=0, step=1, limit=1
                $region72: #{generator_block_forward.2} parent=70 // loop_pre_header
                  _
                $region73: #{generator_block_forward.2} parent=70 // loop_header
                  %s1091 = sphi 0, %s1095
                  %p1092 = scmp.ge.s32.totalorder %s1091, 1
                  %s1096 = sphi %s1061, %s1061
                  %s1097 = sphi %s1068, %s1068
                $region74: #{generator_block_forward.2} parent=70 // loop_header_branch
                  %1094 = sbr.rel (%p1092) target = $region78
                $region75: #{generator_block_forward.2} parent=70 // loop_body
                  _
                $region76: #{generator_block_forward.2} parent=70 // loop_footer
                  %s1095 = sadd.s32 1, %s1091
                $region77: #{generator_block_forward.2} parent=70 // loop_footer_branch
                  %1090 = sbr.rel target = $region73
                $region78: #{generator_block_forward.2} parent=70 // loop_exit
                  _
                loop: start=0, step=1, limit=1
                $region79: #{generator_block_forward.2} parent=70 // loop_pre_header
                  _
                $region80: #{generator_block_forward.2} parent=70 // loop_header
                  %s1100 = sphi 0, %s1104
                  %p1101 = scmp.ge.s32.totalorder %s1100, 1
                  %s1105 = sphi %s1061, %s1061
                  %s1106 = sphi %s1068, %s1068
                $region81: #{generator_block_forward.2} parent=70 // loop_header_branch
                  %1103 = sbr.rel (%p1101) target = $region85
                $region82: #{generator_block_forward.2} parent=70 // loop_body
                  %v1107 = vld [vmem:[%s1105] sm:$0xf]
                  %1108 = vst [vmem:[%s1106] sm:$0xf] %v1107
                  %v1109 = vld [vmem:[%s1105 + $0x4] sm:$0xf]
                  %1110 = vst [vmem:[%s1106 + $0x8] sm:$0xf] %v1109
                $region83: #{generator_block_forward.2} parent=70 // loop_footer
                  %s1104 = sadd.s32 1, %s1100
                $region84: #{generator_block_forward.2} parent=70 // loop_footer_branch
                  %1099 = sbr.rel target = $region80
                $region85: #{generator_block_forward.2} parent=70 // loop_exit
                  _
              $region71: #{generator_block_forward.2} parent=55 // pred_fallthru
                _
            $region56: #{generator_block_forward.2} parent=51 // pred_fallthru
              _
            // Predicated region
            $region57: #{generator_block_forward.2} parent=51 // pred_check
              _
            $region58: #{generator_block_forward.2} parent=51 // pred_check_branch
              %1074 = sbr.rel (0) target = $region60
            $region59: #{generator_block_forward.2} parent=51 // pred_region
              loop: start=0, step=1, limit=1
              $region61: #{generator_block_forward.2} parent=59 // loop_pre_header
                _
              $region62: #{generator_block_forward.2} parent=59 // loop_header
                %s1077 = sphi 0, %s1081
                %p1078 = scmp.ge.s32.totalorder %s1077, 1
                %s1082 = sphi %s1061, %s1061
                %s1083 = sphi %s1068, %s1068
              $region63: #{generator_block_forward.2} parent=59 // loop_header_branch
                %1080 = sbr.rel (%p1078) target = $region67
              $region64: #{generator_block_forward.2} parent=59 // loop_body
                %v1084 = vld [vmem:[%s1082] sm:$0xf]
                %1085 = vst [vmem:[%s1083] sm:$0xf] %v1084
                %v1086 = vld [vmem:[%s1082 + $0x4] sm:$0xf]
                %1087 = vst [vmem:[%s1083 + $0x8] sm:$0xf] %v1086
              $region65: #{generator_block_forward.2} parent=59 // loop_footer
                %s1081 = sadd.s32 1, %s1077
              $region66: #{generator_block_forward.2} parent=59 // loop_footer_branch
                %1076 = sbr.rel target = $region62
              $region67: #{generator_block_forward.2} parent=59 // loop_exit
                _
            $region60: #{generator_block_forward.2} parent=51 // pred_fallthru
              _
          $region52: #{generator_block_forward.2} parent=47 // pred_fallthru
            _
          %1111 = vnop
        $region48: #{generator_block_forward.2} parent=43 // pred_fallthru
          _
      $region44: #{generator_block_forward.2} parent=5 // pred_fallthru
        _
      %p1112 = scmp.le.s32.totalorder 2, %s12
      // Predicated region
      $region86: #{generator_block_forward.2} parent=5 // pred_check
        %p1113 = pneg %p1112
      $region87: #{generator_block_forward.2} parent=5 // pred_check_branch
        %1115 = sbr.rel (%p1113) target = $region89
      $region88: #{generator_block_forward.2} parent=5 // pred_region
        %s1116 = ssub.s32 %s12, 2
        // Predicated region
        $region90: #{generator_block_forward.2} parent=88 // pred_check
          %p1117 = pneg %p200
        $region91: #{generator_block_forward.2} parent=88 // pred_check_branch
          %1119 = sbr.rel (%p1117) target = $region93
        $region92: #{generator_block_forward.2} parent=88 // pred_region
          %s1120 = sand.u32 %s185, 1
          %s1121 = sand.u32 %s185, 1
          %s1122 = smul.addr %s1121, 8
          %s1123 = scalar_lea.vmem [#allocation2], %s1122
        $region93: #{generator_block_forward.2} parent=88 // pred_fallthru
          _
      $region89: #{generator_block_forward.2} parent=5 // pred_fallthru
        _
    $region6: #{generator_block_forward.2} parent=1 // loop_footer
      %s16 = sadd.s32 1, %s12
    $region7: #{generator_block_forward.2} parent=1 // loop_footer_branch
      %11 = sbr.rel target = $region3
    $region8: #{generator_block_forward.2} parent=1 // loop_exit
      _

// kernel: generator_block_forward.3
$region0: #{generator_block_forward.3}
  #allocation0 [shape = 'u32[]', space=smem, size = 0x4, offset = 0x4, fixed_abs, tag = 'smem constant byte address 0x4 - core index']
  #allocation1 [shape = 'u32[144,128]{1,0:T(1,128)}', space=vmem, size = 0x12000, scoped, tag = 'internal scratch']
  %s0 = inlined_call_operand.vmem [shape: bf16[2,2,16,192], index: 0, kind: input, shape index: {}]
  %s1 = inlined_call_operand.vmem [shape: f32[2,16,1], index: 1, kind: input, shape index: {}]
  %s2 = inlined_call_operand.vmem [shape: f32[2,1,256], index: 2, kind: input, shape index: {}]
  %s3 = inlined_call_operand.vmem [shape: bf16[9,16,16], index: 3, kind: input, shape index: {}]
  %s4 = inlined_call_operand.vmem [shape: f32[16,2], index: 4, kind: input, shape index: {}]
  %s5 = inlined_call_operand.vmem [shape: bf16[2,128], index: 5, kind: input, shape index: {}]
  %s6 = inlined_call_operand.vmem [shape: bf16[2,8,16], index: 6, kind: input, shape index: {}]
  %s7 = inlined_call_operand.vmem [shape: f32[8,1], index: 7, kind: input, shape index: {}]
  %s8 = inlined_call_operand.vmem [shape: bf16[2,16,256], index: 8, kind: output, shape index: {0}]
  %s9 = inlined_call_operand.vmem [shape: f32[2,8,256], index: 9, kind: output, shape index: {1}]
  %10 = xla_tuple %s8, %s9
  %s11 = sld [smem:[#allocation0]]
  $region110: #{generator_block_forward.3} parent=0
    _
  %s13 = ssub.s32 1, %s11
  %s14 = scalar_select 0, %s13, %s11
  $region1: #{generator_block_forward.3} parent=0
    #allocation2 [shape = 'u8[8192]{0}', space=vmem, size = 0x2000, scoped, tag = 'output window, operand 0']
    loop: start=0, step=1, limit=6
    $region2: #{generator_block_forward.3} parent=1 // loop_pre_header
      _
    $region3: #{generator_block_forward.3} parent=1 // loop_header
      %s16 = sphi 0, %s20
      %p17 = scmp.ge.s32.totalorder %s16, 6
      %s23 = sphi 0, %s35
      %s24 = sphi 0, %s31
      %s25 = sphi 0, %s23
      %s26 = sphi 0, %s24
      %s27 = sphi 0, %s25
      %s28 = sphi 0, %s26
      %s40 = sphi 0, %s42
      %s43 = sphi 0, %s40
      %s44 = sphi 0, %s43
      %s60 = sphi 0, %s44
      %s66 = sphi 0, %s68
      %s69 = sphi 0, %s66
      %s70 = sphi 0, %s69
      %s86 = sphi 0, %s70
      %s94 = sphi 0, %s96
      %s97 = sphi 0, %s94
      %s98 = sphi 0, %s97
      %s114 = sphi 0, %s98
      %s118 = sphi 0, %s118
      %s120 = sphi 0, %s118
      %s121 = sphi 0, %s120
      %s135 = sphi 0, %s121
      %s139 = sphi 0, %s139
      %s141 = sphi 0, %s139
      %s142 = sphi 0, %s141
      %s156 = sphi 0, %s142
      %s160 = sphi 0, %s160
      %s162 = sphi 0, %s160
      %s163 = sphi 0, %s162
      %s177 = sphi 0, %s163
      %s183 = sphi 0, %s185
      %s186 = sphi 0, %s183
      %s187 = sphi 0, %s186
      %s203 = sphi 0, %s187
      %s207 = sphi 0, %s207
      %s209 = sphi 0, %s207
      %s210 = sphi 0, %s209
      %s224 = sphi 0, %s210
      %s232 = sphi 0, %s234
      %s235 = sphi 0, %s232
      %s236 = sphi 0, %s235
      %s252 = sphi 0, %s236
      %s260 = sphi 0, %s262
      %s263 = sphi 0, %s260
      %s264 = sphi 0, %s263
      %s280 = sphi 0, %s264
    $region4: #{generator_block_forward.3} parent=1 // loop_header_branch
      %19 = sbr.rel (%p17) target = $region8
    $region5: #{generator_block_forward.3} parent=1 // loop_body
      %s21 = ssub.s32 %s16, 1
      %s22 = ssub.s32 %s16, 2
      %s29 = sadd.s32 1, %s24
      %p30 = scmp.ge.s32.totalorder %s29, 2
      %s31 = scalar_select %p30, 0, %s29
      %s32 = sadd.s32 1, %s23
      %s33 = scalar_select %p30, %s32, %s23
      %p34 = scmp.ge.s32.totalorder %s33, 2
      %s35 = scalar_select %p34, 0, %s33
      %s36 = ssub.s32 %s23, %s35
      %s37 = ssub.s32 %s24, %s31
      %s38 = sor.u32 %s36, %s37
      %p39 = scmp.eq.s32.totalorder %s38, 0
      %s41 = sadd.s32 %s40, 1
      %s42 = scalar_select %p39, %s40, %s41
      %p45 = pneg %p39
      %p46 = scmp.eq.s32.totalorder %s16, 3
      %p47 = por %p45, %p46
      %p48 = scmp.ne.s32.totalorder %s40, %s43
      %p49 = scmp.eq.s32.totalorder %s16, 0
      %p50 = por %p48, %p49
      %p51 = scmp.ne.s32.totalorder %s40, %s43
      %p52 = scmp.eq.s32.totalorder %s21, 3
      %p53 = por %p51, %p52
      %p54 = scmp.ne.s32.totalorder %s43, %s44
      %p55 = scmp.eq.s32.totalorder %s21, 0
      %p56 = por %p54, %p55
      %p57 = scmp.ne.s32.totalorder %s43, %s44
      %p58 = scmp.eq.s32.totalorder %s22, 3
      %p59 = por %p57, %p58
      %p61 = scmp.ne.s32.totalorder %s44, %s60
      %p62 = scmp.eq.s32.totalorder %s22, 0
      %p63 = por %p61, %p62
      %s64 = ssub.s32 %s23, %s35
      %p65 = scmp.eq.s32.totalorder %s64, 0
      %s67 = sadd.s32 %s66, 1
      %s68 = scalar_select %p65, %s66, %s67
      %p71 = pneg %p65
      %p72 = scmp.eq.s32.totalorder %s16, 3
      %p73 = por %p71, %p72
      %p74 = scmp.ne.s32.totalorder %s66, %s69
      %p75 = scmp.eq.s32.totalorder %s16, 0
      %p76 = por %p74, %p75
      %p77 = scmp.ne.s32.totalorder %s66, %s69
      %p78 = scmp.eq.s32.totalorder %s21, 3
      %p79 = por %p77, %p78
      %p80 = scmp.ne.s32.totalorder %s69, %s70
      %p81 = scmp.eq.s32.totalorder %s21, 0
      %p82 = por %p80, %p81
      %p83 = scmp.ne.s32.totalorder %s69, %s70
      %p84 = scmp.eq.s32.totalorder %s22, 3
      %p85 = por %p83, %p84
      %p87 = scmp.ne.s32.totalorder %s70, %s86
      %p88 = scmp.eq.s32.totalorder %s22, 0
      %p89 = por %p87, %p88
      %s90 = ssub.s32 %s23, %s35
      %s91 = ssub.s32 %s24, %s31
      %s92 = sor.u32 %s90, %s91
      %p93 = scmp.eq.s32.totalorder %s92, 0
      %s95 = sadd.s32 %s94, 1
      %s96 = scalar_select %p93, %s94, %s95
      %p99 = pneg %p93
      %p100 = scmp.eq.s32.totalorder %s16, 3
      %p101 = por %p99, %p100
      %p102 = scmp.ne.s32.totalorder %s94, %s97
      %p103 = scmp.eq.s32.totalorder %s16, 0
      %p104 = por %p102, %p103
      %p105 = scmp.ne.s32.totalorder %s94, %s97
      %p106 = scmp.eq.s32.totalorder %s21, 3
      %p107 = por %p105, %p106
      %p108 = scmp.ne.s32.totalorder %s97, %s98
      %p109 = scmp.eq.s32.totalorder %s21, 0
      %p110 = por %p108, %p109
      %p111 = scmp.ne.s32.totalorder %s97, %s98
      %p112 = scmp.eq.s32.totalorder %s22, 3
      %p113 = por %p111, %p112
      %p115 = scmp.ne.s32.totalorder %s98, %s114
      %p116 = scmp.eq.s32.totalorder %s22, 0
      %p117 = por %p115, %p116
      %s119 = sadd.s32 %s118, 1
      %p122 = scmp.eq.s32.totalorder %s16, 3
      %p123 = scmp.ne.s32.totalorder %s118, %s120
      %p124 = scmp.eq.s32.totalorder %s16, 0
      %p125 = por %p123, %p124
      %p126 = scmp.ne.s32.totalorder %s118, %s120
      %p127 = scmp.eq.s32.totalorder %s21, 3
      %p128 = por %p126, %p127
      %p129 = scmp.ne.s32.totalorder %s120, %s121
      %p130 = scmp.eq.s32.totalorder %s21, 0
      %p131 = por %p129, %p130
      %p132 = scmp.ne.s32.totalorder %s120, %s121
      %p133 = scmp.eq.s32.totalorder %s22, 3
      %p134 = por %p132, %p133
      %p136 = scmp.ne.s32.totalorder %s121, %s135
      %p137 = scmp.eq.s32.totalorder %s22, 0
      %p138 = por %p136, %p137
      %s140 = sadd.s32 %s139, 1
      %p143 = scmp.eq.s32.totalorder %s16, 3
      %p144 = scmp.ne.s32.totalorder %s139, %s141
      %p145 = scmp.eq.s32.totalorder %s16, 0
      %p146 = por %p144, %p145
      %p147 = scmp.ne.s32.totalorder %s139, %s141
      %p148 = scmp.eq.s32.totalorder %s21, 3
      %p149 = por %p147, %p148
      %p150 = scmp.ne.s32.totalorder %s141, %s142
      %p151 = scmp.eq.s32.totalorder %s21, 0
      %p152 = por %p150, %p151
      %p153 = scmp.ne.s32.totalorder %s141, %s142
      %p154 = scmp.eq.s32.totalorder %s22, 3
      %p155 = por %p153, %p154
      %p157 = scmp.ne.s32.totalorder %s142, %s156
      %p158 = scmp.eq.s32.totalorder %s22, 0
      %p159 = por %p157, %p158
      %s161 = sadd.s32 %s160, 1
      %p164 = scmp.eq.s32.totalorder %s16, 3
      %p165 = scmp.ne.s32.totalorder %s160, %s162
      %p166 = scmp.eq.s32.totalorder %s16, 0
      %p167 = por %p165, %p166
      %p168 = scmp.ne.s32.totalorder %s160, %s162
      %p169 = scmp.eq.s32.totalorder %s21, 3
      %p170 = por %p168, %p169
      %p171 = scmp.ne.s32.totalorder %s162, %s163
      %p172 = scmp.eq.s32.totalorder %s21, 0
      %p173 = por %p171, %p172
      %p174 = scmp.ne.s32.totalorder %s162, %s163
      %p175 = scmp.eq.s32.totalorder %s22, 3
      %p176 = por %p174, %p175
      %p178 = scmp.ne.s32.totalorder %s163, %s177
      %p179 = scmp.eq.s32.totalorder %s22, 0
      %p180 = por %p178, %p179
      %s181 = ssub.s32 %s23, %s35
      %p182 = scmp.eq.s32.totalorder %s181, 0
      %s184 = sadd.s32 %s183, 1
      %s185 = scalar_select %p182, %s183, %s184
      %p188 = pneg %p182
      %p189 = scmp.eq.s32.totalorder %s16, 3
      %p190 = por %p188, %p189
      %p191 = scmp.ne.s32.totalorder %s183, %s186
      %p192 = scmp.eq.s32.totalorder %s16, 0
      %p193 = por %p191, %p192
      %p194 = scmp.ne.s32.totalorder %s183, %s186
      %p195 = scmp.eq.s32.totalorder %s21, 3
      %p196 = por %p194, %p195
      %p197 = scmp.ne.s32.totalorder %s186, %s187
      %p198 = scmp.eq.s32.totalorder %s21, 0
      %p199 = por %p197, %p198
      %p200 = scmp.ne.s32.totalorder %s186, %s187
      %p201 = scmp.eq.s32.totalorder %s22, 3
      %p202 = por %p200, %p201
      %p204 = scmp.ne.s32.totalorder %s187, %s203
      %p205 = scmp.eq.s32.totalorder %s22, 0
      %p206 = por %p204, %p205
      %s208 = sadd.s32 %s207, 1
      %p211 = scmp.eq.s32.totalorder %s16, 3
      %p212 = scmp.ne.s32.totalorder %s207, %s209
      %p213 = scmp.eq.s32.totalorder %s16, 0
      %p214 = por %p212, %p213
      %p215 = scmp.ne.s32.totalorder %s207, %s209
      %p216 = scmp.eq.s32.totalorder %s21, 3
      %p217 = por %p215, %p216
      %p218 = scmp.ne.s32.totalorder %s209, %s210
      %p219 = scmp.eq.s32.totalorder %s21, 0
      %p220 = por %p218, %p219
      %p221 = scmp.ne.s32.totalorder %s209, %s210
      %p222 = scmp.eq.s32.totalorder %s22, 3
      %p223 = por %p221, %p222
      %p225 = scmp.ne.s32.totalorder %s210, %s224
      %p226 = scmp.eq.s32.totalorder %s22, 0
      %p227 = por %p225, %p226
      %s228 = ssub.s32 %s23, %s35
      %s229 = ssub.s32 %s24, %s31
      %s230 = sor.u32 %s228, %s229
      %p231 = scmp.eq.s32.totalorder %s230, 0
      %s233 = sadd.s32 %s232, 1
      %s234 = scalar_select %p231, %s232, %s233
      %p237 = pneg %p231
      %p238 = scmp.eq.s32.totalorder %s16, 3
      %p239 = por %p237, %p238
      %p240 = scmp.ne.s32.totalorder %s232, %s235
      %p241 = scmp.eq.s32.totalorder %s16, 0
      %p242 = por %p240, %p241
      %p243 = scmp.ne.s32.totalorder %s232, %s235
      %p244 = scmp.eq.s32.totalorder %s21, 3
      %p245 = por %p243, %p244
      %p246 = scmp.ne.s32.totalorder %s235, %s236
      %p247 = scmp.eq.s32.totalorder %s21, 0
      %p248 = por %p246, %p247
      %p249 = scmp.ne.s32.totalorder %s235, %s236
      %p250 = scmp.eq.s32.totalorder %s22, 3
      %p251 = por %p249, %p250
      %p253 = scmp.ne.s32.totalorder %s236, %s252
      %p254 = scmp.eq.s32.totalorder %s22, 0
      %p255 = por %p253, %p254
      %s256 = ssub.s32 %s23, %s35
      %s257 = ssub.s32 %s24, %s31
      %s258 = sor.u32 %s256, %s257
      %p259 = scmp.eq.s32.totalorder %s258, 0
      %s261 = sadd.s32 %s260, 1
      %s262 = scalar_select %p259, %s260, %s261
      %p265 = pneg %p259
      %p266 = scmp.eq.s32.totalorder %s16, 3
      %p267 = por %p265, %p266
      %p268 = scmp.ne.s32.totalorder %s260, %s263
      %p269 = scmp.eq.s32.totalorder %s16, 0
      %p270 = por %p268, %p269
      %p271 = scmp.ne.s32.totalorder %s260, %s263
      %p272 = scmp.eq.s32.totalorder %s21, 3
      %p273 = por %p271, %p272
      %p274 = scmp.ne.s32.totalorder %s263, %s264
      %p275 = scmp.eq.s32.totalorder %s21, 0
      %p276 = por %p274, %p275
      %p277 = scmp.ne.s32.totalorder %s263, %s264
      %p278 = scmp.eq.s32.totalorder %s22, 3
      %p279 = por %p277, %p278
      %p281 = scmp.ne.s32.totalorder %s264, %s280
      %p282 = scmp.eq.s32.totalorder %s22, 0
      %p283 = por %p281, %p282
      %p284 = scmp.le.s32.totalorder 1, %s16
      %p285 = scmp.lt.s32.totalorder %s16, 5
      %p286 = pnand %p284, %p285
      %p287 = pneg %p286
      // Predicated region
      $region9: #{generator_block_forward.3} parent=5 // pred_check
        _
      $region10: #{generator_block_forward.3} parent=5 // pred_check_branch
        %289 = sbr.rel (%p286) target = $region12
      $region11: #{generator_block_forward.3} parent=5 // pred_region
        %s290 = ssub.s32 %s16, 1
        // Predicated region
        $region13: #{generator_block_forward.3} parent=11 // pred_check
          %p291 = pneg %p131
        $region14: #{generator_block_forward.3} parent=11 // pred_check_branch
          %293 = sbr.rel (%p291) target = $region16
        $region15: #{generator_block_forward.3} parent=11 // pred_region
          _
        $region16: #{generator_block_forward.3} parent=11 // pred_fallthru
          _
        // Predicated region
        $region17: #{generator_block_forward.3} parent=11 // pred_check
          %p294 = pneg %p152
        $region18: #{generator_block_forward.3} parent=11 // pred_check_branch
          %296 = sbr.rel (%p294) target = $region20
        $region19: #{generator_block_forward.3} parent=11 // pred_region
          _
        $region20: #{generator_block_forward.3} parent=11 // pred_fallthru
          _
        // Predicated region
        $region21: #{generator_block_forward.3} parent=11 // pred_check
          %p297 = pneg %p173
        $region22: #{generator_block_forward.3} parent=11 // pred_check_branch
          %299 = sbr.rel (%p297) target = $region24
        $region23: #{generator_block_forward.3} parent=11 // pred_region
          _
        $region24: #{generator_block_forward.3} parent=11 // pred_fallthru
          _
        // Predicated region
        $region25: #{generator_block_forward.3} parent=11 // pred_check
          %p300 = pneg %p220
        $region26: #{generator_block_forward.3} parent=11 // pred_check_branch
          %302 = sbr.rel (%p300) target = $region28
        $region27: #{generator_block_forward.3} parent=11 // pred_region
          _
        $region28: #{generator_block_forward.3} parent=11 // pred_fallthru
          _
      $region12: #{generator_block_forward.3} parent=5 // pred_fallthru
        _
      %p303 = scmp.lt.s32.totalorder %s16, 4
      // Predicated region
      $region29: #{generator_block_forward.3} parent=5 // pred_check
        %p304 = pneg %p303
      $region30: #{generator_block_forward.3} parent=5 // pred_check_branch
        %306 = sbr.rel (%p304) target = $region32
      $region31: #{generator_block_forward.3} parent=5 // pred_region
        // Predicated region
        $region33: #{generator_block_forward.3} parent=31 // pred_check
          %p307 = pneg %p50
        $region34: #{generator_block_forward.3} parent=31 // pred_check_branch
          %309 = sbr.rel (%p307) target = $region36
        $region35: #{generator_block_forward.3} parent=31 // pred_region
          %p310 = scmp.lt.s32.totalorder %s23, 1
          %s311 = scalar_select %p310, %s23, 1
          %p312 = scmp.lt.s32.totalorder %s24, 1
          %s313 = scalar_select %p312, %s24, 1
          %s314 = smul.addr %s313, 4
          %s315 = smul.addr %s311, 8
          %s316 = sadd.s32 %s314, %s315
          %s317 = smul.addr %s316, 4
          %s318 = scalar_lea.vmem %s0, %s317
        $region36: #{generator_block_forward.3} parent=31 // pred_fallthru
          _
        // Predicated region
        $region37: #{generator_block_forward.3} parent=31 // pred_check
          %p319 = pneg %p76
        $region38: #{generator_block_forward.3} parent=31 // pred_check_branch
          %321 = sbr.rel (%p319) target = $region40
        $region39: #{generator_block_forward.3} parent=31 // pred_region
          %p322 = scmp.lt.s32.totalorder %s23, 1
          %s323 = scalar_select %p322, %s23, 1
          %s324 = smul.addr %s323, 2
          %s325 = smul.addr %s324, 8
          %s326 = scalar_lea.vmem %s1, %s325
        $region40: #{generator_block_forward.3} parent=31 // pred_fallthru
          _
        // Predicated region
        $region41: #{generator_block_forward.3} parent=31 // pred_check
          %p327 = pneg %p104
        $region42: #{generator_block_forward.3} parent=31 // pred_check_branch
          %329 = sbr.rel (%p327) target = $region44
        $region43: #{generator_block_forward.3} parent=31 // pred_region
          %p330 = scmp.lt.s32.totalorder %s23, 1
          %s331 = scalar_select %p330, %s23, 1
          %p332 = scmp.lt.s32.totalorder %s24, 1
          %s333 = scalar_select %p332, %s24, 1
          %s334 = smul.addr %s331, 2
          %s335 = sadd.s32 %s333, %s334
          %s336 = scalar_lea.vmem %s2, %s335
        $region44: #{generator_block_forward.3} parent=31 // pred_fallthru
          _
        // Predicated region
        $region45: #{generator_block_forward.3} parent=31 // pred_check
          %p337 = pneg %p193
        $region46: #{generator_block_forward.3} parent=31 // pred_check_branch
          %339 = sbr.rel (%p337) target = $region48
        $region47: #{generator_block_forward.3} parent=31 // pred_region
          %p340 = scmp.lt.s32.totalorder %s23, 1
          %s341 = scalar_select %p340, %s23, 1
          %s342 = smul.addr %s341, 4
          %s343 = scalar_lea.vmem %s6, %s342
        $region48: #{generator_block_forward.3} parent=31 // pred_fallthru
          _
      $region32: #{generator_block_forward.3} parent=5 // pred_fallthru
        _
      %p344 = scmp.le.s32.totalorder 1, %s16
      %p345 = scmp.lt.s32.totalorder %s16, 5
      %p346 = pnand %p344, %p345
      %p347 = pneg %p346
      // Predicated region
      $region49: #{generator_block_forward.3} parent=5 // pred_check
        _
      $region50: #{generator_block_forward.3} parent=5 // pred_check_branch
        %349 = sbr.rel (%p346) target = $region52
      $region51: #{generator_block_forward.3} parent=5 // pred_region
        %s350 = ssub.s32 %s16, 1
        %p351 = scmp.lt.s32.totalorder %s25, 1
        %s352 = scalar_select %p351, %s25, 1
        %p353 = scmp.lt.s32.totalorder %s26, 1
        %s354 = scalar_select %p353, %s26, 1
        %s355 = smul.addr %s354, 4
        %s356 = smul.addr %s352, 8
        %s357 = sadd.s32 %s355, %s356
        %s358 = smul.addr %s357, 4
        %s359 = scalar_lea.vmem %s0, %s358
        %p360 = pneg %p56
        %p361 = pneg %p53
        %p362 = scmp.lt.s32.totalorder %s25, 1
        %s363 = scalar_select %p362, %s25, 1
        %s364 = smul.addr %s363, 2
        %s365 = smul.addr %s364, 8
        %s366 = scalar_lea.vmem %s1, %s365
        %p367 = pneg %p82
        %p368 = pneg %p79
        %p369 = scmp.lt.s32.totalorder %s25, 1
        %s370 = scalar_select %p369, %s25, 1
        %p371 = scmp.lt.s32.totalorder %s26, 1
        %s372 = scalar_select %p371, %s26, 1
        %s373 = smul.addr %s370, 2
        %s374 = sadd.s32 %s372, %s373
        %s375 = scalar_lea.vmem %s2, %s374
        %p376 = pneg %p110
        %p377 = pneg %p107
        %p378 = pneg %p131
        %p379 = pneg %p128
        %p380 = pneg %p152
        %p381 = pneg %p149
        %p382 = pneg %p173
        %p383 = pneg %p170
        %p384 = scmp.lt.s32.totalorder %s25, 1
        %s385 = scalar_select %p384, %s25, 1
        %s386 = smul.addr %s385, 4
        %s387 = scalar_lea.vmem %s6, %s386
        %p388 = pneg %p199
        %p389 = pneg %p196
        %p390 = pneg %p220
        %p391 = pneg %p217
        %p392 = pneg %p248
        %p393 = pneg %p245
        %s394 = sand.u32 %s235, 1
        %s395 = sand.u32 %s235, 1
        %s396 = smul.addr %s395, 8
        %s397 = scalar_lea.vmem [#allocation2], %s396
        %p398 = pneg %p276
        %p399 = pneg %p273
        %p400 = scmp.lt.s32.totalorder %s25, 1
        %s401 = scalar_select %p400, %s25, 1
        %p402 = scmp.lt.s32.totalorder %s26, 1
        %s403 = scalar_select %p402, %s26, 1
        %s404 = smul.addr %s401, 2
        %s405 = sadd.s32 %s403, %s404
        %s406 = smul.addr %s405, 8
        %s407 = scalar_lea.vmem %s9, %s406
        %p408 = scmp.lt.s32.totalorder %s25, 1
        %s409 = scalar_select %p408, %s25, 1
        %p410 = scmp.lt.s32.totalorder %s26, 1
        %s411 = scalar_select %p410, %s26, 1
        %s412 = smul.addr %s411, 4
        %s413 = smul.addr %s409, 8
        %s414 = sadd.s32 %s412, %s413
        %s415 = smul.addr %s414, 4
        %s416 = scalar_lea.vmem %s0, %s415
        %p417 = scmp.lt.s32.totalorder %s25, 1
        %s418 = scalar_select %p417, %s25, 1
        %s419 = smul.addr %s418, 2
        %s420 = smul.addr %s419, 8
        %s421 = scalar_lea.vmem %s1, %s420
        %p422 = scmp.lt.s32.totalorder %s25, 1
        %s423 = scalar_select %p422, %s25, 1
        %p424 = scmp.lt.s32.totalorder %s26, 1
        %s425 = scalar_select %p424, %s26, 1
        %s426 = smul.addr %s423, 2
        %s427 = sadd.s32 %s425, %s426
        %s428 = scalar_lea.vmem %s2, %s427
        %p429 = scmp.lt.s32.totalorder %s25, 1
        %s430 = scalar_select %p429, %s25, 1
        %s431 = smul.addr %s430, 4
        %s432 = scalar_lea.vmem %s6, %s431
        %p433 = scmp.lt.s32.totalorder %s25, 1
        %s434 = scalar_select %p433, %s25, 1
        %p435 = scmp.lt.s32.totalorder %s26, 1
        %s436 = scalar_select %p435, %s26, 1
        %s437 = smul.addr %s434, 2
        %s438 = sadd.s32 %s436, %s437
        %s439 = smul.addr %s438, 8
        %s440 = scalar_lea.vmem %s9, %s439
        %v442 = vld [vmem:[%s5] sm:$0x1]
        %v443 = vld [vmem:[%s416] sm:$0xff]
        %v444 = vld [vmem:[%s416 + $0x8] sm:$0xff]
        %v446 = vpack.i.b16 %v442, %v442
        %v448 = vlaneseq
        %v449 = vshrl.u32 %v448, 7
        %v450 = vsub.s32 0, %v449
        %v451 = vrot.slane %v446, %v450
        %v453 = vunpack.c.l.b16 %v451
        %v454 = vpack.c.b16 %v453, %v453
        %455 = vrot.lane.b32.xlu0 %v454, 15
        %v456 = vpop.permute.xlu0 %455
        %v457 = vrot.slane %v456, 4
        %vm458 = vcmask 121856
        %v459 = vsel %vm458, %v457, %v456
        %v461 = vmul.bf16 %v443, %v459
        %v462 = vmul.bf16 %v444, %v459
        %v463 = vld [vmem:[%s3] sm:$0xf]
        %v464 = vld [vmem:[%s3 + $0x4] sm:$0xf]
        %s465 = scalar_lea.vmem %s3, 8
        %v466 = vld [vmem:[%s465] sm:$0xf]
        %v467 = vld [vmem:[%s465 + $0x4] sm:$0xf]
        %v470 = vunpack.c.l.b16 %v466
        %v471 = vunpack.c.l.b16 %v467
        %v472 = vpack.c.b16 %v471, %v470
        %v475 = vunpack.c.l.b16 %v443
        %v476 = vunpack.c.h.b16 %v443
        %v477 = vunpack.c.l.b16 %v444
        %v478 = vunpack.c.h.b16 %v444
        %v479 = vpack.c.b16 %v477, %v475
        %v480 = vpack.c.b16 %v478, %v476
        %481 = vrot.lane.b32.xlu0 %v479, 112
        %v482 = vpop.permute.xlu0 %481
        %483 = vrot.lane.b32.xlu0 %v480, 112
        %v484 = vpop.permute.xlu0 %483
        %vm485 = vcmask 916480
        %v486 = vsel %vm485, %v482, %v484
        %vm488 = vcmask 130048
        %v490 = vsel %vm488, %v472, 0
        %492 = vmatprep.subr.bf16.mxu0 0
        %493 = vmatpush1.bf16.msra.mxu0 %v486
        %494 = vmatprep.subr.bf16.mxu0 0
        %495 = vmatpush1.bf16.msra.mxu0 0
        %496 = vmatprep.subr.bf16.mxu0 0
        %497 = vmatpush1.bf16.msra.mxu0 0
        %498 = vmatprep.subr.bf16.mxu0 0
        %499 = vmatpush1.bf16.msra.mxu0 0
        %500 = vmatprep.subr.bf16.mxu0 0
        %501 = vmatpush1.bf16.msra.mxu0 0
        %502 = vmatprep.subr.bf16.mxu0 0
        %503 = vmatpush1.bf16.msra.mxu0 0
        %504 = vmatprep.subr.bf16.mxu0 0
        %505 = vmatpush1.bf16.msra.mxu0 0
        %506 = vmatprep.subr.bf16.mxu0 0
        %507 = vmatpush1.bf16.msra.mxu0 0
        %508 = vmatprep.subr.bf16.mxu0 0
        %509 = vmatpush1.bf16.msra.mxu0 0
        %510 = vmatprep.subr.bf16.mxu0 0
        %511 = vmatpush1.bf16.msra.mxu0 0
        %512 = vmatprep.subr.bf16.mxu0 0
        %513 = vmatpush1.bf16.msra.mxu0 0
        %514 = vmatprep.subr.bf16.mxu0 0
        %515 = vmatpush1.bf16.msra.mxu0 0
        %516 = vmatprep.subr.bf16.mxu0 0
        %517 = vmatpush1.bf16.msra.mxu0 0
        %518 = vmatprep.subr.bf16.mxu0 0
        %519 = vmatpush1.bf16.msra.mxu0 0
        %520 = vmatprep.subr.bf16.mxu0 0
        %521 = vmatpush1.bf16.msra.mxu0 0
        %522 = vmatprep.subr.bf16.mxu0 0
        %523 = vmatpush1.bf16.msra.mxu0 0
        %524 = vmatprep.mubr.bf16.mxu0 0
        %525 = vmatmul.mubr.bf16.gmra.mrb[0].mxu0 %v490
        %v526 = vpop.f32.mrb[0].mxu0
        %v527 = vadd.f32 0.0, %v526
        %v528 = vpop.f32.mrb[0].mxu0
        %v529 = vpop.f32.mrb[0].mxu0
        %v530 = vadd.f32 0.0, %v529
        %v531 = vpop.f32.mrb[0].mxu0
        %532 = vdwg.mxu0
        %v535 = vunpack.c.l.b16 %v463
        %v536 = vunpack.c.l.b16 %v464
        %v537 = vpack.c.b16 %v536, %v535
        %v540 = vunpack.c.l.b16 %v461
        %v541 = vunpack.c.h.b16 %v461
        %v542 = vunpack.c.l.b16 %v462
        %v543 = vunpack.c.h.b16 %v462
        %v544 = vpack.c.b16 %v542, %v540
        %v545 = vpack.c.b16 %v543, %v541
        %546 = vrot.lane.b32.xlu0 %v544, 113
        %v547 = vpop.permute.xlu0 %546
        %548 = vrot.lane.b32.xlu0 %v545, 113
        %v549 = vpop.permute.xlu0 %548
        %vm550 = vcmask 924672
        %v551 = vsel %vm550, %v547, %v549
        %v554 = vsel %vm488, %v537, 0
        %556 = vmatprep.subr.bf16.mxu0 0
        %557 = vmatpush1.bf16.msra.mxu0 %v551
        %558 = vmatprep.subr.bf16.mxu0 0
        %559 = vmatpush1.bf16.msra.mxu0 0
        %560 = vmatprep.subr.bf16.mxu0 0
        %561 = vmatpush1.bf16.msra.mxu0 0
        %562 = vmatprep.subr.bf16.mxu0 0
        %563 = vmatpush1.bf16.msra.mxu0 0
        %564 = vmatprep.subr.bf16.mxu0 0
        %565 = vmatpush1.bf16.msra.mxu0 0
        %566 = vmatprep.subr.bf16.mxu0 0
        %567 = vmatpush1.bf16.msra.mxu0 0
        %568 = vmatprep.subr.bf16.mxu0 0
        %569 = vmatpush1.bf16.msra.mxu0 0
        %570 = vmatprep.subr.bf16.mxu0 0
        %571 = vmatpush1.bf16.msra.mxu0 0
        %572 = vmatprep.subr.bf16.mxu0 0
        %573 = vmatpush1.bf16.msra.mxu0 0
        %574 = vmatprep.subr.bf16.mxu0 0
        %575 = vmatpush1.bf16.msra.mxu0 0
        %576 = vmatprep.subr.bf16.mxu0 0
        %577 = vmatpush1.bf16.msra.mxu0 0
        %578 = vmatprep.subr.bf16.mxu0 0
        %579 = vmatpush1.bf16.msra.mxu0 0
        %580 = vmatprep.subr.bf16.mxu0 0
        %581 = vmatpush1.bf16.msra.mxu0 0
        %582 = vmatprep.subr.bf16.mxu0 0
        %583 = vmatpush1.bf16.msra.mxu0 0
        %584 = vmatprep.subr.bf16.mxu0 0
        %585 = vmatpush1.bf16.msra.mxu0 0
        %586 = vmatprep.subr.bf16.mxu0 0
        %587 = vmatpush1.bf16.msra.mxu0 0
        %588 = vmatprep.mubr.bf16.mxu0 0
        %589 = vmatmul.mubr.bf16.gmra.mrb[0].mxu0 %v554
        %v590 = vpop.f32.mrb[0].mxu0
        %v591 = vadd.f32 %v527, %v590
        %v592 = vpop.f32.mrb[0].mxu0
        %v593 = vpop.f32.mrb[0].mxu0
        %v594 = vadd.f32 %v530, %v593
        %v595 = vpop.f32.mrb[0].mxu0
        %596 = vdwg.mxu0
        %v597 = vshrl.u32 %v442, 16
        %v598 = vpack.i.b16 %v597, %v597
        %v600 = vlaneseq
        %v601 = vshrl.u32 %v600, 7
        %v602 = vsub.s32 0, %v601
        %v603 = vrot.slane %v598, %v602
        %v605 = vunpack.c.l.b16 %v603
        %v606 = vpack.c.b16 %v605, %v605
        %607 = vrot.lane.b32.xlu0 %v606, 17
        %v608 = vpop.permute.xlu0 %607
        %v609 = vrot.slane %v608, 4
        %vm610 = vcmask 138240
        %v611 = vsel %vm610, %v609, %v608
        %v613 = vmul.bf16 %v443, %v611
        %v614 = vmul.bf16 %v444, %v611
        %s615 = scalar_lea.vmem %s3, 16
        %v616 = vld [vmem:[%s615] sm:$0xf]
        %v617 = vld [vmem:[%s615 + $0x4] sm:$0xf]
        %v620 = vunpack.c.l.b16 %v616
        %v621 = vunpack.c.l.b16 %v617
        %v622 = vpack.c.b16 %v621, %v620
        %v625 = vunpack.c.l.b16 %v613
        %v626 = vunpack.c.h.b16 %v613
        %v627 = vunpack.c.l.b16 %v614
        %v628 = vunpack.c.h.b16 %v614
        %v629 = vpack.c.b16 %v627, %v625
        %v630 = vpack.c.b16 %v628, %v626
        %631 = vrot.lane.b32.xlu0 %v629, 111
        %v632 = vpop.permute.xlu0 %631
        %633 = vrot.lane.b32.xlu0 %v630, 111
        %v634 = vpop.permute.xlu0 %633
        %vm635 = vcmask 908288
        %v636 = vsel %vm635, %v632, %v634
        %v639 = vsel %vm488, %v622, 0
        %641 = vmatprep.subr.bf16.mxu0 0
        %642 = vmatpush1.bf16.msra.mxu0 %v636
        %643 = vmatprep.subr.bf16.mxu0 0
        %644 = vmatpush1.bf16.msra.mxu0 0
        %645 = vmatprep.subr.bf16.mxu0 0
        %646 = vmatpush1.bf16.msra.mxu0 0
        %647 = vmatprep.subr.bf16.mxu0 0
        %648 = vmatpush1.bf16.msra.mxu0 0
        %649 = vmatprep.subr.bf16.mxu0 0
        %650 = vmatpush1.bf16.msra.mxu0 0
        %651 = vmatprep.subr.bf16.mxu0 0
        %652 = vmatpush1.bf16.msra.mxu0 0
        %653 = vmatprep.subr.bf16.mxu0 0
        %654 = vmatpush1.bf16.msra.mxu0 0
        %655 = vmatprep.subr.bf16.mxu0 0
        %656 = vmatpush1.bf16.msra.mxu0 0
        %657 = vmatprep.subr.bf16.mxu0 0
        %658 = vmatpush1.bf16.msra.mxu0 0
        %659 = vmatprep.subr.bf16.mxu0 0
        %660 = vmatpush1.bf16.msra.mxu0 0
        %661 = vmatprep.subr.bf16.mxu0 0
        %662 = vmatpush1.bf16.msra.mxu0 0
        %663 = vmatprep.subr.bf16.mxu0 0
        %664 = vmatpush1.bf16.msra.mxu0 0
        %665 = vmatprep.subr.bf16.mxu0 0
        %666 = vmatpush1.bf16.msra.mxu0 0
        %667 = vmatprep.subr.bf16.mxu0 0
        %668 = vmatpush1.bf16.msra.mxu0 0
        %669 = vmatprep.subr.bf16.mxu0 0
        %670 = vmatpush1.bf16.msra.mxu0 0
        %671 = vmatprep.subr.bf16.mxu0 0
        %672 = vmatpush1.bf16.msra.mxu0 0
        %673 = vmatprep.mubr.bf16.mxu0 0
        %674 = vmatmul.mubr.bf16.gmra.mrb[0].mxu0 %v639
        %v675 = vpop.f32.mrb[0].mxu0
        %v676 = vadd.f32 0.0, %v675
        %v677 = vpop.f32.mrb[0].mxu0
        %v678 = vpop.f32.mrb[0].mxu0
        %v679 = vadd.f32 0.0, %v678
        %v680 = vpop.f32.mrb[0].mxu0
        %681 = vdwg.mxu0
        %v682 = vadd.f32 %v591, %v676
        %v683 = vadd.f32 %v594, %v679
        %684 = vrot.lane.b32.xlu0 %v454, 31
        %v685 = vpop.permute.xlu0 %684
        %v686 = vrot.slane %v685, 4
        %vm687 = vcmask 252928
        %v688 = vsel %vm687, %v686, %v685
        %v690 = vmul.bf16 %v443, %v688
        %v691 = vmul.bf16 %v444, %v688
        %s692 = scalar_lea.vmem %s3, 24
        %v693 = vld [vmem:[%s692] sm:$0xf]
        %v694 = vld [vmem:[%s692 + $0x4] sm:$0xf]
        %v697 = vunpack.c.l.b16 %v693
        %v698 = vunpack.c.l.b16 %v694
        %v699 = vpack.c.b16 %v698, %v697
        %v702 = vunpack.c.l.b16 %v690
        %v703 = vunpack.c.h.b16 %v690
        %v704 = vunpack.c.l.b16 %v691
        %v705 = vunpack.c.h.b16 %v691
        %v706 = vpack.c.b16 %v704, %v702
        %v707 = vpack.c.b16 %v705, %v703
        %708 = vrot.lane.b32.xlu0 %v706, 97
        %v709 = vpop.permute.xlu0 %708
        %710 = vrot.lane.b32.xlu0 %v707, 97
        %v711 = vpop.permute.xlu0 %710
        %vm712 = vcmask 793600
        %v713 = vsel %vm712, %v709, %v711
        %v716 = vsel %vm488, %v699, 0
        %718 = vmatprep.subr.bf16.mxu0 0
        %719 = vmatpush1.bf16.msra.mxu0 %v713
        %720 = vmatprep.subr.bf16.mxu0 0
        %721 = vmatpush1.bf16.msra.mxu0 0
        %722 = vmatprep.subr.bf16.mxu0 0
        %723 = vmatpush1.bf16.msra.mxu0 0
        %724 = vmatprep.subr.bf16.mxu0 0
        %725 = vmatpush1.bf16.msra.mxu0 0
        %726 = vmatprep.subr.bf16.mxu0 0
        %727 = vmatpush1.bf16.msra.mxu0 0
        %728 = vmatprep.subr.bf16.mxu0 0
        %729 = vmatpush1.bf16.msra.mxu0 0
        %730 = vmatprep.subr.bf16.mxu0 0
        %731 = vmatpush1.bf16.msra.mxu0 0
        %732 = vmatprep.subr.bf16.mxu0 0
        %733 = vmatpush1.bf16.msra.mxu0 0
        %734 = vmatprep.subr.bf16.mxu0 0
        %735 = vmatpush1.bf16.msra.mxu0 0
        %736 = vmatprep.subr.bf16.mxu0 0
        %737 = vmatpush1.bf16.msra.mxu0 0
        %738 = vmatprep.subr.bf16.mxu0 0
        %739 = vmatpush1.bf16.msra.mxu0 0
        %740 = vmatprep.subr.bf16.mxu0 0
        %741 = vmatpush1.bf16.msra.mxu0 0
        %742 = vmatprep.subr.bf16.mxu0 0
        %743 = vmatpush1.bf16.msra.mxu0 0
        %744 = vmatprep.subr.bf16.mxu0 0
        %745 = vmatpush1.bf16.msra.mxu0 0
        %746 = vmatprep.subr.bf16.mxu0 0
        %747 = vmatpush1.bf16.msra.mxu0 0
        %748 = vmatprep.subr.bf16.mxu0 0
        %749 = vmatpush1.bf16.msra.mxu0 0
        %750 = vmatprep.mubr.bf16.mxu0 0
        %751 = vmatmul.mubr.bf16.gmra.mrb[0].mxu0 %v716
        %v752 = vpop.f32.mrb[0].mxu0
        %v753 = vadd.f32 0.0, %v752
        %v754 = vpop.f32.mrb[0].mxu0
        %v755 = vpop.f32.mrb[0].mxu0
        %v756 = vadd.f32 0.0, %v755
        %v757 = vpop.f32.mrb[0].mxu0
        %758 = vdwg.mxu0
        %v759 = vadd.f32 %v682, %v753
        %v760 = vadd.f32 %v683, %v756
        %s761 = scalar_lea.vmem %s3, 32
        %v762 = vld [vmem:[%s761] sm:$0xf]
        %v763 = vld [vmem:[%s761 + $0x4] sm:$0xf]
        %v766 = vunpack.c.l.b16 %v762
        %v767 = vunpack.c.l.b16 %v763
        %v768 = vpack.c.b16 %v767, %v766
        %769 = vrot.lane.b32.xlu0 %v479, 96
        %v770 = vpop.permute.xlu0 %769
        %771 = vrot.lane.b32.xlu0 %v480, 96
        %v772 = vpop.permute.xlu0 %771
        %vm773 = vcmask 785408
        %v774 = vsel %vm773, %v770, %v772
        %v777 = vsel %vm488, %v768, 0
        %779 = vmatprep.subr.bf16.mxu0 0
        %780 = vmatpush1.bf16.msra.mxu0 %v774
        %781 = vmatprep.subr.bf16.mxu0 0
        %782 = vmatpush1.bf16.msra.mxu0 0
        %783 = vmatprep.subr.bf16.mxu0 0
        %784 = vmatpush1.bf16.msra.mxu0 0
        %785 = vmatprep.subr.bf16.mxu0 0
        %786 = vmatpush1.bf16.msra.mxu0 0
        %787 = vmatprep.subr.bf16.mxu0 0
        %788 = vmatpush1.bf16.msra.mxu0 0
        %789 = vmatprep.subr.bf16.mxu0 0
        %790 = vmatpush1.bf16.msra.mxu0 0
        %791 = vmatprep.subr.bf16.mxu0 0
        %792 = vmatpush1.bf16.msra.mxu0 0
        %793 = vmatprep.subr.bf16.mxu0 0
        %794 = vmatpush1.bf16.msra.mxu0 0
        %795 = vmatprep.subr.bf16.mxu0 0
        %796 = vmatpush1.bf16.msra.mxu0 0
        %797 = vmatprep.subr.bf16.mxu0 0
        %798 = vmatpush1.bf16.msra.mxu0 0
        %799 = vmatprep.subr.bf16.mxu0 0
        %800 = vmatpush1.bf16.msra.mxu0 0
        %801 = vmatprep.subr.bf16.mxu0 0
        %802 = vmatpush1.bf16.msra.mxu0 0
        %803 = vmatprep.subr.bf16.mxu0 0
        %804 = vmatpush1.bf16.msra.mxu0 0
        %805 = vmatprep.subr.bf16.mxu0 0
        %806 = vmatpush1.bf16.msra.mxu0 0
        %807 = vmatprep.subr.bf16.mxu0 0
        %808 = vmatpush1.bf16.msra.mxu0 0
        %809 = vmatprep.subr.bf16.mxu0 0
        %810 = vmatpush1.bf16.msra.mxu0 0
        %811 = vmatprep.mubr.bf16.mxu0 0
        %812 = vmatmul.mubr.bf16.gmra.mrb[0].mxu0 %v777
        %v813 = vpop.f32.mrb[0].mxu0
        %v814 = vadd.f32 0.0, %v813
        %v815 = vpop.f32.mrb[0].mxu0
        %v816 = vpop.f32.mrb[0].mxu0
        %v817 = vadd.f32 0.0, %v816
        %v818 = vpop.f32.mrb[0].mxu0
        %819 = vdwg.mxu0
        %v820 = vadd.f32 %v759, %v814
        %v821 = vadd.f32 %v760, %v817
        %822 = vrot.lane.b32.xlu0 %v606, 33
        %v823 = vpop.permute.xlu0 %822
        %v824 = vrot.slane %v823, 4
        %vm825 = vcmask 269312
        %v826 = vsel %vm825, %v824, %v823
        %v828 = vmul.bf16 %v443, %v826
        %v829 = vmul.bf16 %v444, %v826
        %s830 = scalar_lea.vmem %s3, 40
        %v831 = vld [vmem:[%s830] sm:$0xf]
        %v832 = vld [vmem:[%s830 + $0x4] sm:$0xf]
        %v835 = vunpack.c.l.b16 %v831
        %v836 = vunpack.c.l.b16 %v832
        %v837 = vpack.c.b16 %v836, %v835
        %v840 = vunpack.c.l.b16 %v828
        %v841 = vunpack.c.h.b16 %v828
        %v842 = vunpack.c.l.b16 %v829
        %v843 = vunpack.c.h.b16 %v829
        %v844 = vpack.c.b16 %v842, %v840
        %v845 = vpack.c.b16 %v843, %v841
        %846 = vrot.lane.b32.xlu0 %v844, 95
        %v847 = vpop.permute.xlu0 %846
        %848 = vrot.lane.b32.xlu0 %v845, 95
        %v849 = vpop.permute.xlu0 %848
        %vm850 = vcmask 777216
        %v851 = vsel %vm850, %v847, %v849
        %v854 = vsel %vm488, %v837, 0
        %856 = vmatprep.subr.bf16.mxu0 0
        %857 = vmatpush1.bf16.msra.mxu0 %v851
        %858 = vmatprep.subr.bf16.mxu0 0
        %859 = vmatpush1.bf16.msra.mxu0 0
        %860 = vmatprep.subr.bf16.mxu0 0
        %861 = vmatpush1.bf16.msra.mxu0 0
        %862 = vmatprep.subr.bf16.mxu0 0
        %863 = vmatpush1.bf16.msra.mxu0 0
        %864 = vmatprep.subr.bf16.mxu0 0
        %865 = vmatpush1.bf16.msra.mxu0 0
        %866 = vmatprep.subr.bf16.mxu0 0
        %867 = vmatpush1.bf16.msra.mxu0 0
        %868 = vmatprep.subr.bf16.mxu0 0
        %869 = vmatpush1.bf16.msra.mxu0 0
        %870 = vmatprep.subr.bf16.mxu0 0
        %871 = vmatpush1.bf16.msra.mxu0 0
        %872 = vmatprep.subr.bf16.mxu0 0
        %873 = vmatpush1.bf16.msra.mxu0 0
        %874 = vmatprep.subr.bf16.mxu0 0
        %875 = vmatpush1.bf16.msra.mxu0 0
        %876 = vmatprep.subr.bf16.mxu0 0
        %877 = vmatpush1.bf16.msra.mxu0 0
        %878 = vmatprep.subr.bf16.mxu0 0
        %879 = vmatpush1.bf16.msra.mxu0 0
        %880 = vmatprep.subr.bf16.mxu0 0
        %881 = vmatpush1.bf16.msra.mxu0 0
        %882 = vmatprep.subr.bf16.mxu0 0
        %883 = vmatpush1.bf16.msra.mxu0 0
        %884 = vmatprep.subr.bf16.mxu0 0
        %885 = vmatpush1.bf16.msra.mxu0 0
        %886 = vmatprep.subr.bf16.mxu0 0
        %887 = vmatpush1.bf16.msra.mxu0 0
        %888 = vmatprep.mubr.bf16.mxu0 0
        %889 = vmatmul.mubr.bf16.gmra.mrb[0].mxu0 %v854
        %v890 = vpop.f32.mrb[0].mxu0
        %v891 = vadd.f32 0.0, %v890
        %v892 = vpop.f32.mrb[0].mxu0
        %v893 = vpop.f32.mrb[0].mxu0
        %v894 = vadd.f32 0.0, %v893
        %v895 = vpop.f32.mrb[0].mxu0
        %896 = vdwg.mxu0
        %v897 = vadd.f32 %v820, %v891
        %v898 = vadd.f32 %v821, %v894
        %899 = vrot.lane.b32.xlu0 %v454, 47
        %v900 = vpop.permute.xlu0 %899
        %v901 = vrot.slane %v900, 4
        %vm902 = vcmask 384000
        %v903 = vsel %vm902, %v901, %v900
        %v905 = vmul.bf16 %v443, %v903
        %v906 = vmul.bf16 %v444, %v903
        %s907 = scalar_lea.vmem %s3, 48
        %v908 = vld [vmem:[%s907] sm:$0xf]
        %v909 = vld [vmem:[%s907 + $0x4] sm:$0xf]
        %v912 = vunpack.c.l.b16 %v908
        %v913 = vunpack.c.l.b16 %v909
        %v914 = vpack.c.b16 %v913, %v912
        %v917 = vunpack.c.l.b16 %v905
        %v918 = vunpack.c.h.b16 %v905
        %v919 = vunpack.c.l.b16 %v906
        %v920 = vunpack.c.h.b16 %v906
        %v921 = vpack.c.b16 %v919, %v917
        %v922 = vpack.c.b16 %v920, %v918
        %923 = vrot.lane.b32.xlu0 %v921, 81
        %v924 = vpop.permute.xlu0 %923
        %925 = vrot.lane.b32.xlu0 %v922, 81
        %v926 = vpop.permute.xlu0 %925
        %vm927 = vcmask 662528
        %v928 = vsel %vm927, %v924, %v926
        %v931 = vsel %vm488, %v914, 0
        %933 = vmatprep.subr.bf16.mxu0 0
        %934 = vmatpush1.bf16.msra.mxu0 %v928
        %935 = vmatprep.subr.bf16.mxu0 0
        %936 = vmatpush1.bf16.msra.mxu0 0
        %937 = vmatprep.subr.bf16.mxu0 0
        %938 = vmatpush1.bf16.msra.mxu0 0
        %939 = vmatprep.subr.bf16.mxu0 0
        %940 = vmatpush1.bf16.msra.mxu0 0
        %941 = vmatprep.subr.bf16.mxu0 0
        %942 = vmatpush1.bf16.msra.mxu0 0
        %943 = vmatprep.subr.bf16.mxu0 0
        %944 = vmatpush1.bf16.msra.mxu0 0
        %945 = vmatprep.subr.bf16.mxu0 0
        %946 = vmatpush1.bf16.msra.mxu0 0
        %947 = vmatprep.subr.bf16.mxu0 0
        %948 = vmatpush1.bf16.msra.mxu0 0
        %949 = vmatprep.subr.bf16.mxu0 0
        %950 = vmatpush1.bf16.msra.mxu0 0
        %951 = vmatprep.subr.bf16.mxu0 0
        %952 = vmatpush1.bf16.msra.mxu0 0
        %953 = vmatprep.subr.bf16.mxu0 0
        %954 = vmatpush1.bf16.msra.mxu0 0
        %955 = vmatprep.subr.bf16.mxu0 0
        %956 = vmatpush1.bf16.msra.mxu0 0
        %957 = vmatprep.subr.bf16.mxu0 0
        %958 = vmatpush1.bf16.msra.mxu0 0
        %959 = vmatprep.subr.bf16.mxu0 0
        %960 = vmatpush1.bf16.msra.mxu0 0
        %961 = vmatprep.subr.bf16.mxu0 0
        %962 = vmatpush1.bf16.msra.mxu0 0
        %963 = vmatprep.subr.bf16.mxu0 0
        %964 = vmatpush1.bf16.msra.mxu0 0
        %965 = vmatprep.mubr.bf16.mxu0 0
        %966 = vmatmul.mubr.bf16.gmra.mrb[0].mxu0 %v931
        %v967 = vpop.f32.mrb[0].mxu0
        %v968 = vadd.f32 0.0, %v967
        %v969 = vpop.f32.mrb[0].mxu0
        %v970 = vpop.f32.mrb[0].mxu0
        %v971 = vadd.f32 0.0, %v970
        %v972 = vpop.f32.mrb[0].mxu0
        %973 = vdwg.mxu0
        %v974 = vadd.f32 %v897, %v968
        %v975 = vadd.f32 %v898, %v971
        %s976 = scalar_lea.vmem %s3, 56
        %v977 = vld [vmem:[%s976] sm:$0xf]
        %v978 = vld [vmem:[%s976 + $0x4] sm:$0xf]
        %v981 = vunpack.c.l.b16 %v977
        %v982 = vunpack.c.l.b16 %v978
        %v983 = vpack.c.b16 %v982, %v981
        %984 = vrot.lane.b32.xlu0 %v479, 80
        %v985 = vpop.permute.xlu0 %984
        %986 = vrot.lane.b32.xlu0 %v480, 80
        %v987 = vpop.permute.xlu0 %986
        %vm988 = vcmask 654336
        %v989 = vsel %vm988, %v985, %v987
        %v992 = vsel %vm488, %v983, 0
        %994 = vmatprep.subr.bf16.mxu0 0
        %995 = vmatpush1.bf16.msra.mxu0 %v989
        %996 = vmatprep.subr.bf16.mxu0 0
        %997 = vmatpush1.bf16.msra.mxu0 0
        %998 = vmatprep.subr.bf16.mxu0 0
        %999 = vmatpush1.bf16.msra.mxu0 0
        %1000 = vmatprep.subr.bf16.mxu0 0
        %1001 = vmatpush1.bf16.msra.mxu0 0
        %1002 = vmatprep.subr.bf16.mxu0 0
        %1003 = vmatpush1.bf16.msra.mxu0 0
        %1004 = vmatprep.subr.bf16.mxu0 0
        %1005 = vmatpush1.bf16.msra.mxu0 0
        %1006 = vmatprep.subr.bf16.mxu0 0
        %1007 = vmatpush1.bf16.msra.mxu0 0
        %1008 = vmatprep.subr.bf16.mxu0 0
        %1009 = vmatpush1.bf16.msra.mxu0 0
        %1010 = vmatprep.subr.bf16.mxu0 0
        %1011 = vmatpush1.bf16.msra.mxu0 0
        %1012 = vmatprep.subr.bf16.mxu0 0
        %1013 = vmatpush1.bf16.msra.mxu0 0
        %1014 = vmatprep.subr.bf16.mxu0 0
        %1015 = vmatpush1.bf16.msra.mxu0 0
        %1016 = vmatprep.subr.bf16.mxu0 0
        %1017 = vmatpush1.bf16.msra.mxu0 0
        %1018 = vmatprep.subr.bf16.mxu0 0
        %1019 = vmatpush1.bf16.msra.mxu0 0
        %1020 = vmatprep.subr.bf16.mxu0 0
        %1021 = vmatpush1.bf16.msra.mxu0 0
        %1022 = vmatprep.subr.bf16.mxu0 0
        %1023 = vmatpush1.bf16.msra.mxu0 0
        %1024 = vmatprep.subr.bf16.mxu0 0
        %1025 = vmatpush1.bf16.msra.mxu0 0
        %1026 = vmatprep.mubr.bf16.mxu0 0
        %1027 = vmatmul.mubr.bf16.gmra.mrb[0].mxu0 %v992
        %v1028 = vpop.f32.mrb[0].mxu0
        %v1029 = vadd.f32 0.0, %v1028
        %v1030 = vpop.f32.mrb[0].mxu0
        %v1031 = vpop.f32.mrb[0].mxu0
        %v1032 = vadd.f32 0.0, %v1031
        %v1033 = vpop.f32.mrb[0].mxu0
        %1034 = vdwg.mxu0
        %v1035 = vadd.f32 %v974, %v1029
        %v1036 = vadd.f32 %v975, %v1032
        %1037 = vrot.lane.b32.xlu0 %v606, 49
        %v1038 = vpop.permute.xlu0 %1037
        %v1039 = vrot.slane %v1038, 4
        %vm1040 = vcmask 400384
        %v1041 = vsel %vm1040, %v1039, %v1038
        %v1043 = vmul.bf16 %v443, %v1041
        %v1044 = vmul.bf16 %v444, %v1041
        %s1045 = scalar_lea.vmem %s3, 64
        %v1046 = vld [vmem:[%s1045] sm:$0xf]
        %v1047 = vld [vmem:[%s1045 + $0x4] sm:$0xf]
        %v1050 = vunpack.c.l.b16 %v1046
        %v1051 = vunpack.c.l.b16 %v1047
        %v1052 = vpack.c.b16 %v1051, %v1050
        %v1055 = vunpack.c.l.b16 %v1043
        %v1056 = vunpack.c.h.b16 %v1043
        %v1057 = vunpack.c.l.b16 %v1044
        %v1058 = vunpack.c.h.b16 %v1044
        %v1059 = vpack.c.b16 %v1057, %v1055
        %v1060 = vpack.c.b16 %v1058, %v1056
        %1061 = vrot.lane.b32.xlu0 %v1059, 79
        %v1062 = vpop.permute.xlu0 %1061
        %1063 = vrot.lane.b32.xlu0 %v1060, 79
        %v1064 = vpop.permute.xlu0 %1063
        %vm1065 = vcmask 646144
        %v1066 = vsel %vm1065, %v1062, %v1064
        %v1069 = vsel %vm488, %v1052, 0
        %1071 = vmatprep.subr.bf16.mxu0 0
        %1072 = vmatpush1.bf16.msra.mxu0 %v1066
        %1073 = vmatprep.subr.bf16.mxu0 0
        %1074 = vmatpush1.bf16.msra.mxu0 0
        %1075 = vmatprep.subr.bf16.mxu0 0
        %1076 = vmatpush1.bf16.msra.mxu0 0
        %1077 = vmatprep.subr.bf16.mxu0 0
        %1078 = vmatpush1.bf16.msra.mxu0 0
        %1079 = vmatprep.subr.bf16.mxu0 0
        %1080 = vmatpush1.bf16.msra.mxu0 0
        %1081 = vmatprep.subr.bf16.mxu0 0
        %1082 = vmatpush1.bf16.msra.mxu0 0
        %1083 = vmatprep.subr.bf16.mxu0 0
        %1084 = vmatpush1.bf16.msra.mxu0 0
        %1085 = vmatprep.subr.bf16.mxu0 0
        %1086 = vmatpush1.bf16.msra.mxu0 0
        %1087 = vmatprep.subr.bf16.mxu0 0
        %1088 = vmatpush1.bf16.msra.mxu0 0
        %1089 = vmatprep.subr.bf16.mxu0 0
        %1090 = vmatpush1.bf16.msra.mxu0 0
        %1091 = vmatprep.subr.bf16.mxu0 0
        %1092 = vmatpush1.bf16.msra.mxu0 0
        %1093 = vmatprep.subr.bf16.mxu0 0
        %1094 = vmatpush1.bf16.msra.mxu0 0
        %1095 = vmatprep.subr.bf16.mxu0 0
        %1096 = vmatpush1.bf16.msra.mxu0 0
        %1097 = vmatprep.subr.bf16.mxu0 0
        %1098 = vmatpush1.bf16.msra.mxu0 0
        %1099 = vmatprep.subr.bf16.mxu0 0
        %1100 = vmatpush1.bf16.msra.mxu0 0
        %1101 = vmatprep.subr.bf16.mxu0 0
        %1102 = vmatpush1.bf16.msra.mxu0 0
        %1103 = vmatprep.mubr.bf16.mxu0 0
        %1104 = vmatmul.mubr.bf16.gmra.mrb[0].mxu0 %v1069
        %v1105 = vpop.f32.mrb[0].mxu0
        %v1106 = vadd.f32 0.0, %v1105
        %v1107 = vpop.f32.mrb[0].mxu0
        %v1108 = vpop.f32.mrb[0].mxu0
        %v1109 = vadd.f32 0.0, %v1108
        %v1110 = vpop.f32.mrb[0].mxu0
        %1111 = vdwg.mxu0
        %v1112 = vadd.f32 %v1035, %v1106
        %v1113 = vadd.f32 %v1036, %v1109
        %v1114 = vld [vmem:[%s421] sm:$0xff]
        %v1115 = vld [vmem:[%s421 + $0x8] sm:$0xff]
        %1117 = vset.pattern.permute.xlu0 0
        %1118 = vperm.xlu0 %1117, %v1114
        %v1119 = vpop.permute.xlu0 %1118
        %1122 = vset.pattern.permute.xlu0 0
        %1123 = vperm.xlu0 %1122, %v1115
        %v1124 = vpop.permute.xlu0 %1123
        %v1126 = vmul.f32 %v1112, %v1119
        %v1127 = vmul.f32 %v1113, %v1124
        %v1128 = vld [vmem:[%s4] sm:$0xff]
        %v1129 = vld [vmem:[%s4 + $0x8] sm:$0xff]
        %1131 = vset.pattern.permute.xlu0 0
        %1132 = vperm.xlu0 %1131, %v1128
        %v1133 = vpop.permute.xlu0 %1132
        %1136 = vset.pattern.permute.xlu0 0
        %1137 = vperm.xlu0 %1136, %v1129
        %v1138 = vpop.permute.xlu0 %1137
        %v1140 = vadd.f32 %v1126, %v1133
        %v1141 = vadd.f32 %v1127, %v1138
        %v1142 = vld [vmem:[%s428] sm:$0x1]
        %1143 = vset.pattern.permute.xlu0 1
        %1144 = vperm.xlu0 %1143, %v1128
        %v1145 = vpop.permute.xlu0 %1144
        %1147 = vset.pattern.permute.xlu0 1
        %1148 = vperm.xlu0 %1147, %v1129
        %v1149 = vpop.permute.xlu0 %1148
        %v1152 = vlaneseq
        %v1153 = vshrl.u32 %v1152, 7
        %v1154 = vsub.s32 0, %v1153
        %v1155 = vrot.slane %v1142, %v1154
        %v1157 = vmul.f32 %v1145, %v1155
        %v1158 = vmul.f32 %v1149, %v1155
        %v1159 = vadd.f32 %v1140, %v1157
        %v1160 = vadd.f32 %v1141, %v1158
        %vm1161 = vcmp.ge.f32.partialorder %v1159, 0.0
        %vm1162 = vcmp.ge.f32.partialorder %v1160, 0.0
        %v1163 = vmul.f32 %v1159, 0.2
        %v1164 = vmul.f32 %v1160, 0.2
        %v1165 = vsel %vm1161, %v1159, %v1163
        %v1166 = vsel %vm1162, %v1160, %v1164
        %v1167 = vpack.c.bf16 %v1166, %v1165
        %v1169 = vunpack.c.l.b16 %v1167
        %v1170 = vunpack.c.h.b16 %v1167
        %v1171 = vpack.c.b16 %v1169, %v1169
        %v1172 = vpack.c.b16 %v1170, %v1170
        %1175 = vst [vmem:[%s397] sm:$0xf] %v1171
        %1176 = vst [vmem:[%s397 + $0x4] sm:$0xf] %v1172
        %v1177 = vld [vmem:[%s432] sm:$0xf]
        %v1178 = vld [vmem:[%s7] sm:$0xff]
        %1180 = vset.pattern.permute.xlu0 0
        %1181 = vperm.xlu0 %1180, %v1178
        %v1182 = vpop.permute.xlu0 %1181
        %v1185 = vsel %vm488, %v1177, 0
        %1187 = vmatprep.subr.bf16.mxu0 0
        %1188 = vmatpush1.bf16.msra.mxu0 %v1167
        %1189 = vmatprep.subr.bf16.mxu0 0
        %1190 = vmatpush1.bf16.msra.mxu0 0
        %1191 = vmatprep.subr.bf16.mxu0 0
        %1192 = vmatpush1.bf16.msra.mxu0 0
        %1193 = vmatprep.subr.bf16.mxu0 0
        %1194 = vmatpush1.bf16.msra.mxu0 0
        %1195 = vmatprep.subr.bf16.mxu0 0
        %1196 = vmatpush1.bf16.msra.mxu0 0
        %1197 = vmatprep.subr.bf16.mxu0 0
        %1198 = vmatpush1.bf16.msra.mxu0 0
        %1199 = vmatprep.subr.bf16.mxu0 0
        %1200 = vmatpush1.bf16.msra.mxu0 0
        %1201 = vmatprep.subr.bf16.mxu0 0
        %1202 = vmatpush1.bf16.msra.mxu0 0
        %1203 = vmatprep.subr.bf16.mxu0 0
        %1204 = vmatpush1.bf16.msra.mxu0 0
        %1205 = vmatprep.subr.bf16.mxu0 0
        %1206 = vmatpush1.bf16.msra.mxu0 0
        %1207 = vmatprep.subr.bf16.mxu0 0
        %1208 = vmatpush1.bf16.msra.mxu0 0
        %1209 = vmatprep.subr.bf16.mxu0 0
        %1210 = vmatpush1.bf16.msra.mxu0 0
        %1211 = vmatprep.subr.bf16.mxu0 0
        %1212 = vmatpush1.bf16.msra.mxu0 0
        %1213 = vmatprep.subr.bf16.mxu0 0
        %1214 = vmatpush1.bf16.msra.mxu0 0
        %1215 = vmatprep.subr.bf16.mxu0 0
        %1216 = vmatpush1.bf16.msra.mxu0 0
        %1217 = vmatprep.subr.bf16.mxu0 0
        %1218 = vmatpush1.bf16.msra.mxu0 0
        %1219 = vmatprep.mubr.bf16.mxu0 0
        %1220 = vmatmul.mubr.bf16.gmra.mrb[0].mxu0 %v1185
        %v1221 = vpop.f32.mrb[0].mxu0
        %v1222 = vadd.f32 %v1182, %v1221
        %v1223 = vpop.f32.mrb[0].mxu0
        %v1224 = vpop.f32.mrb[0].mxu0
        %v1225 = vpop.f32.mrb[0].mxu0
        %1226 = vdwg.mxu0
        %vm1227 = vcmp.ge.f32.partialorder %v1222, 0.0
        %v1228 = vmul.f32 %v1222, 0.2
        %v1229 = vsel %vm1227, %v1222, %v1228
        %1230 = vst [vmem:[%s440] sm:$0xff] %v1229
        %s1231 = sand.u32 %s235, 1
        %s1232 = sand.u32 %s235, 1
        %s1233 = smul.addr %s1232, 8
        %s1234 = scalar_lea.vmem [#allocation2], %s1233
        %p1235 = scmp.lt.s32.totalorder %s25, 1
        %s1236 = scalar_select %p1235, %s25, 1
        %p1237 = scmp.lt.s32.totalorder %s26, 1
        %s1238 = scalar_select %p1237, %s26, 1
        %s1239 = smul.addr %s1236, 2
        %s1240 = sadd.s32 %s1238, %s1239
        %s1241 = smul.addr %s1240, 8
        %s1242 = scalar_lea.vmem %s9, %s1241
        // Predicated region
        $region53: #{generator_block_forward.3} parent=51 // pred_check
          %p1243 = pneg %p245
        $region54: #{generator_block_forward.3} parent=51 // pred_check_branch
          %1245 = sbr.rel (%p1243) target = $region56
        $region55: #{generator_block_forward.3} parent=51 // pred_region
          %s1246 = smul.addr %s25, 4
          %s1247 = sadd.s32 %s26, %s1246
          %s1248 = smul.addr %s1247, 4
          %s1249 = scalar_lea.vmem %s8, %s1248
          // Predicated region
          $region57: #{generator_block_forward.3} parent=55 // pred_check
            _
          $region58: #{generator_block_forward.3} parent=55 // pred_check_branch
            %1251 = sbr.rel (0) target = $region60
          $region59: #{generator_block_forward.3} parent=55 // pred_region
            // Predicated region
            $region61: #{generator_block_forward.3} parent=59 // pred_check
              _
            $region62: #{generator_block_forward.3} parent=59 // pred_check_branch
              %1253 = sbr.rel target = $region64
            $region63: #{generator_block_forward.3} parent=59 // pred_region
              // Predicated region
              $region76: #{generator_block_forward.3} parent=63 // pred_check
                _
              $region77: #{generator_block_forward.3} parent=63 // pred_check_branch
                %1270 = sbr.rel (0) target = $region79
              $region78: #{generator_block_forward.3} parent=63 // pred_region
                loop: start=0, step=1, limit=1
                $region80: #{generator_block_forward.3} parent=78 // loop_pre_header
                  _
                $region81: #{generator_block_forward.3} parent=78 // loop_header
                  %s1272 = sphi 0, %s1276
                  %p1273 = scmp.ge.s32.totalorder %s1272, 1
                  %s1277 = sphi %s1234, %s1234
                  %s1278 = sphi %s1249, %s1249
                $region82: #{generator_block_forward.3} parent=78 // loop_header_branch
                  %1275 = sbr.rel (%p1273) target = $region86
                $region83: #{generator_block_forward.3} parent=78 // loop_body
                  _
                $region84: #{generator_block_forward.3} parent=78 // loop_footer
                  %s1276 = sadd.s32 1, %s1272
                $region85: #{generator_block_forward.3} parent=78 // loop_footer_branch
                  %1271 = sbr.rel target = $region81
                $region86: #{generator_block_forward.3} parent=78 // loop_exit
                  _
                loop: start=0, step=1, limit=1
                $region87: #{generator_block_forward.3} parent=78 // loop_pre_header
                  _
                $region88: #{generator_block_forward.3} parent=78 // loop_header
                  %s1281 = sphi 0, %s1285
                  %p1282 = scmp.ge.s32.totalorder %s1281, 1
                  %s1286 = sphi %s1234, %s1234
                  %s1287 = sphi %s1249, %s1249
                $region89: #{generator_block_forward.3} parent=78 // loop_header_branch
                  %1284 = sbr.rel (%p1282) target = $region93
                $region90: #{generator_block_forward.3} parent=78 // loop_body
                  %v1288 = vld [vmem:[%s1286] sm:$0xf]
                  %1289 = vst [vmem:[%s1287] sm:$0xf] %v1288
                  %v1290 = vld [vmem:[%s1286 + $0x4] sm:$0xf]
                  %1291 = vst [vmem:[%s1287 + $0x8] sm:$0xf] %v1290
                $region91: #{generator_block_forward.3} parent=78 // loop_footer
                  %s1285 = sadd.s32 1, %s1281
                $region92: #{generator_block_forward.3} parent=78 // loop_footer_branch
                  %1280 = sbr.rel target = $region88
                $region93: #{generator_block_forward.3} parent=78 // loop_exit
                  _
              $region79: #{generator_block_forward.3} parent=63 // pred_fallthru
                _
            $region64: #{generator_block_forward.3} parent=59 // pred_fallthru
              _
            // Predicated region
            $region65: #{generator_block_forward.3} parent=59 // pred_check
              _
            $region66: #{generator_block_forward.3} parent=59 // pred_check_branch
              %1255 = sbr.rel (0) target = $region68
            $region67: #{generator_block_forward.3} parent=59 // pred_region
              loop: start=0, step=1, limit=1
              $region69: #{generator_block_forward.3} parent=67 // loop_pre_header
                _
              $region70: #{generator_block_forward.3} parent=67 // loop_header
                %s1258 = sphi 0, %s1262
                %p1259 = scmp.ge.s32.totalorder %s1258, 1
                %s1263 = sphi %s1234, %s1234
                %s1264 = sphi %s1249, %s1249
              $region71: #{generator_block_forward.3} parent=67 // loop_header_branch
                %1261 = sbr.rel (%p1259) target = $region75
              $region72: #{generator_block_forward.3} parent=67 // loop_body
                %v1265 = vld [vmem:[%s1263] sm:$0xf]
                %1266 = vst [vmem:[%s1264] sm:$0xf] %v1265
                %v1267 = vld [vmem:[%s1263 + $0x4] sm:$0xf]
                %1268 = vst [vmem:[%s1264 + $0x8] sm:$0xf] %v1267
              $region73: #{generator_block_forward.3} parent=67 // loop_footer
                %s1262 = sadd.s32 1, %s1258
              $region74: #{generator_block_forward.3} parent=67 // loop_footer_branch
                %1257 = sbr.rel target = $region70
              $region75: #{generator_block_forward.3} parent=67 // loop_exit
                _
            $region68: #{generator_block_forward.3} parent=59 // pred_fallthru
              _
          $region60: #{generator_block_forward.3} parent=55 // pred_fallthru
            _
          %1292 = vnop
        $region56: #{generator_block_forward.3} parent=51 // pred_fallthru
          _
        // Predicated region
        $region94: #{generator_block_forward.3} parent=51 // pred_check
          %p1293 = pneg %p273
        $region95: #{generator_block_forward.3} parent=51 // pred_check_branch
          %1295 = sbr.rel (%p1293) target = $region97
        $region96: #{generator_block_forward.3} parent=51 // pred_region
          _
        $region97: #{generator_block_forward.3} parent=51 // pred_fallthru
          _
      $region52: #{generator_block_forward.3} parent=5 // pred_fallthru
        _
      %p1296 = scmp.le.s32.totalorder 2, %s16
      // Predicated region
      $region98: #{generator_block_forward.3} parent=5 // pred_check
        %p1297 = pneg %p1296
      $region99: #{generator_block_forward.3} parent=5 // pred_check_branch
        %1299 = sbr.rel (%p1297) target = $region101
      $region100: #{generator_block_forward.3} parent=5 // pred_region
        %s1300 = ssub.s32 %s16, 2
        // Predicated region
        $region102: #{generator_block_forward.3} parent=100 // pred_check
          %p1301 = pneg %p251
        $region103: #{generator_block_forward.3} parent=100 // pred_check_branch
          %1303 = sbr.rel (%p1301) target = $region105
        $region104: #{generator_block_forward.3} parent=100 // pred_region
          %s1304 = sand.u32 %s236, 1
          %s1305 = sand.u32 %s236, 1
          %s1306 = smul.addr %s1305, 8
          %s1307 = scalar_lea.vmem [#allocation2], %s1306
        $region105: #{generator_block_forward.3} parent=100 // pred_fallthru
          _
        // Predicated region
        $region106: #{generator_block_forward.3} parent=100 // pred_check
          %p1308 = pneg %p279
        $region107: #{generator_block_forward.3} parent=100 // pred_check_branch
          %1310 = sbr.rel (%p1308) target = $region109
        $region108: #{generator_block_forward.3} parent=100 // pred_region
          %p1311 = scmp.lt.s32.totalorder %s27, 1
          %s1312 = scalar_select %p1311, %s27, 1
          %p1313 = scmp.lt.s32.totalorder %s28, 1
          %s1314 = scalar_select %p1313, %s28, 1
          %s1315 = smul.addr %s1312, 2
          %s1316 = sadd.s32 %s1314, %s1315
          %s1317 = smul.addr %s1316, 8
          %s1318 = scalar_lea.vmem %s9, %s1317
        $region109: #{generator_block_forward.3} parent=100 // pred_fallthru
          _
      $region101: #{generator_block_forward.3} parent=5 // pred_fallthru
        _
    $region6: #{generator_block_forward.3} parent=1 // loop_footer
      %s20 = sadd.s32 1, %s16
    $region7: #{generator_block_forward.3} parent=1 // loop_footer_branch
      %15 = sbr.rel target = $region3
    $region8: #{generator_block_forward.3} parent=1 // loop_exit
      _

</llo_original>
